<compile_context>
chip_gen: v7x
topology: tpu7x:2x2x1
jax: 0.10.0
libtpu: 0.0.40
codegen_flags: <defaults>
</compile_context>

<pallas_src>
import functools

import jax
import jax.numpy as jnp
from jax import lax
from jax.experimental import pallas as pl
from jax.experimental.pallas import tpu as pltpu

BN_EPS = 1e-5
LEAKY_SLOPE = 0.01  # nn.LeakyReLU() default negative_slope
LANE = 128


def _stats_kernel(x_ref, w_ref, stats_ref):
    # One packed MXU matmul per tile: (TM, k*k*C_in) @ (k*k*C_in, C_pad).
    # Result stays in vregs; only per-channel partial sums go to HBM.
    y = jnp.dot(x_ref[...], w_ref[...], preferred_element_type=jnp.float32)
    stats_ref[0, 0:1, :] = jnp.sum(y, axis=0, keepdims=True)       # sum
    stats_ref[0, 1:2, :] = jnp.sum(y * y, axis=0, keepdims=True)   # sum of squares


def _conv_bn_lrelu_kernel(x_ref, w_ref, scale_ref, shift_ref, o_ref):
    # Recompute the matmul (far cheaper than round-tripping conv_out via HBM),
    # then fused BN affine + LeakyReLU; store only the true C_out channels.
    y = jnp.dot(x_ref[...], w_ref[...], preferred_element_type=jnp.float32)
    t = y * scale_ref[...] + shift_ref[...]
    t = jnp.where(t >= 0, t, LEAKY_SLOPE * t)
    o_ref[...] = t[:, : o_ref.shape[1]].astype(o_ref.dtype)


@functools.partial(jax.jit, static_argnames=("stride", "padding", "tile_m"))
def conv_transpose_bn_lrelu(x_nchw, w_t, gamma, beta, *, stride, padding, tile_m=4096):
    """x_nchw: (N, C_in, H, W); w_t: (C_in, C_out, k, k) [ConvTranspose2d layout]."""
    N, C_in, H, W = x_nchw.shape
    _, C_out, k, _ = w_t.shape
    s, p = stride, padding
    H_out = (H - 1) * s - 2 * p + k
    W_out = (W - 1) * s - 2 * p + k

    # ---- glue: dilate + pad/crop + packed im2col (NHWC) ----
    # TODO(synk): replace with an in-kernel stride-phase (pixel-shuffle)
    # decomposition or a tap-reduction grid axis with index_map-shifted reads.
    x = jnp.transpose(x_nchw, (0, 2, 3, 1)).astype(jnp.float32)  # NHWC
    H_d = (H - 1) * s + 1
    W_d = (W - 1) * s + 1
    x_dil = jnp.zeros((N, H_d, W_d, C_in), jnp.float32).at[:, ::s, ::s, :].set(x)
    pad = k - 1 - p
    if pad >= 0:
        x_pad = jnp.pad(x_dil, ((0, 0), (pad, pad), (pad, pad), (0, 0)))
    else:  # padding > k - 1: crop instead of (invalid) negative pad
        c = -pad
        x_pad = x_dil[:, c:H_d - c, c:W_d - c, :]

    M = N * H_out * W_out
    K = k * k * C_in
    cols = [x_pad[:, kh:kh + H_out, kw:kw + W_out, :]
            for kh in range(k) for kw in range(k)]
    x_cols = jnp.concatenate(cols, axis=-1).reshape(M, K)  # (M, k*k*C_in)

    # Packed dense weight matching the tap ordering above:
    #   rows [(kh*k+kw)*C_in : +C_in] = w_t[:, :, k-1-kh, k-1-kw]
    w_packed = jnp.transpose(w_t[:, :, ::-1, ::-1], (2, 3, 0, 1)).reshape(K, C_out)
    # Lane-dense weight/scale/shift: pad C_out to a multiple of 128 (tiny arrays;
    # the big HBM streams stay at true C_out width).
    C_pad = ((C_out + LANE - 1) // LANE) * LANE
    w_pad = jnp.zeros((K, C_pad), jnp.float32).at[:, :C_out].set(
        w_packed.astype(jnp.float32))
    # TODO(synk): bf16 operands for the MXU on v6e/v7x (keep f32 accumulation);
    # kept f32 here to stay inside the 1e-4 tolerance vs the f32 reference.

    # ---- tile M; keep G >= 2 so v7x's two TensorCores both get work ----
    M_ceil8 = ((M + 7) // 8) * 8
    TM = min(tile_m, M_ceil8)
    TM = ((TM + 7) // 8) * 8
    if TM >= M_ceil8 and M_ceil8 >= 16:
        TM = (((M_ceil8 + 1) // 2 + 7) // 8) * 8   # split into 2 tiles
    M_pad = ((M + TM - 1) // TM) * TM
    G = M_pad // TM
    # Zero rows give zero conv outputs, so BN sums are unaffected (we divide by
    # the true M below) and padded output rows are sliced off at the end.
    x_cols = jnp.pad(x_cols, ((0, M_pad - M), (0, 0)))

    # Explicit VMEM budget (v7x has only 64 MiB physical / ~32 MiB scoped).
    step_bytes = 4 * (TM * K + K * C_pad + 2 * C_pad + TM * C_pad + TM * C_out)
    vmem_limit = int(min(48 << 20, max(16 << 20, 4 * step_bytes)))
    cparams = pltpu.CompilerParams(
        dimension_semantics=("parallel",), vmem_limit_bytes=vmem_limit)

    # ---- pass 1: per-tile BN partial stats (no conv intermediate in HBM) ----
    stats = pl.pallas_call(
        _stats_kernel,
        out_shape=jax.ShapeDtypeStruct((G, 2, C_pad), jnp.float32),
        grid=(G,),
        in_specs=[pl.BlockSpec((TM, K), lambda i: (i, 0)),
                  pl.BlockSpec((K, C_pad), lambda i: (0, 0))],
        out_specs=pl.BlockSpec((1, 2, C_pad), lambda i: (i, 0, 0)),
        compiler_params=cparams,
    )(x_cols, w_pad)

    # ---- tiny glue: fold partials into BN scale/shift (f32) ----
    totals = jnp.sum(stats, axis=0)                       # (2, C_pad)
    mean = totals[0] / M
    var = jnp.maximum(totals[1] / M - mean * mean, 0.0)   # biased batch variance
    # gamma_pad = 0 on padded channels (keeps padded lanes exactly 0, never huge).
    gamma_pad = jnp.zeros((C_pad,), jnp.float32).at[:C_out].set(gamma.astype(jnp.float32))
    beta_pad = jnp.zeros((C_pad,), jnp.float32).at[:C_out].set(beta.astype(jnp.float32))
    inv = lax.rsqrt(var + BN_EPS)
    scale = (gamma_pad * inv).reshape(1, C_pad)
    shift = (beta_pad - mean * gamma_pad * inv).reshape(1, C_pad)

    # ---- pass 2: recompute matmul + fused BN affine + LeakyReLU ----
    out_flat = pl.pallas_call(
        _conv_bn_lrelu_kernel,
        out_shape=jax.ShapeDtypeStruct((M_pad, C_out), x_nchw.dtype),
        grid=(G,),
        in_specs=[pl.BlockSpec((TM, K), lambda i: (i, 0)),
                  pl.BlockSpec((K, C_pad), lambda i: (0, 0)),
                  pl.BlockSpec((1, C_pad), lambda i: (0, 0)),
                  pl.BlockSpec((1, C_pad), lambda i: (0, 0))],
        out_specs=pl.BlockSpec((TM, C_out), lambda i: (i, 0)),
        compiler_params=cparams,
    )(x_cols, w_pad, scale, shift)

    # TODO(synk): emit NCHW directly from pass 2 (XLU transpose on the idle
    # slot) to drop this wrapper-side transpose for production shapes.
    out = out_flat[:M].reshape(N, H_out, W_out, C_out)
    return jnp.transpose(out, (0, 3, 1, 2))  # back to NCHW


def reference(x_nchw, w_t, gamma, beta, *, stride, padding):
    """Pure-JAX reference (XLA conv path) mirroring PyTorch semantics."""
    k = w_t.shape[2]
    w_oihw = jnp.transpose(w_t[:, :, ::-1, ::-1], (1, 0, 2, 3))  # (C_out, C_in, k, k)
    y = lax.conv_general_dilated(
        x_nchw, w_oihw,
        window_strides=(1, 1),
        padding=[(k - 1 - padding, k - 1 - padding)] * 2,
        lhs_dilation=(stride, stride),
        dimension_numbers=('NCHW', 'OIHW', 'NCHW'))
    mean = jnp.mean(y, axis=(0, 2, 3), keepdims=True)
    var = jnp.mean((y - mean) ** 2, axis=(0, 2, 3), keepdims=True)
    yn = (y - mean) * lax.rsqrt(var + BN_EPS)
    yb = yn * gamma.reshape(1, -1, 1, 1) + beta.reshape(1, -1, 1, 1)
    return jnp.where(yb >= 0, yb, LEAKY_SLOPE * yb)


if __name__ == "__main__":
    # Module hyper-params (small, consistent with the nn.Module __init__):
    in_channels, out_channels, kernel_size, stride, padding = 4, 8, 4, 2, 1
    N, H, W = 2, 16, 16

    key = jax.random.PRNGKey(0)
    kx, kw = jax.random.split(key)
    x = jax.random.normal(kx, (N, in_channels, H, W), jnp.float32)
    # ConvTranspose2d weight layout: (in_channels, out_channels, kH, kW)
    w_t = jax.random.normal(kw, (in_channels, out_channels, kernel_size, kernel_size),
                            jnp.float32) * 0.1
    # BatchNorm2d default affine init: gamma=1, beta=0
    gamma = jnp.ones((out_channels,), jnp.float32)
    beta = jnp.zeros((out_channels,), jnp.float32)

    out = conv_transpose_bn_lrelu(x, w_t, gamma, beta, stride=stride, padding=padding)
    out = jax.block_until_ready(out)

    ref = reference(x, w_t, gamma, beta, stride=stride, padding=padding)
    H_out = (H - 1) * stride - 2 * padding + kernel_size
    W_out = (W - 1) * stride - 2 * padding + kernel_size
    assert out.shape == ref.shape == (N, out_channels, H_out, W_out)
    assert jnp.allclose(out, ref, atol=1e-4, rtol=1e-4), "mismatch vs reference"
    print("KERNEL_OK")
</pallas_src>

<mosaic_0001>
module attributes {stable_mosaic.version = 11 : i64} {
  func.func @_stats_kernel(%arg0: i32, %arg1: memref<1024x64xf32, #tpu.memory_space<vmem>>, %arg2: memref<64x128xf32, #tpu.memory_space<vmem>>, %arg3: memref<1x2x128xf32, #tpu.memory_space<vmem>>) attributes {dimension_semantics = [#tpu.dimension_semantics<parallel>], iteration_bounds = array<i64: 2>, scalar_prefetch = 0 : i64, scratch_operands = 0 : i64, tpu.core_type = #tpu.core_type<tc>, window_params = [{transform_indices = @transform_0, window_bounds = array<i64: 1024, 64>}, {pipeline_mode = #tpu.pipeline_mode<synchronous>, transform_indices = @transform_1, window_bounds = array<i64: 64, 128>}, {transform_indices = @transform_2, window_bounds = array<i64: 1, 2, 128>}]} {
    %c0 = arith.constant 0 : index
    %c0_0 = arith.constant 0 : index
    %0 = vector.load %arg1[%c0, %c0_0] : memref<1024x64xf32, #tpu.memory_space<vmem>>, vector<1024x64xf32>
    %c0_1 = arith.constant 0 : index
    %c0_2 = arith.constant 0 : index
    %1 = vector.load %arg2[%c0_1, %c0_2] : memref<64x128xf32, #tpu.memory_space<vmem>>, vector<64x128xf32>
    %cst = arith.constant dense<0.000000e+00> : vector<1024x128xf32>
    %2 = tpu.matmul %0, %1, %cst {dimension_numbers = #tpu.dot_dimension_numbers<[1], [0], [0], [1], [0, 0, 1, 1], [], []>} : vector<1024x64xf32>, vector<64x128xf32>, vector<1024x128xf32> -> vector<1024x128xf32>
    %cst_3 = arith.constant dense<0.000000e+00> : vector<128xf32>
    %3 = vector.multi_reduction <add>, %2, %cst_3 [0] : vector<1024x128xf32> to vector<128xf32>
    %4 = vector.shape_cast %3 : vector<128xf32> to vector<1x128xf32>
    %c0_4 = arith.constant 0 : index
    %c0_5 = arith.constant 0 : index
    %c0_6 = arith.constant 0 : index
    %5 = vector.load %arg3[%c0_4, %c0_5, %c0_6] : memref<1x2x128xf32, #tpu.memory_space<vmem>>, vector<1x1x128xf32>
    %6 = vector.shape_cast %5 : vector<1x1x128xf32> to vector<1x128xf32>
    %7 = vector.shape_cast %4 : vector<1x128xf32> to vector<1x1x128xf32>
    tpu.vector_store %arg3[%c0_4, %c0_5, %c0_6], %7 {strides = array<i32>} : memref<1x2x128xf32, #tpu.memory_space<vmem>>, vector<1x1x128xf32>,
    %8 = arith.mulf %2, %2 : vector<1024x128xf32>
    %cst_7 = arith.constant dense<0.000000e+00> : vector<128xf32>
    %9 = vector.multi_reduction <add>, %8, %cst_7 [0] : vector<1024x128xf32> to vector<128xf32>
    %10 = vector.shape_cast %9 : vector<128xf32> to vector<1x128xf32>
    %c0_8 = arith.constant 0 : index
    %c1 = arith.constant 1 : index
    %c0_9 = arith.constant 0 : index
    %11 = vector.load %arg3[%c0_8, %c1, %c0_9] : memref<1x2x128xf32, #tpu.memory_space<vmem>>, vector<1x1x128xf32>
    %12 = vector.shape_cast %11 : vector<1x1x128xf32> to vector<1x128xf32>
    %13 = vector.shape_cast %10 : vector<1x128xf32> to vector<1x1x128xf32>
    tpu.vector_store %arg3[%c0_8, %c1, %c0_9], %13 {strides = array<i32>} : memref<1x2x128xf32, #tpu.memory_space<vmem>>, vector<1x1x128xf32>,
    return
  }
  func.func @transform_0(%arg0: i32) -> (i32, i32) {
    %c0_i32 = arith.constant 0 : i32
    %c0_i32_0 = arith.constant 0 : i32
    return %arg0, %c0_i32 : i32, i32
  }
  func.func @transform_1(%arg0: i32) -> (i32, i32) {
    %c0_i32 = arith.constant 0 : i32
    %c0_i32_0 = arith.constant 0 : i32
    %c0_i32_1 = arith.constant 0 : i32
    return %c0_i32, %c0_i32_0 : i32, i32
  }
  func.func @transform_2(%arg0: i32) -> (i32, i32, i32) {
    %c0_i32 = arith.constant 0 : i32
    %c0_i32_0 = arith.constant 0 : i32
    %c0_i32_1 = arith.constant 0 : i32
    return %arg0, %c0_i32, %c0_i32_0 : i32, i32, i32
  }
}

module attributes {stable_mosaic.version = 11 : i64} {
  func.func @_conv_bn_lrelu_kernel(%arg0: i32, %arg1: memref<1024x64xf32, #tpu.memory_space<vmem>>, %arg2: memref<64x128xf32, #tpu.memory_space<vmem>>, %arg3: memref<1x128xf32, #tpu.memory_space<vmem>>, %arg4: memref<1x128xf32, #tpu.memory_space<vmem>>, %arg5: memref<1024x8xf32, #tpu.memory_space<vmem>>) attributes {dimension_semantics = [#tpu.dimension_semantics<parallel>], iteration_bounds = array<i64: 2>, scalar_prefetch = 0 : i64, scratch_operands = 0 : i64, tpu.core_type = #tpu.core_type<tc>, window_params = [{transform_indices = @transform_0, window_bounds = array<i64: 1024, 64>}, {pipeline_mode = #tpu.pipeline_mode<synchronous>, transform_indices = @transform_1, window_bounds = array<i64: 64, 128>}, {pipeline_mode = #tpu.pipeline_mode<synchronous>, transform_indices = @transform_2, window_bounds = array<i64: 1, 128>}, {pipeline_mode = #tpu.pipeline_mode<synchronous>, transform_indices = @transform_3, window_bounds = array<i64: 1, 128>}, {transform_indices = @transform_4, window_bounds = array<i64: 1024, 8>}]} {
    %c0 = arith.constant 0 : index
    %c0_0 = arith.constant 0 : index
    %0 = vector.load %arg1[%c0, %c0_0] : memref<1024x64xf32, #tpu.memory_space<vmem>>, vector<1024x64xf32>
    %c0_1 = arith.constant 0 : index
    %c0_2 = arith.constant 0 : index
    %1 = vector.load %arg2[%c0_1, %c0_2] : memref<64x128xf32, #tpu.memory_space<vmem>>, vector<64x128xf32>
    %cst = arith.constant dense<0.000000e+00> : vector<1024x128xf32>
    %2 = tpu.matmul %0, %1, %cst {dimension_numbers = #tpu.dot_dimension_numbers<[1], [0], [0], [1], [0, 0, 1, 1], [], []>} : vector<1024x64xf32>, vector<64x128xf32>, vector<1024x128xf32> -> vector<1024x128xf32>
    %c0_3 = arith.constant 0 : index
    %c0_4 = arith.constant 0 : index
    %3 = vector.load %arg3[%c0_3, %c0_4] : memref<1x128xf32, #tpu.memory_space<vmem>>, vector<1x128xf32>
    %4 = vector.broadcast %3 : vector<1x128xf32> to vector<1024x128xf32>
    %5 = arith.mulf %2, %4 : vector<1024x128xf32>
    %c0_5 = arith.constant 0 : index
    %c0_6 = arith.constant 0 : index
    %6 = vector.load %arg4[%c0_5, %c0_6] : memref<1x128xf32, #tpu.memory_space<vmem>>, vector<1x128xf32>
    %7 = vector.broadcast %6 : vector<1x128xf32> to vector<1024x128xf32>
    %8 = arith.addf %5, %7 : vector<1024x128xf32>
    %cst_7 = arith.constant 0.000000e+00 : f32
    %9 = vector.broadcast %cst_7 : f32 to vector<1024x128xf32>
    %10 = arith.cmpf oge, %8, %9 : vector<1024x128xf32>
    %cst_8 = arith.constant 0.00999999977 : f32
    %11 = vector.broadcast %cst_8 : f32 to vector<1024x128xf32>
    %12 = arith.mulf %11, %8 : vector<1024x128xf32>
    %13 = arith.select %10, %8, %12 : vector<1024x128xi1>, vector<1024x128xf32>
    %14 = vector.extract_strided_slice %13 {offsets = [0, 0], sizes = [1024, 8], strides = [1, 1]} : vector<1024x128xf32> to vector<1024x8xf32>
    %c0_9 = arith.constant 0 : index
    %c0_10 = arith.constant 0 : index
    %15 = vector.load %arg5[%c0_9, %c0_10] : memref<1024x8xf32, #tpu.memory_space<vmem>>, vector<1024x8xf32>
    tpu.vector_store %arg5[%c0_9, %c0_10], %14 {strides = array<i32>} : memref<1024x8xf32, #tpu.memory_space<vmem>>, vector<1024x8xf32>,
    return
  }
  func.func @transform_0(%arg0: i32) -> (i32, i32) {
    %c0_i32 = arith.constant 0 : i32
    %c0_i32_0 = arith.constant 0 : i32
    return %arg0, %c0_i32 : i32, i32
  }
  func.func @transform_1(%arg0: i32) -> (i32, i32) {
    %c0_i32 = arith.constant 0 : i32
    %c0_i32_0 = arith.constant 0 : i32
    %c0_i32_1 = arith.constant 0 : i32
    return %c0_i32, %c0_i32_0 : i32, i32
  }
  func.func @transform_2(%arg0: i32) -> (i32, i32) {
    %c0_i32 = arith.constant 0 : i32
    %c0_i32_0 = arith.constant 0 : i32
    %c0_i32_1 = arith.constant 0 : i32
    return %c0_i32, %c0_i32_0 : i32, i32
  }
  func.func @transform_3(%arg0: i32) -> (i32, i32) {
    %c0_i32 = arith.constant 0 : i32
    %c0_i32_0 = arith.constant 0 : i32
    %c0_i32_1 = arith.constant 0 : i32
    return %c0_i32, %c0_i32_0 : i32, i32
  }
  func.func @transform_4(%arg0: i32) -> (i32, i32) {
    %c0_i32 = arith.constant 0 : i32
    %c0_i32_0 = arith.constant 0 : i32
    return %arg0, %c0_i32 : i32, i32
  }
}

</mosaic_0001>

<llo_original>
// kernel: conv_transpose_bn_lrelu.2
$region0: #{conv_transpose_bn_lrelu.2}
  #allocation0 [shape = 'u32[]', space=smem, size = 0x4, offset = 0x4, fixed_abs, tag = 'smem constant byte address 0x4 - core index']
  #allocation1 [shape = 'u32[144,128]{1,0:T(1,128)}', space=vmem, size = 0x12000, scoped, tag = 'internal scratch']
  %s0 = inlined_call_operand.vmem [shape: f32[2048,64], index: 0, kind: input, shape index: {}]
  %s1 = inlined_call_operand.vmem [shape: f32[64,128], index: 1, kind: input, shape index: {}]
  %s2 = inlined_call_operand.vmem [shape: f32[2,2,128], index: 2, kind: output, shape index: {}]
  %s3 = sld [smem:[#allocation0]]
  $region41: #{conv_transpose_bn_lrelu.2} parent=0
    _
  %s5 = ssub.s32 1, %s3
  %s6 = scalar_select 0, %s5, %s3
  loop: start=0, step=1, limit=4
  $region2: #{conv_transpose_bn_lrelu.2} parent=0 // loop_pre_header
    _
  $region3: #{conv_transpose_bn_lrelu.2} parent=0 // loop_header
    %s8 = sphi 0, %s12
    %p9 = scmp.ge.s32.totalorder %s8, 4
    %s18 = sphi 0, %s20
    %s21 = sphi 0, %s18
    %s22 = sphi 0, %s21
    %s38 = sphi 0, %s22
    %s42 = sphi 0, %s42
    %s44 = sphi 0, %s42
    %s45 = sphi 0, %s44
    %s59 = sphi 0, %s45
    %s65 = sphi 0, %s67
    %s68 = sphi 0, %s65
    %s69 = sphi 0, %s68
    %s85 = sphi 0, %s69
  $region4: #{conv_transpose_bn_lrelu.2} parent=0 // loop_header_branch
    %11 = sbr.rel (%p9) target = $region8
  $region5: #{conv_transpose_bn_lrelu.2} parent=0 // loop_body
    %s13 = ssub.s32 %s8, 1
    %s14 = ssub.s32 %s8, 2
    %s15 = sadd.s32 %s8, 1
    %s16 = ssub.s32 %s8, %s15
    %p17 = scmp.eq.s32.totalorder %s16, 0
    %s19 = sadd.s32 %s18, 1
    %s20 = scalar_select %p17, %s18, %s19
    %p23 = pneg %p17
    %p24 = scmp.eq.s32.totalorder %s8, 1
    %p25 = por %p23, %p24
    %p26 = scmp.ne.s32.totalorder %s18, %s21
    %p27 = scmp.eq.s32.totalorder %s8, 0
    %p28 = por %p26, %p27
    %p29 = scmp.ne.s32.totalorder %s18, %s21
    %p30 = scmp.eq.s32.totalorder %s13, 1
    %p31 = por %p29, %p30
    %p32 = scmp.ne.s32.totalorder %s21, %s22
    %p33 = scmp.eq.s32.totalorder %s13, 0
    %p34 = por %p32, %p33
    %p35 = scmp.ne.s32.totalorder %s21, %s22
    %p36 = scmp.eq.s32.totalorder %s14, 1
    %p37 = por %p35, %p36
    %p39 = scmp.ne.s32.totalorder %s22, %s38
    %p40 = scmp.eq.s32.totalorder %s14, 0
    %p41 = por %p39, %p40
    %s43 = sadd.s32 %s42, 1
    %p46 = scmp.eq.s32.totalorder %s8, 1
    %p47 = scmp.ne.s32.totalorder %s42, %s44
    %p48 = scmp.eq.s32.totalorder %s8, 0
    %p49 = por %p47, %p48
    %p50 = scmp.ne.s32.totalorder %s42, %s44
    %p51 = scmp.eq.s32.totalorder %s13, 1
    %p52 = por %p50, %p51
    %p53 = scmp.ne.s32.totalorder %s44, %s45
    %p54 = scmp.eq.s32.totalorder %s13, 0
    %p55 = por %p53, %p54
    %p56 = scmp.ne.s32.totalorder %s44, %s45
    %p57 = scmp.eq.s32.totalorder %s14, 1
    %p58 = por %p56, %p57
    %p60 = scmp.ne.s32.totalorder %s45, %s59
    %p61 = scmp.eq.s32.totalorder %s14, 0
    %p62 = por %p60, %p61
    %s63 = ssub.s32 %s8, %s15
    %p64 = scmp.eq.s32.totalorder %s63, 0
    %s66 = sadd.s32 %s65, 1
    %s67 = scalar_select %p64, %s65, %s66
    %p70 = pneg %p64
    %p71 = scmp.eq.s32.totalorder %s8, 1
    %p72 = por %p70, %p71
    %p73 = scmp.ne.s32.totalorder %s65, %s68
    %p74 = scmp.eq.s32.totalorder %s8, 0
    %p75 = por %p73, %p74
    %p76 = scmp.ne.s32.totalorder %s65, %s68
    %p77 = scmp.eq.s32.totalorder %s13, 1
    %p78 = por %p76, %p77
    %p79 = scmp.ne.s32.totalorder %s68, %s69
    %p80 = scmp.eq.s32.totalorder %s13, 0
    %p81 = por %p79, %p80
    %p82 = scmp.ne.s32.totalorder %s68, %s69
    %p83 = scmp.eq.s32.totalorder %s14, 1
    %p84 = por %p82, %p83
    %p86 = scmp.ne.s32.totalorder %s69, %s85
    %p87 = scmp.eq.s32.totalorder %s14, 0
    %p88 = por %p86, %p87
    %p89 = scmp.le.s32.totalorder 1, %s8
    %p90 = scmp.lt.s32.totalorder %s8, 3
    %p91 = pnand %p89, %p90
    %p92 = pneg %p91
    // Predicated region
    $region9: #{conv_transpose_bn_lrelu.2} parent=5 // pred_check
      _
    $region10: #{conv_transpose_bn_lrelu.2} parent=5 // pred_check_branch
      %94 = sbr.rel (%p91) target = $region12
    $region11: #{conv_transpose_bn_lrelu.2} parent=5 // pred_region
      %s95 = ssub.s32 %s8, 1
      // Predicated region
      $region13: #{conv_transpose_bn_lrelu.2} parent=11 // pred_check
        %p96 = pneg %p55
      $region14: #{conv_transpose_bn_lrelu.2} parent=11 // pred_check_branch
        %98 = sbr.rel (%p96) target = $region16
      $region15: #{conv_transpose_bn_lrelu.2} parent=11 // pred_region
        _
      $region16: #{conv_transpose_bn_lrelu.2} parent=11 // pred_fallthru
        _
    $region12: #{conv_transpose_bn_lrelu.2} parent=5 // pred_fallthru
      _
    %p99 = scmp.lt.s32.totalorder %s8, 2
    // Predicated region
    $region17: #{conv_transpose_bn_lrelu.2} parent=5 // pred_check
      %p100 = pneg %p99
    $region18: #{conv_transpose_bn_lrelu.2} parent=5 // pred_check_branch
      %102 = sbr.rel (%p100) target = $region20
    $region19: #{conv_transpose_bn_lrelu.2} parent=5 // pred_region
      // Predicated region
      $region21: #{conv_transpose_bn_lrelu.2} parent=19 // pred_check
        %p103 = pneg %p28
      $region22: #{conv_transpose_bn_lrelu.2} parent=19 // pred_check_branch
        %105 = sbr.rel (%p103) target = $region24
      $region23: #{conv_transpose_bn_lrelu.2} parent=19 // pred_region
        %s106 = smul.u32 128, %s8
        %p107 = scmp.lt.s32.totalorder %s106, 255
        %s108 = scalar_select %p107, %s106, 255
        %s109 = smul.addr %s108, 8
        %s110 = scalar_lea.vmem %s0, %s109
        %s111 = smul.u32 128, %s8
      $region24: #{conv_transpose_bn_lrelu.2} parent=19 // pred_fallthru
        _
    $region20: #{conv_transpose_bn_lrelu.2} parent=5 // pred_fallthru
      _
    %p112 = scmp.le.s32.totalorder 1, %s8
    %p113 = scmp.lt.s32.totalorder %s8, 3
    %p114 = pnand %p112, %p113
    %p115 = pneg %p114
    // Predicated region
    $region25: #{conv_transpose_bn_lrelu.2} parent=5 // pred_check
      _
    $region26: #{conv_transpose_bn_lrelu.2} parent=5 // pred_check_branch
      %117 = sbr.rel (%p114) target = $region28
    $region27: #{conv_transpose_bn_lrelu.2} parent=5 // pred_region
      %s118 = ssub.s32 %s8, 1
      %s119 = smul.u32 128, %s13
      %p120 = scmp.lt.s32.totalorder %s119, 255
      %s121 = scalar_select %p120, %s119, 255
      %s122 = smul.addr %s121, 8
      %s123 = scalar_lea.vmem %s0, %s122
      %p124 = pneg %p34
      %p125 = pneg %p31
      %p126 = pneg %p55
      %p127 = pneg %p52
      %p128 = pneg %p81
      %p129 = pneg %p78
      %p130 = scmp.lt.s32.totalorder %s13, 1
      %s131 = scalar_select %p130, %s13, 1
      %s132 = smul.addr %s131, 2
      %s133 = scalar_lea.vmem %s2, %s132
      %s134 = smul.u32 128, %s13
      %p135 = scmp.lt.s32.totalorder %s134, 255
      %s136 = scalar_select %p135, %s134, 255
      %s137 = smul.addr %s136, 8
      %s138 = scalar_lea.vmem %s0, %s137
      %s139 = smul.u32 128, %s13
      %p140 = scmp.lt.s32.totalorder %s13, 1
      %s141 = scalar_select %p140, %s13, 1
      %s142 = smul.addr %s141, 2
      %s143 = scalar_lea.vmem %s2, %s142
      %v144 = vld [vmem:[%s138] sm:$0xff]
      %v145 = vld [vmem:[%s138 + $0x8] sm:$0xff]
      %v146 = vld [vmem:[%s138 + $0x10] sm:$0xff]
      %v147 = vld [vmem:[%s138 + $0x18] sm:$0xff]
      %v148 = vld [vmem:[%s138 + $0x20] sm:$0xff]
      %v149 = vld [vmem:[%s138 + $0x28] sm:$0xff]
      %v150 = vld [vmem:[%s138 + $0x30] sm:$0xff]
      %v151 = vld [vmem:[%s138 + $0x38] sm:$0xff]
      %v152 = vld [vmem:[%s138 + $0x40] sm:$0xff]
      %v153 = vld [vmem:[%s138 + $0x48] sm:$0xff]
      %v154 = vld [vmem:[%s138 + $0x50] sm:$0xff]
      %v155 = vld [vmem:[%s138 + $0x58] sm:$0xff]
      %v156 = vld [vmem:[%s138 + $0x60] sm:$0xff]
      %v157 = vld [vmem:[%s138 + $0x68] sm:$0xff]
      %v158 = vld [vmem:[%s138 + $0x70] sm:$0xff]
      %v159 = vld [vmem:[%s138 + $0x78] sm:$0xff]
      %v160 = vld [vmem:[%s138 + $0x80] sm:$0xff]
      %v161 = vld [vmem:[%s138 + $0x88] sm:$0xff]
      %v162 = vld [vmem:[%s138 + $0x90] sm:$0xff]
      %v163 = vld [vmem:[%s138 + $0x98] sm:$0xff]
      %v164 = vld [vmem:[%s138 + $0xa0] sm:$0xff]
      %v165 = vld [vmem:[%s138 + $0xa8] sm:$0xff]
      %v166 = vld [vmem:[%s138 + $0xb0] sm:$0xff]
      %v167 = vld [vmem:[%s138 + $0xb8] sm:$0xff]
      %v168 = vld [vmem:[%s138 + $0xc0] sm:$0xff]
      %v169 = vld [vmem:[%s138 + $0xc8] sm:$0xff]
      %v170 = vld [vmem:[%s138 + $0xd0] sm:$0xff]
      %v171 = vld [vmem:[%s138 + $0xd8] sm:$0xff]
      %v172 = vld [vmem:[%s138 + $0xe0] sm:$0xff]
      %v173 = vld [vmem:[%s138 + $0xe8] sm:$0xff]
      %v174 = vld [vmem:[%s138 + $0xf0] sm:$0xff]
      %v175 = vld [vmem:[%s138 + $0xf8] sm:$0xff]
      %v176 = vld [vmem:[%s138 + $0x100] sm:$0xff]
      %v177 = vld [vmem:[%s138 + $0x108] sm:$0xff]
      %v178 = vld [vmem:[%s138 + $0x110] sm:$0xff]
      %v179 = vld [vmem:[%s138 + $0x118] sm:$0xff]
      %v180 = vld [vmem:[%s138 + $0x120] sm:$0xff]
      %v181 = vld [vmem:[%s138 + $0x128] sm:$0xff]
      %v182 = vld [vmem:[%s138 + $0x130] sm:$0xff]
      %v183 = vld [vmem:[%s138 + $0x138] sm:$0xff]
      %v184 = vld [vmem:[%s138 + $0x140] sm:$0xff]
      %v185 = vld [vmem:[%s138 + $0x148] sm:$0xff]
      %v186 = vld [vmem:[%s138 + $0x150] sm:$0xff]
      %v187 = vld [vmem:[%s138 + $0x158] sm:$0xff]
      %v188 = vld [vmem:[%s138 + $0x160] sm:$0xff]
      %v189 = vld [vmem:[%s138 + $0x168] sm:$0xff]
      %v190 = vld [vmem:[%s138 + $0x170] sm:$0xff]
      %v191 = vld [vmem:[%s138 + $0x178] sm:$0xff]
      %v192 = vld [vmem:[%s138 + $0x180] sm:$0xff]
      %v193 = vld [vmem:[%s138 + $0x188] sm:$0xff]
      %v194 = vld [vmem:[%s138 + $0x190] sm:$0xff]
      %v195 = vld [vmem:[%s138 + $0x198] sm:$0xff]
      %v196 = vld [vmem:[%s138 + $0x1a0] sm:$0xff]
      %v197 = vld [vmem:[%s138 + $0x1a8] sm:$0xff]
      %v198 = vld [vmem:[%s138 + $0x1b0] sm:$0xff]
      %v199 = vld [vmem:[%s138 + $0x1b8] sm:$0xff]
      %v200 = vld [vmem:[%s138 + $0x1c0] sm:$0xff]
      %v201 = vld [vmem:[%s138 + $0x1c8] sm:$0xff]
      %v202 = vld [vmem:[%s138 + $0x1d0] sm:$0xff]
      %v203 = vld [vmem:[%s138 + $0x1d8] sm:$0xff]
      %v204 = vld [vmem:[%s138 + $0x1e0] sm:$0xff]
      %v205 = vld [vmem:[%s138 + $0x1e8] sm:$0xff]
      %v206 = vld [vmem:[%s138 + $0x1f0] sm:$0xff]
      %v207 = vld [vmem:[%s138 + $0x1f8] sm:$0xff]
      %v208 = vld [vmem:[%s138 + $0x200] sm:$0xff]
      %v209 = vld [vmem:[%s138 + $0x208] sm:$0xff]
      %v210 = vld [vmem:[%s138 + $0x210] sm:$0xff]
      %v211 = vld [vmem:[%s138 + $0x218] sm:$0xff]
      %v212 = vld [vmem:[%s138 + $0x220] sm:$0xff]
      %v213 = vld [vmem:[%s138 + $0x228] sm:$0xff]
      %v214 = vld [vmem:[%s138 + $0x230] sm:$0xff]
      %v215 = vld [vmem:[%s138 + $0x238] sm:$0xff]
      %v216 = vld [vmem:[%s138 + $0x240] sm:$0xff]
      %v217 = vld [vmem:[%s138 + $0x248] sm:$0xff]
      %v218 = vld [vmem:[%s138 + $0x250] sm:$0xff]
      %v219 = vld [vmem:[%s138 + $0x258] sm:$0xff]
      %v220 = vld [vmem:[%s138 + $0x260] sm:$0xff]
      %v221 = vld [vmem:[%s138 + $0x268] sm:$0xff]
      %v222 = vld [vmem:[%s138 + $0x270] sm:$0xff]
      %v223 = vld [vmem:[%s138 + $0x278] sm:$0xff]
      %v224 = vld [vmem:[%s138 + $0x280] sm:$0xff]
      %v225 = vld [vmem:[%s138 + $0x288] sm:$0xff]
      %v226 = vld [vmem:[%s138 + $0x290] sm:$0xff]
      %v227 = vld [vmem:[%s138 + $0x298] sm:$0xff]
      %v228 = vld [vmem:[%s138 + $0x2a0] sm:$0xff]
      %v229 = vld [vmem:[%s138 + $0x2a8] sm:$0xff]
      %v230 = vld [vmem:[%s138 + $0x2b0] sm:$0xff]
      %v231 = vld [vmem:[%s138 + $0x2b8] sm:$0xff]
      %v232 = vld [vmem:[%s138 + $0x2c0] sm:$0xff]
      %v233 = vld [vmem:[%s138 + $0x2c8] sm:$0xff]
      %v234 = vld [vmem:[%s138 + $0x2d0] sm:$0xff]
      %v235 = vld [vmem:[%s138 + $0x2d8] sm:$0xff]
      %v236 = vld [vmem:[%s138 + $0x2e0] sm:$0xff]
      %v237 = vld [vmem:[%s138 + $0x2e8] sm:$0xff]
      %v238 = vld [vmem:[%s138 + $0x2f0] sm:$0xff]
      %v239 = vld [vmem:[%s138 + $0x2f8] sm:$0xff]
      %v240 = vld [vmem:[%s138 + $0x300] sm:$0xff]
      %v241 = vld [vmem:[%s138 + $0x308] sm:$0xff]
      %v242 = vld [vmem:[%s138 + $0x310] sm:$0xff]
      %v243 = vld [vmem:[%s138 + $0x318] sm:$0xff]
      %v244 = vld [vmem:[%s138 + $0x320] sm:$0xff]
      %v245 = vld [vmem:[%s138 + $0x328] sm:$0xff]
      %v246 = vld [vmem:[%s138 + $0x330] sm:$0xff]
      %v247 = vld [vmem:[%s138 + $0x338] sm:$0xff]
      %v248 = vld [vmem:[%s138 + $0x340] sm:$0xff]
      %v249 = vld [vmem:[%s138 + $0x348] sm:$0xff]
      %v250 = vld [vmem:[%s138 + $0x350] sm:$0xff]
      %v251 = vld [vmem:[%s138 + $0x358] sm:$0xff]
      %v252 = vld [vmem:[%s138 + $0x360] sm:$0xff]
      %v253 = vld [vmem:[%s138 + $0x368] sm:$0xff]
      %v254 = vld [vmem:[%s138 + $0x370] sm:$0xff]
      %v255 = vld [vmem:[%s138 + $0x378] sm:$0xff]
      %v256 = vld [vmem:[%s138 + $0x380] sm:$0xff]
      %v257 = vld [vmem:[%s138 + $0x388] sm:$0xff]
      %v258 = vld [vmem:[%s138 + $0x390] sm:$0xff]
      %v259 = vld [vmem:[%s138 + $0x398] sm:$0xff]
      %v260 = vld [vmem:[%s138 + $0x3a0] sm:$0xff]
      %v261 = vld [vmem:[%s138 + $0x3a8] sm:$0xff]
      %v262 = vld [vmem:[%s138 + $0x3b0] sm:$0xff]
      %v263 = vld [vmem:[%s138 + $0x3b8] sm:$0xff]
      %v264 = vld [vmem:[%s138 + $0x3c0] sm:$0xff]
      %v265 = vld [vmem:[%s138 + $0x3c8] sm:$0xff]
      %v266 = vld [vmem:[%s138 + $0x3d0] sm:$0xff]
      %v267 = vld [vmem:[%s138 + $0x3d8] sm:$0xff]
      %v268 = vld [vmem:[%s138 + $0x3e0] sm:$0xff]
      %v269 = vld [vmem:[%s138 + $0x3e8] sm:$0xff]
      %v270 = vld [vmem:[%s138 + $0x3f0] sm:$0xff]
      %v271 = vld [vmem:[%s138 + $0x3f8] sm:$0xff]
      %v272 = vld [vmem:[%s1] sm:$0xff]
      %v273 = vld [vmem:[%s1 + $0x8] sm:$0xff]
      %v274 = vld [vmem:[%s1 + $0x10] sm:$0xff]
      %v275 = vld [vmem:[%s1 + $0x18] sm:$0xff]
      %v276 = vld [vmem:[%s1 + $0x20] sm:$0xff]
      %v277 = vld [vmem:[%s1 + $0x28] sm:$0xff]
      %v278 = vld [vmem:[%s1 + $0x30] sm:$0xff]
      %v279 = vld [vmem:[%s1 + $0x38] sm:$0xff]
      %vm280 = vcmask 523264
      %v282 = vsel %vm280, %v144, 0
      %v285 = vsel %vm280, %v145, 0
      %v288 = vsel %vm280, %v146, 0
      %v291 = vsel %vm280, %v147, 0
      %v294 = vsel %vm280, %v148, 0
      %v297 = vsel %vm280, %v149, 0
      %v300 = vsel %vm280, %v150, 0
      %v303 = vsel %vm280, %v151, 0
      %v306 = vsel %vm280, %v152, 0
      %v309 = vsel %vm280, %v153, 0
      %v312 = vsel %vm280, %v154, 0
      %v315 = vsel %vm280, %v155, 0
      %v318 = vsel %vm280, %v156, 0
      %v321 = vsel %vm280, %v157, 0
      %v324 = vsel %vm280, %v158, 0
      %v327 = vsel %vm280, %v159, 0
      %v330 = vsel %vm280, %v160, 0
      %v333 = vsel %vm280, %v161, 0
      %v336 = vsel %vm280, %v162, 0
      %v339 = vsel %vm280, %v163, 0
      %v342 = vsel %vm280, %v164, 0
      %v345 = vsel %vm280, %v165, 0
      %v348 = vsel %vm280, %v166, 0
      %v351 = vsel %vm280, %v167, 0
      %v354 = vsel %vm280, %v168, 0
      %v357 = vsel %vm280, %v169, 0
      %v360 = vsel %vm280, %v170, 0
      %v363 = vsel %vm280, %v171, 0
      %v366 = vsel %vm280, %v172, 0
      %v369 = vsel %vm280, %v173, 0
      %v372 = vsel %vm280, %v174, 0
      %v375 = vsel %vm280, %v175, 0
      %v378 = vsel %vm280, %v176, 0
      %v381 = vsel %vm280, %v177, 0
      %v384 = vsel %vm280, %v178, 0
      %v387 = vsel %vm280, %v179, 0
      %v390 = vsel %vm280, %v180, 0
      %v393 = vsel %vm280, %v181, 0
      %v396 = vsel %vm280, %v182, 0
      %v399 = vsel %vm280, %v183, 0
      %v402 = vsel %vm280, %v184, 0
      %v405 = vsel %vm280, %v185, 0
      %v408 = vsel %vm280, %v186, 0
      %v411 = vsel %vm280, %v187, 0
      %v414 = vsel %vm280, %v188, 0
      %v417 = vsel %vm280, %v189, 0
      %v420 = vsel %vm280, %v190, 0
      %v423 = vsel %vm280, %v191, 0
      %v426 = vsel %vm280, %v192, 0
      %v429 = vsel %vm280, %v193, 0
      %v432 = vsel %vm280, %v194, 0
      %v435 = vsel %vm280, %v195, 0
      %v438 = vsel %vm280, %v196, 0
      %v441 = vsel %vm280, %v197, 0
      %v444 = vsel %vm280, %v198, 0
      %v447 = vsel %vm280, %v199, 0
      %v450 = vsel %vm280, %v200, 0
      %v453 = vsel %vm280, %v201, 0
      %v456 = vsel %vm280, %v202, 0
      %v459 = vsel %vm280, %v203, 0
      %v462 = vsel %vm280, %v204, 0
      %v465 = vsel %vm280, %v205, 0
      %v468 = vsel %vm280, %v206, 0
      %v471 = vsel %vm280, %v207, 0
      %v474 = vsel %vm280, %v208, 0
      %v477 = vsel %vm280, %v209, 0
      %v480 = vsel %vm280, %v210, 0
      %v483 = vsel %vm280, %v211, 0
      %v486 = vsel %vm280, %v212, 0
      %v489 = vsel %vm280, %v213, 0
      %v492 = vsel %vm280, %v214, 0
      %v495 = vsel %vm280, %v215, 0
      %v498 = vsel %vm280, %v216, 0
      %v501 = vsel %vm280, %v217, 0
      %v504 = vsel %vm280, %v218, 0
      %v507 = vsel %vm280, %v219, 0
      %v510 = vsel %vm280, %v220, 0
      %v513 = vsel %vm280, %v221, 0
      %v516 = vsel %vm280, %v222, 0
      %v519 = vsel %vm280, %v223, 0
      %v522 = vsel %vm280, %v224, 0
      %v525 = vsel %vm280, %v225, 0
      %v528 = vsel %vm280, %v226, 0
      %v531 = vsel %vm280, %v227, 0
      %v534 = vsel %vm280, %v228, 0
      %v537 = vsel %vm280, %v229, 0
      %v540 = vsel %vm280, %v230, 0
      %v543 = vsel %vm280, %v231, 0
      %v546 = vsel %vm280, %v232, 0
      %v549 = vsel %vm280, %v233, 0
      %v552 = vsel %vm280, %v234, 0
      %v555 = vsel %vm280, %v235, 0
      %v558 = vsel %vm280, %v236, 0
      %v561 = vsel %vm280, %v237, 0
      %v564 = vsel %vm280, %v238, 0
      %v567 = vsel %vm280, %v239, 0
      %v570 = vsel %vm280, %v240, 0
      %v573 = vsel %vm280, %v241, 0
      %v576 = vsel %vm280, %v242, 0
      %v579 = vsel %vm280, %v243, 0
      %v582 = vsel %vm280, %v244, 0
      %v585 = vsel %vm280, %v245, 0
      %v588 = vsel %vm280, %v246, 0
      %v591 = vsel %vm280, %v247, 0
      %v594 = vsel %vm280, %v248, 0
      %v597 = vsel %vm280, %v249, 0
      %v600 = vsel %vm280, %v250, 0
      %v603 = vsel %vm280, %v251, 0
      %v606 = vsel %vm280, %v252, 0
      %v609 = vsel %vm280, %v253, 0
      %v612 = vsel %vm280, %v254, 0
      %v615 = vsel %vm280, %v255, 0
      %v618 = vsel %vm280, %v256, 0
      %v621 = vsel %vm280, %v257, 0
      %v624 = vsel %vm280, %v258, 0
      %v627 = vsel %vm280, %v259, 0
      %v630 = vsel %vm280, %v260, 0
      %v633 = vsel %vm280, %v261, 0
      %v636 = vsel %vm280, %v262, 0
      %v639 = vsel %vm280, %v263, 0
      %v642 = vsel %vm280, %v264, 0
      %v645 = vsel %vm280, %v265, 0
      %v648 = vsel %vm280, %v266, 0
      %v651 = vsel %vm280, %v267, 0
      %v654 = vsel %vm280, %v268, 0
      %v657 = vsel %vm280, %v269, 0
      %v660 = vsel %vm280, %v270, 0
      %v663 = vsel %vm280, %v271, 0
      %665 = vmatprep.subr.mxu0 0.0
      %666 = vmatpush1.msra.mxu0 %v272
      %667 = vmatprep.subr.mxu0 0.0
      %668 = vmatpush1.msra.mxu0 %v273
      %669 = vmatprep.subr.mxu0 0.0
      %670 = vmatpush1.msra.mxu0 %v274
      %671 = vmatprep.subr.mxu0 0.0
      %672 = vmatpush1.msra.mxu0 %v275
      %673 = vmatprep.subr.mxu0 0.0
      %674 = vmatpush1.msra.mxu0 %v276
      %675 = vmatprep.subr.mxu0 0.0
      %676 = vmatpush1.msra.mxu0 %v277
      %677 = vmatprep.subr.mxu0 0.0
      %678 = vmatpush1.msra.mxu0 %v278
      %679 = vmatprep.subr.mxu0 0.0
      %680 = vmatpush1.msra.mxu0 %v279
      %681 = vmatprep.subr.mxu0 0.0
      %682 = vmatpush1.msra.mxu0 0.0
      %683 = vmatprep.subr.mxu0 0.0
      %684 = vmatpush1.msra.mxu0 0.0
      %685 = vmatprep.subr.mxu0 0.0
      %686 = vmatpush1.msra.mxu0 0.0
      %687 = vmatprep.subr.mxu0 0.0
      %688 = vmatpush1.msra.mxu0 0.0
      %689 = vmatprep.subr.mxu0 0.0
      %690 = vmatpush1.msra.mxu0 0.0
      %691 = vmatprep.subr.mxu0 0.0
      %692 = vmatpush1.msra.mxu0 0.0
      %693 = vmatprep.subr.mxu0 0.0
      %694 = vmatpush1.msra.mxu0 0.0
      %695 = vmatprep.subr.mxu0 0.0
      %696 = vmatpush1.msra.mxu0 0.0
      %697 = vmatprep.subr.mxu0 0.0
      %698 = vmatpush1.msra.mxu0 0.0
      %699 = vmatprep.subr.mxu0 0.0
      %700 = vmatpush1.msra.mxu0 0.0
      %701 = vmatprep.subr.mxu0 0.0
      %702 = vmatpush1.msra.mxu0 0.0
      %703 = vmatprep.subr.mxu0 0.0
      %704 = vmatpush1.msra.mxu0 0.0
      %705 = vmatprep.subr.mxu0 0.0
      %706 = vmatpush1.msra.mxu0 0.0
      %707 = vmatprep.subr.mxu0 0.0
      %708 = vmatpush1.msra.mxu0 0.0
      %709 = vmatprep.subr.mxu0 0.0
      %710 = vmatpush1.msra.mxu0 0.0
      %711 = vmatprep.subr.mxu0 0.0
      %712 = vmatpush1.msra.mxu0 0.0
      %713 = vmatprep.subr.mxu0 0.0
      %714 = vmatpush1.msra.mxu0 0.0
      %715 = vmatprep.subr.mxu0 0.0
      %716 = vmatpush1.msra.mxu0 0.0
      %717 = vmatprep.subr.mxu0 0.0
      %718 = vmatpush1.msra.mxu0 0.0
      %719 = vmatprep.subr.mxu0 0.0
      %720 = vmatpush1.msra.mxu0 0.0
      %721 = vmatprep.subr.mxu0 0.0
      %722 = vmatpush1.msra.mxu0 0.0
      %723 = vmatprep.subr.mxu0 0.0
      %724 = vmatpush1.msra.mxu0 0.0
      %725 = vmatprep.subr.mxu0 0.0
      %726 = vmatpush1.msra.mxu0 0.0
      %727 = vmatprep.subr.mxu0 0.0
      %728 = vmatpush1.msra.mxu0 0.0
      %729 = vmatprep.mubr.f32.mxu0 0.0
      %730 = vmatmul.mubr.f32.gmra.mrb[0].mxu0 %v282
      %v731 = vpop.f32.mrb[0].mxu0
      %v732 = vadd.f32 0.0, %v731
      %v733 = vpop.f32.mrb[0].mxu0
      %734 = vmatprep.mubr.f32.mxu0 0.0
      %735 = vmatmul.mubr.f32.gmra.mrb[0].mxu0 %v285
      %v736 = vpop.f32.mrb[0].mxu0
      %v737 = vadd.f32 0.0, %v736
      %v738 = vpop.f32.mrb[0].mxu0
      %739 = vmatprep.mubr.f32.mxu0 0.0
      %740 = vmatmul.mubr.f32.gmra.mrb[0].mxu0 %v288
      %v741 = vpop.f32.mrb[0].mxu0
      %v742 = vadd.f32 0.0, %v741
      %v743 = vpop.f32.mrb[0].mxu0
      %744 = vmatprep.mubr.f32.mxu0 0.0
      %745 = vmatmul.mubr.f32.gmra.mrb[0].mxu0 %v291
      %v746 = vpop.f32.mrb[0].mxu0
      %v747 = vadd.f32 0.0, %v746
      %v748 = vpop.f32.mrb[0].mxu0
      %749 = vmatprep.mubr.f32.mxu0 0.0
      %750 = vmatmul.mubr.f32.gmra.mrb[0].mxu0 %v294
      %v751 = vpop.f32.mrb[0].mxu0
      %v752 = vadd.f32 0.0, %v751
      %v753 = vpop.f32.mrb[0].mxu0
      %754 = vmatprep.mubr.f32.mxu0 0.0
      %755 = vmatmul.mubr.f32.gmra.mrb[0].mxu0 %v297
      %v756 = vpop.f32.mrb[0].mxu0
      %v757 = vadd.f32 0.0, %v756
      %v758 = vpop.f32.mrb[0].mxu0
      %759 = vmatprep.mubr.f32.mxu0 0.0
      %760 = vmatmul.mubr.f32.gmra.mrb[0].mxu0 %v300
      %v761 = vpop.f32.mrb[0].mxu0
      %v762 = vadd.f32 0.0, %v761
      %v763 = vpop.f32.mrb[0].mxu0
      %764 = vmatprep.mubr.f32.mxu0 0.0
      %765 = vmatmul.mubr.f32.gmra.mrb[0].mxu0 %v303
      %v766 = vpop.f32.mrb[0].mxu0
      %v767 = vadd.f32 0.0, %v766
      %v768 = vpop.f32.mrb[0].mxu0
      %769 = vmatprep.mubr.f32.mxu0 0.0
      %770 = vmatmul.mubr.f32.gmra.mrb[0].mxu0 %v306
      %v771 = vpop.f32.mrb[0].mxu0
      %v772 = vadd.f32 0.0, %v771
      %v773 = vpop.f32.mrb[0].mxu0
      %774 = vmatprep.mubr.f32.mxu0 0.0
      %775 = vmatmul.mubr.f32.gmra.mrb[0].mxu0 %v309
      %v776 = vpop.f32.mrb[0].mxu0
      %v777 = vadd.f32 0.0, %v776
      %v778 = vpop.f32.mrb[0].mxu0
      %779 = vmatprep.mubr.f32.mxu0 0.0
      %780 = vmatmul.mubr.f32.gmra.mrb[0].mxu0 %v312
      %v781 = vpop.f32.mrb[0].mxu0
      %v782 = vadd.f32 0.0, %v781
      %v783 = vpop.f32.mrb[0].mxu0
      %784 = vmatprep.mubr.f32.mxu0 0.0
      %785 = vmatmul.mubr.f32.gmra.mrb[0].mxu0 %v315
      %v786 = vpop.f32.mrb[0].mxu0
      %v787 = vadd.f32 0.0, %v786
      %v788 = vpop.f32.mrb[0].mxu0
      %789 = vmatprep.mubr.f32.mxu0 0.0
      %790 = vmatmul.mubr.f32.gmra.mrb[0].mxu0 %v318
      %v791 = vpop.f32.mrb[0].mxu0
      %v792 = vadd.f32 0.0, %v791
      %v793 = vpop.f32.mrb[0].mxu0
      %794 = vmatprep.mubr.f32.mxu0 0.0
      %795 = vmatmul.mubr.f32.gmra.mrb[0].mxu0 %v321
      %v796 = vpop.f32.mrb[0].mxu0
      %v797 = vadd.f32 0.0, %v796
      %v798 = vpop.f32.mrb[0].mxu0
      %799 = vmatprep.mubr.f32.mxu0 0.0
      %800 = vmatmul.mubr.f32.gmra.mrb[0].mxu0 %v324
      %v801 = vpop.f32.mrb[0].mxu0
      %v802 = vadd.f32 0.0, %v801
      %v803 = vpop.f32.mrb[0].mxu0
      %804 = vmatprep.mubr.f32.mxu0 0.0
      %805 = vmatmul.mubr.f32.gmra.mrb[0].mxu0 %v327
      %v806 = vpop.f32.mrb[0].mxu0
      %v807 = vadd.f32 0.0, %v806
      %v808 = vpop.f32.mrb[0].mxu0
      %809 = vmatprep.mubr.f32.mxu0 0.0
      %810 = vmatmul.mubr.f32.gmra.mrb[0].mxu0 %v330
      %v811 = vpop.f32.mrb[0].mxu0
      %v812 = vadd.f32 0.0, %v811
      %v813 = vpop.f32.mrb[0].mxu0
      %814 = vmatprep.mubr.f32.mxu0 0.0
      %815 = vmatmul.mubr.f32.gmra.mrb[0].mxu0 %v333
      %v816 = vpop.f32.mrb[0].mxu0
      %v817 = vadd.f32 0.0, %v816
      %v818 = vpop.f32.mrb[0].mxu0
      %819 = vmatprep.mubr.f32.mxu0 0.0
      %820 = vmatmul.mubr.f32.gmra.mrb[0].mxu0 %v336
      %v821 = vpop.f32.mrb[0].mxu0
      %v822 = vadd.f32 0.0, %v821
      %v823 = vpop.f32.mrb[0].mxu0
      %824 = vmatprep.mubr.f32.mxu0 0.0
      %825 = vmatmul.mubr.f32.gmra.mrb[0].mxu0 %v339
      %v826 = vpop.f32.mrb[0].mxu0
      %v827 = vadd.f32 0.0, %v826
      %v828 = vpop.f32.mrb[0].mxu0
      %829 = vmatprep.mubr.f32.mxu0 0.0
      %830 = vmatmul.mubr.f32.gmra.mrb[0].mxu0 %v342
      %v831 = vpop.f32.mrb[0].mxu0
      %v832 = vadd.f32 0.0, %v831
      %v833 = vpop.f32.mrb[0].mxu0
      %834 = vmatprep.mubr.f32.mxu0 0.0
      %835 = vmatmul.mubr.f32.gmra.mrb[0].mxu0 %v345
      %v836 = vpop.f32.mrb[0].mxu0
      %v837 = vadd.f32 0.0, %v836
      %v838 = vpop.f32.mrb[0].mxu0
      %839 = vmatprep.mubr.f32.mxu0 0.0
      %840 = vmatmul.mubr.f32.gmra.mrb[0].mxu0 %v348
      %v841 = vpop.f32.mrb[0].mxu0
      %v842 = vadd.f32 0.0, %v841
      %v843 = vpop.f32.mrb[0].mxu0
      %844 = vmatprep.mubr.f32.mxu0 0.0
      %845 = vmatmul.mubr.f32.gmra.mrb[0].mxu0 %v351
      %v846 = vpop.f32.mrb[0].mxu0
      %v847 = vadd.f32 0.0, %v846
      %v848 = vpop.f32.mrb[0].mxu0
      %849 = vmatprep.mubr.f32.mxu0 0.0
      %850 = vmatmul.mubr.f32.gmra.mrb[0].mxu0 %v354
      %v851 = vpop.f32.mrb[0].mxu0
      %v852 = vadd.f32 0.0, %v851
      %v853 = vpop.f32.mrb[0].mxu0
      %854 = vmatprep.mubr.f32.mxu0 0.0
      %855 = vmatmul.mubr.f32.gmra.mrb[0].mxu0 %v357
      %v856 = vpop.f32.mrb[0].mxu0
      %v857 = vadd.f32 0.0, %v856
      %v858 = vpop.f32.mrb[0].mxu0
      %859 = vmatprep.mubr.f32.mxu0 0.0
      %860 = vmatmul.mubr.f32.gmra.mrb[0].mxu0 %v360
      %v861 = vpop.f32.mrb[0].mxu0
      %v862 = vadd.f32 0.0, %v861
      %v863 = vpop.f32.mrb[0].mxu0
      %864 = vmatprep.mubr.f32.mxu0 0.0
      %865 = vmatmul.mubr.f32.gmra.mrb[0].mxu0 %v363
      %v866 = vpop.f32.mrb[0].mxu0
      %v867 = vadd.f32 0.0, %v866
      %v868 = vpop.f32.mrb[0].mxu0
      %869 = vmatprep.mubr.f32.mxu0 0.0
      %870 = vmatmul.mubr.f32.gmra.mrb[0].mxu0 %v366
      %v871 = vpop.f32.mrb[0].mxu0
      %v872 = vadd.f32 0.0, %v871
      %v873 = vpop.f32.mrb[0].mxu0
      %874 = vmatprep.mubr.f32.mxu0 0.0
      %875 = vmatmul.mubr.f32.gmra.mrb[0].mxu0 %v369
      %v876 = vpop.f32.mrb[0].mxu0
      %v877 = vadd.f32 0.0, %v876
      %v878 = vpop.f32.mrb[0].mxu0
      %879 = vmatprep.mubr.f32.mxu0 0.0
      %880 = vmatmul.mubr.f32.gmra.mrb[0].mxu0 %v372
      %v881 = vpop.f32.mrb[0].mxu0
      %v882 = vadd.f32 0.0, %v881
      %v883 = vpop.f32.mrb[0].mxu0
      %884 = vmatprep.mubr.f32.mxu0 0.0
      %885 = vmatmul.mubr.f32.gmra.mrb[0].mxu0 %v375
      %v886 = vpop.f32.mrb[0].mxu0
      %v887 = vadd.f32 0.0, %v886
      %v888 = vpop.f32.mrb[0].mxu0
      %889 = vmatprep.mubr.f32.mxu0 0.0
      %890 = vmatmul.mubr.f32.gmra.mrb[0].mxu0 %v378
      %v891 = vpop.f32.mrb[0].mxu0
      %v892 = vadd.f32 0.0, %v891
      %v893 = vpop.f32.mrb[0].mxu0
      %894 = vmatprep.mubr.f32.mxu0 0.0
      %895 = vmatmul.mubr.f32.gmra.mrb[0].mxu0 %v381
      %v896 = vpop.f32.mrb[0].mxu0
      %v897 = vadd.f32 0.0, %v896
      %v898 = vpop.f32.mrb[0].mxu0
      %899 = vmatprep.mubr.f32.mxu0 0.0
      %900 = vmatmul.mubr.f32.gmra.mrb[0].mxu0 %v384
      %v901 = vpop.f32.mrb[0].mxu0
      %v902 = vadd.f32 0.0, %v901
      %v903 = vpop.f32.mrb[0].mxu0
      %904 = vmatprep.mubr.f32.mxu0 0.0
      %905 = vmatmul.mubr.f32.gmra.mrb[0].mxu0 %v387
      %v906 = vpop.f32.mrb[0].mxu0
      %v907 = vadd.f32 0.0, %v906
      %v908 = vpop.f32.mrb[0].mxu0
      %909 = vmatprep.mubr.f32.mxu0 0.0
      %910 = vmatmul.mubr.f32.gmra.mrb[0].mxu0 %v390
      %v911 = vpop.f32.mrb[0].mxu0
      %v912 = vadd.f32 0.0, %v911
      %v913 = vpop.f32.mrb[0].mxu0
      %914 = vmatprep.mubr.f32.mxu0 0.0
      %915 = vmatmul.mubr.f32.gmra.mrb[0].mxu0 %v393
      %v916 = vpop.f32.mrb[0].mxu0
      %v917 = vadd.f32 0.0, %v916
      %v918 = vpop.f32.mrb[0].mxu0
      %919 = vmatprep.mubr.f32.mxu0 0.0
      %920 = vmatmul.mubr.f32.gmra.mrb[0].mxu0 %v396
      %v921 = vpop.f32.mrb[0].mxu0
      %v922 = vadd.f32 0.0, %v921
      %v923 = vpop.f32.mrb[0].mxu0
      %924 = vmatprep.mubr.f32.mxu0 0.0
      %925 = vmatmul.mubr.f32.gmra.mrb[0].mxu0 %v399
      %v926 = vpop.f32.mrb[0].mxu0
      %v927 = vadd.f32 0.0, %v926
      %v928 = vpop.f32.mrb[0].mxu0
      %929 = vmatprep.mubr.f32.mxu0 0.0
      %930 = vmatmul.mubr.f32.gmra.mrb[0].mxu0 %v402
      %v931 = vpop.f32.mrb[0].mxu0
      %v932 = vadd.f32 0.0, %v931
      %v933 = vpop.f32.mrb[0].mxu0
      %934 = vmatprep.mubr.f32.mxu0 0.0
      %935 = vmatmul.mubr.f32.gmra.mrb[0].mxu0 %v405
      %v936 = vpop.f32.mrb[0].mxu0
      %v937 = vadd.f32 0.0, %v936
      %v938 = vpop.f32.mrb[0].mxu0
      %939 = vmatprep.mubr.f32.mxu0 0.0
      %940 = vmatmul.mubr.f32.gmra.mrb[0].mxu0 %v408
      %v941 = vpop.f32.mrb[0].mxu0
      %v942 = vadd.f32 0.0, %v941
      %v943 = vpop.f32.mrb[0].mxu0
      %944 = vmatprep.mubr.f32.mxu0 0.0
      %945 = vmatmul.mubr.f32.gmra.mrb[0].mxu0 %v411
      %v946 = vpop.f32.mrb[0].mxu0
      %v947 = vadd.f32 0.0, %v946
      %v948 = vpop.f32.mrb[0].mxu0
      %949 = vmatprep.mubr.f32.mxu0 0.0
      %950 = vmatmul.mubr.f32.gmra.mrb[0].mxu0 %v414
      %v951 = vpop.f32.mrb[0].mxu0
      %v952 = vadd.f32 0.0, %v951
      %v953 = vpop.f32.mrb[0].mxu0
      %954 = vmatprep.mubr.f32.mxu0 0.0
      %955 = vmatmul.mubr.f32.gmra.mrb[0].mxu0 %v417
      %v956 = vpop.f32.mrb[0].mxu0
      %v957 = vadd.f32 0.0, %v956
      %v958 = vpop.f32.mrb[0].mxu0
      %959 = vmatprep.mubr.f32.mxu0 0.0
      %960 = vmatmul.mubr.f32.gmra.mrb[0].mxu0 %v420
      %v961 = vpop.f32.mrb[0].mxu0
      %v962 = vadd.f32 0.0, %v961
      %v963 = vpop.f32.mrb[0].mxu0
      %964 = vmatprep.mubr.f32.mxu0 0.0
      %965 = vmatmul.mubr.f32.gmra.mrb[0].mxu0 %v423
      %v966 = vpop.f32.mrb[0].mxu0
      %v967 = vadd.f32 0.0, %v966
      %v968 = vpop.f32.mrb[0].mxu0
      %969 = vmatprep.mubr.f32.mxu0 0.0
      %970 = vmatmul.mubr.f32.gmra.mrb[0].mxu0 %v426
      %v971 = vpop.f32.mrb[0].mxu0
      %v972 = vadd.f32 0.0, %v971
      %v973 = vpop.f32.mrb[0].mxu0
      %974 = vmatprep.mubr.f32.mxu0 0.0
      %975 = vmatmul.mubr.f32.gmra.mrb[0].mxu0 %v429
      %v976 = vpop.f32.mrb[0].mxu0
      %v977 = vadd.f32 0.0, %v976
      %v978 = vpop.f32.mrb[0].mxu0
      %979 = vmatprep.mubr.f32.mxu0 0.0
      %980 = vmatmul.mubr.f32.gmra.mrb[0].mxu0 %v432
      %v981 = vpop.f32.mrb[0].mxu0
      %v982 = vadd.f32 0.0, %v981
      %v983 = vpop.f32.mrb[0].mxu0
      %984 = vmatprep.mubr.f32.mxu0 0.0
      %985 = vmatmul.mubr.f32.gmra.mrb[0].mxu0 %v435
      %v986 = vpop.f32.mrb[0].mxu0
      %v987 = vadd.f32 0.0, %v986
      %v988 = vpop.f32.mrb[0].mxu0
      %989 = vmatprep.mubr.f32.mxu0 0.0
      %990 = vmatmul.mubr.f32.gmra.mrb[0].mxu0 %v438
      %v991 = vpop.f32.mrb[0].mxu0
      %v992 = vadd.f32 0.0, %v991
      %v993 = vpop.f32.mrb[0].mxu0
      %994 = vmatprep.mubr.f32.mxu0 0.0
      %995 = vmatmul.mubr.f32.gmra.mrb[0].mxu0 %v441
      %v996 = vpop.f32.mrb[0].mxu0
      %v997 = vadd.f32 0.0, %v996
      %v998 = vpop.f32.mrb[0].mxu0
      %999 = vmatprep.mubr.f32.mxu0 0.0
      %1000 = vmatmul.mubr.f32.gmra.mrb[0].mxu0 %v444
      %v1001 = vpop.f32.mrb[0].mxu0
      %v1002 = vadd.f32 0.0, %v1001
      %v1003 = vpop.f32.mrb[0].mxu0
      %1004 = vmatprep.mubr.f32.mxu0 0.0
      %1005 = vmatmul.mubr.f32.gmra.mrb[0].mxu0 %v447
      %v1006 = vpop.f32.mrb[0].mxu0
      %v1007 = vadd.f32 0.0, %v1006
      %v1008 = vpop.f32.mrb[0].mxu0
      %1009 = vmatprep.mubr.f32.mxu0 0.0
      %1010 = vmatmul.mubr.f32.gmra.mrb[0].mxu0 %v450
      %v1011 = vpop.f32.mrb[0].mxu0
      %v1012 = vadd.f32 0.0, %v1011
      %v1013 = vpop.f32.mrb[0].mxu0
      %1014 = vmatprep.mubr.f32.mxu0 0.0
      %1015 = vmatmul.mubr.f32.gmra.mrb[0].mxu0 %v453
      %v1016 = vpop.f32.mrb[0].mxu0
      %v1017 = vadd.f32 0.0, %v1016
      %v1018 = vpop.f32.mrb[0].mxu0
      %1019 = vmatprep.mubr.f32.mxu0 0.0
      %1020 = vmatmul.mubr.f32.gmra.mrb[0].mxu0 %v456
      %v1021 = vpop.f32.mrb[0].mxu0
      %v1022 = vadd.f32 0.0, %v1021
      %v1023 = vpop.f32.mrb[0].mxu0
      %1024 = vmatprep.mubr.f32.mxu0 0.0
      %1025 = vmatmul.mubr.f32.gmra.mrb[0].mxu0 %v459
      %v1026 = vpop.f32.mrb[0].mxu0
      %v1027 = vadd.f32 0.0, %v1026
      %v1028 = vpop.f32.mrb[0].mxu0
      %1029 = vmatprep.mubr.f32.mxu0 0.0
      %1030 = vmatmul.mubr.f32.gmra.mrb[0].mxu0 %v462
      %v1031 = vpop.f32.mrb[0].mxu0
      %v1032 = vadd.f32 0.0, %v1031
      %v1033 = vpop.f32.mrb[0].mxu0
      %1034 = vmatprep.mubr.f32.mxu0 0.0
      %1035 = vmatmul.mubr.f32.gmra.mrb[0].mxu0 %v465
      %v1036 = vpop.f32.mrb[0].mxu0
      %v1037 = vadd.f32 0.0, %v1036
      %v1038 = vpop.f32.mrb[0].mxu0
      %1039 = vmatprep.mubr.f32.mxu0 0.0
      %1040 = vmatmul.mubr.f32.gmra.mrb[0].mxu0 %v468
      %v1041 = vpop.f32.mrb[0].mxu0
      %v1042 = vadd.f32 0.0, %v1041
      %v1043 = vpop.f32.mrb[0].mxu0
      %1044 = vmatprep.mubr.f32.mxu0 0.0
      %1045 = vmatmul.mubr.f32.gmra.mrb[0].mxu0 %v471
      %v1046 = vpop.f32.mrb[0].mxu0
      %v1047 = vadd.f32 0.0, %v1046
      %v1048 = vpop.f32.mrb[0].mxu0
      %1049 = vmatprep.mubr.f32.mxu0 0.0
      %1050 = vmatmul.mubr.f32.gmra.mrb[0].mxu0 %v474
      %v1051 = vpop.f32.mrb[0].mxu0
      %v1052 = vadd.f32 0.0, %v1051
      %v1053 = vpop.f32.mrb[0].mxu0
      %1054 = vmatprep.mubr.f32.mxu0 0.0
      %1055 = vmatmul.mubr.f32.gmra.mrb[0].mxu0 %v477
      %v1056 = vpop.f32.mrb[0].mxu0
      %v1057 = vadd.f32 0.0, %v1056
      %v1058 = vpop.f32.mrb[0].mxu0
      %1059 = vmatprep.mubr.f32.mxu0 0.0
      %1060 = vmatmul.mubr.f32.gmra.mrb[0].mxu0 %v480
      %v1061 = vpop.f32.mrb[0].mxu0
      %v1062 = vadd.f32 0.0, %v1061
      %v1063 = vpop.f32.mrb[0].mxu0
      %1064 = vmatprep.mubr.f32.mxu0 0.0
      %1065 = vmatmul.mubr.f32.gmra.mrb[0].mxu0 %v483
      %v1066 = vpop.f32.mrb[0].mxu0
      %v1067 = vadd.f32 0.0, %v1066
      %v1068 = vpop.f32.mrb[0].mxu0
      %1069 = vmatprep.mubr.f32.mxu0 0.0
      %1070 = vmatmul.mubr.f32.gmra.mrb[0].mxu0 %v486
      %v1071 = vpop.f32.mrb[0].mxu0
      %v1072 = vadd.f32 0.0, %v1071
      %v1073 = vpop.f32.mrb[0].mxu0
      %1074 = vmatprep.mubr.f32.mxu0 0.0
      %1075 = vmatmul.mubr.f32.gmra.mrb[0].mxu0 %v489
      %v1076 = vpop.f32.mrb[0].mxu0
      %v1077 = vadd.f32 0.0, %v1076
      %v1078 = vpop.f32.mrb[0].mxu0
      %1079 = vmatprep.mubr.f32.mxu0 0.0
      %1080 = vmatmul.mubr.f32.gmra.mrb[0].mxu0 %v492
      %v1081 = vpop.f32.mrb[0].mxu0
      %v1082 = vadd.f32 0.0, %v1081
      %v1083 = vpop.f32.mrb[0].mxu0
      %1084 = vmatprep.mubr.f32.mxu0 0.0
      %1085 = vmatmul.mubr.f32.gmra.mrb[0].mxu0 %v495
      %v1086 = vpop.f32.mrb[0].mxu0
      %v1087 = vadd.f32 0.0, %v1086
      %v1088 = vpop.f32.mrb[0].mxu0
      %1089 = vmatprep.mubr.f32.mxu0 0.0
      %1090 = vmatmul.mubr.f32.gmra.mrb[0].mxu0 %v498
      %v1091 = vpop.f32.mrb[0].mxu0
      %v1092 = vadd.f32 0.0, %v1091
      %v1093 = vpop.f32.mrb[0].mxu0
      %1094 = vmatprep.mubr.f32.mxu0 0.0
      %1095 = vmatmul.mubr.f32.gmra.mrb[0].mxu0 %v501
      %v1096 = vpop.f32.mrb[0].mxu0
      %v1097 = vadd.f32 0.0, %v1096
      %v1098 = vpop.f32.mrb[0].mxu0
      %1099 = vmatprep.mubr.f32.mxu0 0.0
      %1100 = vmatmul.mubr.f32.gmra.mrb[0].mxu0 %v504
      %v1101 = vpop.f32.mrb[0].mxu0
      %v1102 = vadd.f32 0.0, %v1101
      %v1103 = vpop.f32.mrb[0].mxu0
      %1104 = vmatprep.mubr.f32.mxu0 0.0
      %1105 = vmatmul.mubr.f32.gmra.mrb[0].mxu0 %v507
      %v1106 = vpop.f32.mrb[0].mxu0
      %v1107 = vadd.f32 0.0, %v1106
      %v1108 = vpop.f32.mrb[0].mxu0
      %1109 = vmatprep.mubr.f32.mxu0 0.0
      %1110 = vmatmul.mubr.f32.gmra.mrb[0].mxu0 %v510
      %v1111 = vpop.f32.mrb[0].mxu0
      %v1112 = vadd.f32 0.0, %v1111
      %v1113 = vpop.f32.mrb[0].mxu0
      %1114 = vmatprep.mubr.f32.mxu0 0.0
      %1115 = vmatmul.mubr.f32.gmra.mrb[0].mxu0 %v513
      %v1116 = vpop.f32.mrb[0].mxu0
      %v1117 = vadd.f32 0.0, %v1116
      %v1118 = vpop.f32.mrb[0].mxu0
      %1119 = vmatprep.mubr.f32.mxu0 0.0
      %1120 = vmatmul.mubr.f32.gmra.mrb[0].mxu0 %v516
      %v1121 = vpop.f32.mrb[0].mxu0
      %v1122 = vadd.f32 0.0, %v1121
      %v1123 = vpop.f32.mrb[0].mxu0
      %1124 = vmatprep.mubr.f32.mxu0 0.0
      %1125 = vmatmul.mubr.f32.gmra.mrb[0].mxu0 %v519
      %v1126 = vpop.f32.mrb[0].mxu0
      %v1127 = vadd.f32 0.0, %v1126
      %v1128 = vpop.f32.mrb[0].mxu0
      %1129 = vmatprep.mubr.f32.mxu0 0.0
      %1130 = vmatmul.mubr.f32.gmra.mrb[0].mxu0 %v522
      %v1131 = vpop.f32.mrb[0].mxu0
      %v1132 = vadd.f32 0.0, %v1131
      %v1133 = vpop.f32.mrb[0].mxu0
      %1134 = vmatprep.mubr.f32.mxu0 0.0
      %1135 = vmatmul.mubr.f32.gmra.mrb[0].mxu0 %v525
      %v1136 = vpop.f32.mrb[0].mxu0
      %v1137 = vadd.f32 0.0, %v1136
      %v1138 = vpop.f32.mrb[0].mxu0
      %1139 = vmatprep.mubr.f32.mxu0 0.0
      %1140 = vmatmul.mubr.f32.gmra.mrb[0].mxu0 %v528
      %v1141 = vpop.f32.mrb[0].mxu0
      %v1142 = vadd.f32 0.0, %v1141
      %v1143 = vpop.f32.mrb[0].mxu0
      %1144 = vmatprep.mubr.f32.mxu0 0.0
      %1145 = vmatmul.mubr.f32.gmra.mrb[0].mxu0 %v531
      %v1146 = vpop.f32.mrb[0].mxu0
      %v1147 = vadd.f32 0.0, %v1146
      %v1148 = vpop.f32.mrb[0].mxu0
      %1149 = vmatprep.mubr.f32.mxu0 0.0
      %1150 = vmatmul.mubr.f32.gmra.mrb[0].mxu0 %v534
      %v1151 = vpop.f32.mrb[0].mxu0
      %v1152 = vadd.f32 0.0, %v1151
      %v1153 = vpop.f32.mrb[0].mxu0
      %1154 = vmatprep.mubr.f32.mxu0 0.0
      %1155 = vmatmul.mubr.f32.gmra.mrb[0].mxu0 %v537
      %v1156 = vpop.f32.mrb[0].mxu0
      %v1157 = vadd.f32 0.0, %v1156
      %v1158 = vpop.f32.mrb[0].mxu0
      %1159 = vmatprep.mubr.f32.mxu0 0.0
      %1160 = vmatmul.mubr.f32.gmra.mrb[0].mxu0 %v540
      %v1161 = vpop.f32.mrb[0].mxu0
      %v1162 = vadd.f32 0.0, %v1161
      %v1163 = vpop.f32.mrb[0].mxu0
      %1164 = vmatprep.mubr.f32.mxu0 0.0
      %1165 = vmatmul.mubr.f32.gmra.mrb[0].mxu0 %v543
      %v1166 = vpop.f32.mrb[0].mxu0
      %v1167 = vadd.f32 0.0, %v1166
      %v1168 = vpop.f32.mrb[0].mxu0
      %1169 = vmatprep.mubr.f32.mxu0 0.0
      %1170 = vmatmul.mubr.f32.gmra.mrb[0].mxu0 %v546
      %v1171 = vpop.f32.mrb[0].mxu0
      %v1172 = vadd.f32 0.0, %v1171
      %v1173 = vpop.f32.mrb[0].mxu0
      %1174 = vmatprep.mubr.f32.mxu0 0.0
      %1175 = vmatmul.mubr.f32.gmra.mrb[0].mxu0 %v549
      %v1176 = vpop.f32.mrb[0].mxu0
      %v1177 = vadd.f32 0.0, %v1176
      %v1178 = vpop.f32.mrb[0].mxu0
      %1179 = vmatprep.mubr.f32.mxu0 0.0
      %1180 = vmatmul.mubr.f32.gmra.mrb[0].mxu0 %v552
      %v1181 = vpop.f32.mrb[0].mxu0
      %v1182 = vadd.f32 0.0, %v1181
      %v1183 = vpop.f32.mrb[0].mxu0
      %1184 = vmatprep.mubr.f32.mxu0 0.0
      %1185 = vmatmul.mubr.f32.gmra.mrb[0].mxu0 %v555
      %v1186 = vpop.f32.mrb[0].mxu0
      %v1187 = vadd.f32 0.0, %v1186
      %v1188 = vpop.f32.mrb[0].mxu0
      %1189 = vmatprep.mubr.f32.mxu0 0.0
      %1190 = vmatmul.mubr.f32.gmra.mrb[0].mxu0 %v558
      %v1191 = vpop.f32.mrb[0].mxu0
      %v1192 = vadd.f32 0.0, %v1191
      %v1193 = vpop.f32.mrb[0].mxu0
      %1194 = vmatprep.mubr.f32.mxu0 0.0
      %1195 = vmatmul.mubr.f32.gmra.mrb[0].mxu0 %v561
      %v1196 = vpop.f32.mrb[0].mxu0
      %v1197 = vadd.f32 0.0, %v1196
      %v1198 = vpop.f32.mrb[0].mxu0
      %1199 = vmatprep.mubr.f32.mxu0 0.0
      %1200 = vmatmul.mubr.f32.gmra.mrb[0].mxu0 %v564
      %v1201 = vpop.f32.mrb[0].mxu0
      %v1202 = vadd.f32 0.0, %v1201
      %v1203 = vpop.f32.mrb[0].mxu0
      %1204 = vmatprep.mubr.f32.mxu0 0.0
      %1205 = vmatmul.mubr.f32.gmra.mrb[0].mxu0 %v567
      %v1206 = vpop.f32.mrb[0].mxu0
      %v1207 = vadd.f32 0.0, %v1206
      %v1208 = vpop.f32.mrb[0].mxu0
      %1209 = vmatprep.mubr.f32.mxu0 0.0
      %1210 = vmatmul.mubr.f32.gmra.mrb[0].mxu0 %v570
      %v1211 = vpop.f32.mrb[0].mxu0
      %v1212 = vadd.f32 0.0, %v1211
      %v1213 = vpop.f32.mrb[0].mxu0
      %1214 = vmatprep.mubr.f32.mxu0 0.0
      %1215 = vmatmul.mubr.f32.gmra.mrb[0].mxu0 %v573
      %v1216 = vpop.f32.mrb[0].mxu0
      %v1217 = vadd.f32 0.0, %v1216
      %v1218 = vpop.f32.mrb[0].mxu0
      %1219 = vmatprep.mubr.f32.mxu0 0.0
      %1220 = vmatmul.mubr.f32.gmra.mrb[0].mxu0 %v576
      %v1221 = vpop.f32.mrb[0].mxu0
      %v1222 = vadd.f32 0.0, %v1221
      %v1223 = vpop.f32.mrb[0].mxu0
      %1224 = vmatprep.mubr.f32.mxu0 0.0
      %1225 = vmatmul.mubr.f32.gmra.mrb[0].mxu0 %v579
      %v1226 = vpop.f32.mrb[0].mxu0
      %v1227 = vadd.f32 0.0, %v1226
      %v1228 = vpop.f32.mrb[0].mxu0
      %1229 = vmatprep.mubr.f32.mxu0 0.0
      %1230 = vmatmul.mubr.f32.gmra.mrb[0].mxu0 %v582
      %v1231 = vpop.f32.mrb[0].mxu0
      %v1232 = vadd.f32 0.0, %v1231
      %v1233 = vpop.f32.mrb[0].mxu0
      %1234 = vmatprep.mubr.f32.mxu0 0.0
      %1235 = vmatmul.mubr.f32.gmra.mrb[0].mxu0 %v585
      %v1236 = vpop.f32.mrb[0].mxu0
      %v1237 = vadd.f32 0.0, %v1236
      %v1238 = vpop.f32.mrb[0].mxu0
      %1239 = vmatprep.mubr.f32.mxu0 0.0
      %1240 = vmatmul.mubr.f32.gmra.mrb[0].mxu0 %v588
      %v1241 = vpop.f32.mrb[0].mxu0
      %v1242 = vadd.f32 0.0, %v1241
      %v1243 = vpop.f32.mrb[0].mxu0
      %1244 = vmatprep.mubr.f32.mxu0 0.0
      %1245 = vmatmul.mubr.f32.gmra.mrb[0].mxu0 %v591
      %v1246 = vpop.f32.mrb[0].mxu0
      %v1247 = vadd.f32 0.0, %v1246
      %v1248 = vpop.f32.mrb[0].mxu0
      %1249 = vmatprep.mubr.f32.mxu0 0.0
      %1250 = vmatmul.mubr.f32.gmra.mrb[0].mxu0 %v594
      %v1251 = vpop.f32.mrb[0].mxu0
      %v1252 = vadd.f32 0.0, %v1251
      %v1253 = vpop.f32.mrb[0].mxu0
      %1254 = vmatprep.mubr.f32.mxu0 0.0
      %1255 = vmatmul.mubr.f32.gmra.mrb[0].mxu0 %v597
      %v1256 = vpop.f32.mrb[0].mxu0
      %v1257 = vadd.f32 0.0, %v1256
      %v1258 = vpop.f32.mrb[0].mxu0
      %1259 = vmatprep.mubr.f32.mxu0 0.0
      %1260 = vmatmul.mubr.f32.gmra.mrb[0].mxu0 %v600
      %v1261 = vpop.f32.mrb[0].mxu0
      %v1262 = vadd.f32 0.0, %v1261
      %v1263 = vpop.f32.mrb[0].mxu0
      %1264 = vmatprep.mubr.f32.mxu0 0.0
      %1265 = vmatmul.mubr.f32.gmra.mrb[0].mxu0 %v603
      %v1266 = vpop.f32.mrb[0].mxu0
      %v1267 = vadd.f32 0.0, %v1266
      %v1268 = vpop.f32.mrb[0].mxu0
      %1269 = vmatprep.mubr.f32.mxu0 0.0
      %1270 = vmatmul.mubr.f32.gmra.mrb[0].mxu0 %v606
      %v1271 = vpop.f32.mrb[0].mxu0
      %v1272 = vadd.f32 0.0, %v1271
      %v1273 = vpop.f32.mrb[0].mxu0
      %1274 = vmatprep.mubr.f32.mxu0 0.0
      %1275 = vmatmul.mubr.f32.gmra.mrb[0].mxu0 %v609
      %v1276 = vpop.f32.mrb[0].mxu0
      %v1277 = vadd.f32 0.0, %v1276
      %v1278 = vpop.f32.mrb[0].mxu0
      %1279 = vmatprep.mubr.f32.mxu0 0.0
      %1280 = vmatmul.mubr.f32.gmra.mrb[0].mxu0 %v612
      %v1281 = vpop.f32.mrb[0].mxu0
      %v1282 = vadd.f32 0.0, %v1281
      %v1283 = vpop.f32.mrb[0].mxu0
      %1284 = vmatprep.mubr.f32.mxu0 0.0
      %1285 = vmatmul.mubr.f32.gmra.mrb[0].mxu0 %v615
      %v1286 = vpop.f32.mrb[0].mxu0
      %v1287 = vadd.f32 0.0, %v1286
      %v1288 = vpop.f32.mrb[0].mxu0
      %1289 = vmatprep.mubr.f32.mxu0 0.0
      %1290 = vmatmul.mubr.f32.gmra.mrb[0].mxu0 %v618
      %v1291 = vpop.f32.mrb[0].mxu0
      %v1292 = vadd.f32 0.0, %v1291
      %v1293 = vpop.f32.mrb[0].mxu0
      %1294 = vmatprep.mubr.f32.mxu0 0.0
      %1295 = vmatmul.mubr.f32.gmra.mrb[0].mxu0 %v621
      %v1296 = vpop.f32.mrb[0].mxu0
      %v1297 = vadd.f32 0.0, %v1296
      %v1298 = vpop.f32.mrb[0].mxu0
      %1299 = vmatprep.mubr.f32.mxu0 0.0
      %1300 = vmatmul.mubr.f32.gmra.mrb[0].mxu0 %v624
      %v1301 = vpop.f32.mrb[0].mxu0
      %v1302 = vadd.f32 0.0, %v1301
      %v1303 = vpop.f32.mrb[0].mxu0
      %1304 = vmatprep.mubr.f32.mxu0 0.0
      %1305 = vmatmul.mubr.f32.gmra.mrb[0].mxu0 %v627
      %v1306 = vpop.f32.mrb[0].mxu0
      %v1307 = vadd.f32 0.0, %v1306
      %v1308 = vpop.f32.mrb[0].mxu0
      %1309 = vmatprep.mubr.f32.mxu0 0.0
      %1310 = vmatmul.mubr.f32.gmra.mrb[0].mxu0 %v630
      %v1311 = vpop.f32.mrb[0].mxu0
      %v1312 = vadd.f32 0.0, %v1311
      %v1313 = vpop.f32.mrb[0].mxu0
      %1314 = vmatprep.mubr.f32.mxu0 0.0
      %1315 = vmatmul.mubr.f32.gmra.mrb[0].mxu0 %v633
      %v1316 = vpop.f32.mrb[0].mxu0
      %v1317 = vadd.f32 0.0, %v1316
      %v1318 = vpop.f32.mrb[0].mxu0
      %1319 = vmatprep.mubr.f32.mxu0 0.0
      %1320 = vmatmul.mubr.f32.gmra.mrb[0].mxu0 %v636
      %v1321 = vpop.f32.mrb[0].mxu0
      %v1322 = vadd.f32 0.0, %v1321
      %v1323 = vpop.f32.mrb[0].mxu0
      %1324 = vmatprep.mubr.f32.mxu0 0.0
      %1325 = vmatmul.mubr.f32.gmra.mrb[0].mxu0 %v639
      %v1326 = vpop.f32.mrb[0].mxu0
      %v1327 = vadd.f32 0.0, %v1326
      %v1328 = vpop.f32.mrb[0].mxu0
      %1329 = vmatprep.mubr.f32.mxu0 0.0
      %1330 = vmatmul.mubr.f32.gmra.mrb[0].mxu0 %v642
      %v1331 = vpop.f32.mrb[0].mxu0
      %v1332 = vadd.f32 0.0, %v1331
      %v1333 = vpop.f32.mrb[0].mxu0
      %1334 = vmatprep.mubr.f32.mxu0 0.0
      %1335 = vmatmul.mubr.f32.gmra.mrb[0].mxu0 %v645
      %v1336 = vpop.f32.mrb[0].mxu0
      %v1337 = vadd.f32 0.0, %v1336
      %v1338 = vpop.f32.mrb[0].mxu0
      %1339 = vmatprep.mubr.f32.mxu0 0.0
      %1340 = vmatmul.mubr.f32.gmra.mrb[0].mxu0 %v648
      %v1341 = vpop.f32.mrb[0].mxu0
      %v1342 = vadd.f32 0.0, %v1341
      %v1343 = vpop.f32.mrb[0].mxu0
      %1344 = vmatprep.mubr.f32.mxu0 0.0
      %1345 = vmatmul.mubr.f32.gmra.mrb[0].mxu0 %v651
      %v1346 = vpop.f32.mrb[0].mxu0
      %v1347 = vadd.f32 0.0, %v1346
      %v1348 = vpop.f32.mrb[0].mxu0
      %1349 = vmatprep.mubr.f32.mxu0 0.0
      %1350 = vmatmul.mubr.f32.gmra.mrb[0].mxu0 %v654
      %v1351 = vpop.f32.mrb[0].mxu0
      %v1352 = vadd.f32 0.0, %v1351
      %v1353 = vpop.f32.mrb[0].mxu0
      %1354 = vmatprep.mubr.f32.mxu0 0.0
      %1355 = vmatmul.mubr.f32.gmra.mrb[0].mxu0 %v657
      %v1356 = vpop.f32.mrb[0].mxu0
      %v1357 = vadd.f32 0.0, %v1356
      %v1358 = vpop.f32.mrb[0].mxu0
      %1359 = vmatprep.mubr.f32.mxu0 0.0
      %1360 = vmatmul.mubr.f32.gmra.mrb[0].mxu0 %v660
      %v1361 = vpop.f32.mrb[0].mxu0
      %v1362 = vadd.f32 0.0, %v1361
      %v1363 = vpop.f32.mrb[0].mxu0
      %1364 = vmatprep.mubr.f32.mxu0 0.0
      %1365 = vmatmul.mubr.f32.gmra.mrb[0].mxu0 %v663
      %v1366 = vpop.f32.mrb[0].mxu0
      %v1367 = vadd.f32 0.0, %v1366
      %v1368 = vpop.f32.mrb[0].mxu0
      %1369 = vdwg.mxu0
      %v1370 = vadd.f32 %v732, %v737
      %v1371 = vadd.f32 %v1370, %v742
      %v1372 = vadd.f32 %v1371, %v747
      %v1373 = vadd.f32 %v1372, %v752
      %v1374 = vadd.f32 %v1373, %v757
      %v1375 = vadd.f32 %v1374, %v762
      %v1376 = vadd.f32 %v1375, %v767
      %v1377 = vadd.f32 %v1376, %v772
      %v1378 = vadd.f32 %v1377, %v777
      %v1379 = vadd.f32 %v1378, %v782
      %v1380 = vadd.f32 %v1379, %v787
      %v1381 = vadd.f32 %v1380, %v792
      %v1382 = vadd.f32 %v1381, %v797
      %v1383 = vadd.f32 %v1382, %v802
      %v1384 = vadd.f32 %v1383, %v807
      %v1385 = vadd.f32 %v1384, %v812
      %v1386 = vadd.f32 %v1385, %v817
      %v1387 = vadd.f32 %v1386, %v822
      %v1388 = vadd.f32 %v1387, %v827
      %v1389 = vadd.f32 %v1388, %v832
      %v1390 = vadd.f32 %v1389, %v837
      %v1391 = vadd.f32 %v1390, %v842
      %v1392 = vadd.f32 %v1391, %v847
      %v1393 = vadd.f32 %v1392, %v852
      %v1394 = vadd.f32 %v1393, %v857
      %v1395 = vadd.f32 %v1394, %v862
      %v1396 = vadd.f32 %v1395, %v867
      %v1397 = vadd.f32 %v1396, %v872
      %v1398 = vadd.f32 %v1397, %v877
      %v1399 = vadd.f32 %v1398, %v882
      %v1400 = vadd.f32 %v1399, %v887
      %v1401 = vadd.f32 %v1400, %v892
      %v1402 = vadd.f32 %v1401, %v897
      %v1403 = vadd.f32 %v1402, %v902
      %v1404 = vadd.f32 %v1403, %v907
      %v1405 = vadd.f32 %v1404, %v912
      %v1406 = vadd.f32 %v1405, %v917
      %v1407 = vadd.f32 %v1406, %v922
      %v1408 = vadd.f32 %v1407, %v927
      %v1409 = vadd.f32 %v1408, %v932
      %v1410 = vadd.f32 %v1409, %v937
      %v1411 = vadd.f32 %v1410, %v942
      %v1412 = vadd.f32 %v1411, %v947
      %v1413 = vadd.f32 %v1412, %v952
      %v1414 = vadd.f32 %v1413, %v957
      %v1415 = vadd.f32 %v1414, %v962
      %v1416 = vadd.f32 %v1415, %v967
      %v1417 = vadd.f32 %v1416, %v972
      %v1418 = vadd.f32 %v1417, %v977
      %v1419 = vadd.f32 %v1418, %v982
      %v1420 = vadd.f32 %v1419, %v987
      %v1421 = vadd.f32 %v1420, %v992
      %v1422 = vadd.f32 %v1421, %v997
      %v1423 = vadd.f32 %v1422, %v1002
      %v1424 = vadd.f32 %v1423, %v1007
      %v1425 = vadd.f32 %v1424, %v1012
      %v1426 = vadd.f32 %v1425, %v1017
      %v1427 = vadd.f32 %v1426, %v1022
      %v1428 = vadd.f32 %v1427, %v1027
      %v1429 = vadd.f32 %v1428, %v1032
      %v1430 = vadd.f32 %v1429, %v1037
      %v1431 = vadd.f32 %v1430, %v1042
      %v1432 = vadd.f32 %v1431, %v1047
      %v1433 = vadd.f32 %v1432, %v1052
      %v1434 = vadd.f32 %v1433, %v1057
      %v1435 = vadd.f32 %v1434, %v1062
      %v1436 = vadd.f32 %v1435, %v1067
      %v1437 = vadd.f32 %v1436, %v1072
      %v1438 = vadd.f32 %v1437, %v1077
      %v1439 = vadd.f32 %v1438, %v1082
      %v1440 = vadd.f32 %v1439, %v1087
      %v1441 = vadd.f32 %v1440, %v1092
      %v1442 = vadd.f32 %v1441, %v1097
      %v1443 = vadd.f32 %v1442, %v1102
      %v1444 = vadd.f32 %v1443, %v1107
      %v1445 = vadd.f32 %v1444, %v1112
      %v1446 = vadd.f32 %v1445, %v1117
      %v1447 = vadd.f32 %v1446, %v1122
      %v1448 = vadd.f32 %v1447, %v1127
      %v1449 = vadd.f32 %v1448, %v1132
      %v1450 = vadd.f32 %v1449, %v1137
      %v1451 = vadd.f32 %v1450, %v1142
      %v1452 = vadd.f32 %v1451, %v1147
      %v1453 = vadd.f32 %v1452, %v1152
      %v1454 = vadd.f32 %v1453, %v1157
      %v1455 = vadd.f32 %v1454, %v1162
      %v1456 = vadd.f32 %v1455, %v1167
      %v1457 = vadd.f32 %v1456, %v1172
      %v1458 = vadd.f32 %v1457, %v1177
      %v1459 = vadd.f32 %v1458, %v1182
      %v1460 = vadd.f32 %v1459, %v1187
      %v1461 = vadd.f32 %v1460, %v1192
      %v1462 = vadd.f32 %v1461, %v1197
      %v1463 = vadd.f32 %v1462, %v1202
      %v1464 = vadd.f32 %v1463, %v1207
      %v1465 = vadd.f32 %v1464, %v1212
      %v1466 = vadd.f32 %v1465, %v1217
      %v1467 = vadd.f32 %v1466, %v1222
      %v1468 = vadd.f32 %v1467, %v1227
      %v1469 = vadd.f32 %v1468, %v1232
      %v1470 = vadd.f32 %v1469, %v1237
      %v1471 = vadd.f32 %v1470, %v1242
      %v1472 = vadd.f32 %v1471, %v1247
      %v1473 = vadd.f32 %v1472, %v1252
      %v1474 = vadd.f32 %v1473, %v1257
      %v1475 = vadd.f32 %v1474, %v1262
      %v1476 = vadd.f32 %v1475, %v1267
      %v1477 = vadd.f32 %v1476, %v1272
      %v1478 = vadd.f32 %v1477, %v1277
      %v1479 = vadd.f32 %v1478, %v1282
      %v1480 = vadd.f32 %v1479, %v1287
      %v1481 = vadd.f32 %v1480, %v1292
      %v1482 = vadd.f32 %v1481, %v1297
      %v1483 = vadd.f32 %v1482, %v1302
      %v1484 = vadd.f32 %v1483, %v1307
      %v1485 = vadd.f32 %v1484, %v1312
      %v1486 = vadd.f32 %v1485, %v1317
      %v1487 = vadd.f32 %v1486, %v1322
      %v1488 = vadd.f32 %v1487, %v1327
      %v1489 = vadd.f32 %v1488, %v1332
      %v1490 = vadd.f32 %v1489, %v1337
      %v1491 = vadd.f32 %v1490, %v1342
      %v1492 = vadd.f32 %v1491, %v1347
      %v1493 = vadd.f32 %v1492, %v1352
      %v1494 = vadd.f32 %v1493, %v1357
      %v1495 = vadd.f32 %v1494, %v1362
      %v1496 = vadd.f32 %v1495, %v1367
      %v1497 = vrot.slane %v1496, 4
      %v1498 = vadd.f32 %v1496, %v1497
      %v1499 = vrot.slane %v1498, 2
      %v1500 = vadd.f32 %v1498, %v1499
      %v1501 = vrot.slane %v1500, 1
      %v1502 = vadd.f32 %v1500, %v1501
      %1503 = vst [vmem:[%s143] sm:$0x1] %v1502
      %v1504 = vmul.f32 %v732, %v732
      %v1505 = vmul.f32 %v737, %v737
      %v1506 = vmul.f32 %v742, %v742
      %v1507 = vmul.f32 %v747, %v747
      %v1508 = vmul.f32 %v752, %v752
      %v1509 = vmul.f32 %v757, %v757
      %v1510 = vmul.f32 %v762, %v762
      %v1511 = vmul.f32 %v767, %v767
      %v1512 = vmul.f32 %v772, %v772
      %v1513 = vmul.f32 %v777, %v777
      %v1514 = vmul.f32 %v782, %v782
      %v1515 = vmul.f32 %v787, %v787
      %v1516 = vmul.f32 %v792, %v792
      %v1517 = vmul.f32 %v797, %v797
      %v1518 = vmul.f32 %v802, %v802
      %v1519 = vmul.f32 %v807, %v807
      %v1520 = vmul.f32 %v812, %v812
      %v1521 = vmul.f32 %v817, %v817
      %v1522 = vmul.f32 %v822, %v822
      %v1523 = vmul.f32 %v827, %v827
      %v1524 = vmul.f32 %v832, %v832
      %v1525 = vmul.f32 %v837, %v837
      %v1526 = vmul.f32 %v842, %v842
      %v1527 = vmul.f32 %v847, %v847
      %v1528 = vmul.f32 %v852, %v852
      %v1529 = vmul.f32 %v857, %v857
      %v1530 = vmul.f32 %v862, %v862
      %v1531 = vmul.f32 %v867, %v867
      %v1532 = vmul.f32 %v872, %v872
      %v1533 = vmul.f32 %v877, %v877
      %v1534 = vmul.f32 %v882, %v882
      %v1535 = vmul.f32 %v887, %v887
      %v1536 = vmul.f32 %v892, %v892
      %v1537 = vmul.f32 %v897, %v897
      %v1538 = vmul.f32 %v902, %v902
      %v1539 = vmul.f32 %v907, %v907
      %v1540 = vmul.f32 %v912, %v912
      %v1541 = vmul.f32 %v917, %v917
      %v1542 = vmul.f32 %v922, %v922
      %v1543 = vmul.f32 %v927, %v927
      %v1544 = vmul.f32 %v932, %v932
      %v1545 = vmul.f32 %v937, %v937
      %v1546 = vmul.f32 %v942, %v942
      %v1547 = vmul.f32 %v947, %v947
      %v1548 = vmul.f32 %v952, %v952
      %v1549 = vmul.f32 %v957, %v957
      %v1550 = vmul.f32 %v962, %v962
      %v1551 = vmul.f32 %v967, %v967
      %v1552 = vmul.f32 %v972, %v972
      %v1553 = vmul.f32 %v977, %v977
      %v1554 = vmul.f32 %v982, %v982
      %v1555 = vmul.f32 %v987, %v987
      %v1556 = vmul.f32 %v992, %v992
      %v1557 = vmul.f32 %v997, %v997
      %v1558 = vmul.f32 %v1002, %v1002
      %v1559 = vmul.f32 %v1007, %v1007
      %v1560 = vmul.f32 %v1012, %v1012
      %v1561 = vmul.f32 %v1017, %v1017
      %v1562 = vmul.f32 %v1022, %v1022
      %v1563 = vmul.f32 %v1027, %v1027
      %v1564 = vmul.f32 %v1032, %v1032
      %v1565 = vmul.f32 %v1037, %v1037
      %v1566 = vmul.f32 %v1042, %v1042
      %v1567 = vmul.f32 %v1047, %v1047
      %v1568 = vmul.f32 %v1052, %v1052
      %v1569 = vmul.f32 %v1057, %v1057
      %v1570 = vmul.f32 %v1062, %v1062
      %v1571 = vmul.f32 %v1067, %v1067
      %v1572 = vmul.f32 %v1072, %v1072
      %v1573 = vmul.f32 %v1077, %v1077
      %v1574 = vmul.f32 %v1082, %v1082
      %v1575 = vmul.f32 %v1087, %v1087
      %v1576 = vmul.f32 %v1092, %v1092
      %v1577 = vmul.f32 %v1097, %v1097
      %v1578 = vmul.f32 %v1102, %v1102
      %v1579 = vmul.f32 %v1107, %v1107
      %v1580 = vmul.f32 %v1112, %v1112
      %v1581 = vmul.f32 %v1117, %v1117
      %v1582 = vmul.f32 %v1122, %v1122
      %v1583 = vmul.f32 %v1127, %v1127
      %v1584 = vmul.f32 %v1132, %v1132
      %v1585 = vmul.f32 %v1137, %v1137
      %v1586 = vmul.f32 %v1142, %v1142
      %v1587 = vmul.f32 %v1147, %v1147
      %v1588 = vmul.f32 %v1152, %v1152
      %v1589 = vmul.f32 %v1157, %v1157
      %v1590 = vmul.f32 %v1162, %v1162
      %v1591 = vmul.f32 %v1167, %v1167
      %v1592 = vmul.f32 %v1172, %v1172
      %v1593 = vmul.f32 %v1177, %v1177
      %v1594 = vmul.f32 %v1182, %v1182
      %v1595 = vmul.f32 %v1187, %v1187
      %v1596 = vmul.f32 %v1192, %v1192
      %v1597 = vmul.f32 %v1197, %v1197
      %v1598 = vmul.f32 %v1202, %v1202
      %v1599 = vmul.f32 %v1207, %v1207
      %v1600 = vmul.f32 %v1212, %v1212
      %v1601 = vmul.f32 %v1217, %v1217
      %v1602 = vmul.f32 %v1222, %v1222
      %v1603 = vmul.f32 %v1227, %v1227
      %v1604 = vmul.f32 %v1232, %v1232
      %v1605 = vmul.f32 %v1237, %v1237
      %v1606 = vmul.f32 %v1242, %v1242
      %v1607 = vmul.f32 %v1247, %v1247
      %v1608 = vmul.f32 %v1252, %v1252
      %v1609 = vmul.f32 %v1257, %v1257
      %v1610 = vmul.f32 %v1262, %v1262
      %v1611 = vmul.f32 %v1267, %v1267
      %v1612 = vmul.f32 %v1272, %v1272
      %v1613 = vmul.f32 %v1277, %v1277
      %v1614 = vmul.f32 %v1282, %v1282
      %v1615 = vmul.f32 %v1287, %v1287
      %v1616 = vmul.f32 %v1292, %v1292
      %v1617 = vmul.f32 %v1297, %v1297
      %v1618 = vmul.f32 %v1302, %v1302
      %v1619 = vmul.f32 %v1307, %v1307
      %v1620 = vmul.f32 %v1312, %v1312
      %v1621 = vmul.f32 %v1317, %v1317
      %v1622 = vmul.f32 %v1322, %v1322
      %v1623 = vmul.f32 %v1327, %v1327
      %v1624 = vmul.f32 %v1332, %v1332
      %v1625 = vmul.f32 %v1337, %v1337
      %v1626 = vmul.f32 %v1342, %v1342
      %v1627 = vmul.f32 %v1347, %v1347
      %v1628 = vmul.f32 %v1352, %v1352
      %v1629 = vmul.f32 %v1357, %v1357
      %v1630 = vmul.f32 %v1362, %v1362
      %v1631 = vmul.f32 %v1367, %v1367
      %v1632 = vadd.f32 %v1504, %v1505
      %v1633 = vadd.f32 %v1632, %v1506
      %v1634 = vadd.f32 %v1633, %v1507
      %v1635 = vadd.f32 %v1634, %v1508
      %v1636 = vadd.f32 %v1635, %v1509
      %v1637 = vadd.f32 %v1636, %v1510
      %v1638 = vadd.f32 %v1637, %v1511
      %v1639 = vadd.f32 %v1638, %v1512
      %v1640 = vadd.f32 %v1639, %v1513
      %v1641 = vadd.f32 %v1640, %v1514
      %v1642 = vadd.f32 %v1641, %v1515
      %v1643 = vadd.f32 %v1642, %v1516
      %v1644 = vadd.f32 %v1643, %v1517
      %v1645 = vadd.f32 %v1644, %v1518
      %v1646 = vadd.f32 %v1645, %v1519
      %v1647 = vadd.f32 %v1646, %v1520
      %v1648 = vadd.f32 %v1647, %v1521
      %v1649 = vadd.f32 %v1648, %v1522
      %v1650 = vadd.f32 %v1649, %v1523
      %v1651 = vadd.f32 %v1650, %v1524
      %v1652 = vadd.f32 %v1651, %v1525
      %v1653 = vadd.f32 %v1652, %v1526
      %v1654 = vadd.f32 %v1653, %v1527
      %v1655 = vadd.f32 %v1654, %v1528
      %v1656 = vadd.f32 %v1655, %v1529
      %v1657 = vadd.f32 %v1656, %v1530
      %v1658 = vadd.f32 %v1657, %v1531
      %v1659 = vadd.f32 %v1658, %v1532
      %v1660 = vadd.f32 %v1659, %v1533
      %v1661 = vadd.f32 %v1660, %v1534
      %v1662 = vadd.f32 %v1661, %v1535
      %v1663 = vadd.f32 %v1662, %v1536
      %v1664 = vadd.f32 %v1663, %v1537
      %v1665 = vadd.f32 %v1664, %v1538
      %v1666 = vadd.f32 %v1665, %v1539
      %v1667 = vadd.f32 %v1666, %v1540
      %v1668 = vadd.f32 %v1667, %v1541
      %v1669 = vadd.f32 %v1668, %v1542
      %v1670 = vadd.f32 %v1669, %v1543
      %v1671 = vadd.f32 %v1670, %v1544
      %v1672 = vadd.f32 %v1671, %v1545
      %v1673 = vadd.f32 %v1672, %v1546
      %v1674 = vadd.f32 %v1673, %v1547
      %v1675 = vadd.f32 %v1674, %v1548
      %v1676 = vadd.f32 %v1675, %v1549
      %v1677 = vadd.f32 %v1676, %v1550
      %v1678 = vadd.f32 %v1677, %v1551
      %v1679 = vadd.f32 %v1678, %v1552
      %v1680 = vadd.f32 %v1679, %v1553
      %v1681 = vadd.f32 %v1680, %v1554
      %v1682 = vadd.f32 %v1681, %v1555
      %v1683 = vadd.f32 %v1682, %v1556
      %v1684 = vadd.f32 %v1683, %v1557
      %v1685 = vadd.f32 %v1684, %v1558
      %v1686 = vadd.f32 %v1685, %v1559
      %v1687 = vadd.f32 %v1686, %v1560
      %v1688 = vadd.f32 %v1687, %v1561
      %v1689 = vadd.f32 %v1688, %v1562
      %v1690 = vadd.f32 %v1689, %v1563
      %v1691 = vadd.f32 %v1690, %v1564
      %v1692 = vadd.f32 %v1691, %v1565
      %v1693 = vadd.f32 %v1692, %v1566
      %v1694 = vadd.f32 %v1693, %v1567
      %v1695 = vadd.f32 %v1694, %v1568
      %v1696 = vadd.f32 %v1695, %v1569
      %v1697 = vadd.f32 %v1696, %v1570
      %v1698 = vadd.f32 %v1697, %v1571
      %v1699 = vadd.f32 %v1698, %v1572
      %v1700 = vadd.f32 %v1699, %v1573
      %v1701 = vadd.f32 %v1700, %v1574
      %v1702 = vadd.f32 %v1701, %v1575
      %v1703 = vadd.f32 %v1702, %v1576
      %v1704 = vadd.f32 %v1703, %v1577
      %v1705 = vadd.f32 %v1704, %v1578
      %v1706 = vadd.f32 %v1705, %v1579
      %v1707 = vadd.f32 %v1706, %v1580
      %v1708 = vadd.f32 %v1707, %v1581
      %v1709 = vadd.f32 %v1708, %v1582
      %v1710 = vadd.f32 %v1709, %v1583
      %v1711 = vadd.f32 %v1710, %v1584
      %v1712 = vadd.f32 %v1711, %v1585
      %v1713 = vadd.f32 %v1712, %v1586
      %v1714 = vadd.f32 %v1713, %v1587
      %v1715 = vadd.f32 %v1714, %v1588
      %v1716 = vadd.f32 %v1715, %v1589
      %v1717 = vadd.f32 %v1716, %v1590
      %v1718 = vadd.f32 %v1717, %v1591
      %v1719 = vadd.f32 %v1718, %v1592
      %v1720 = vadd.f32 %v1719, %v1593
      %v1721 = vadd.f32 %v1720, %v1594
      %v1722 = vadd.f32 %v1721, %v1595
      %v1723 = vadd.f32 %v1722, %v1596
      %v1724 = vadd.f32 %v1723, %v1597
      %v1725 = vadd.f32 %v1724, %v1598
      %v1726 = vadd.f32 %v1725, %v1599
      %v1727 = vadd.f32 %v1726, %v1600
      %v1728 = vadd.f32 %v1727, %v1601
      %v1729 = vadd.f32 %v1728, %v1602
      %v1730 = vadd.f32 %v1729, %v1603
      %v1731 = vadd.f32 %v1730, %v1604
      %v1732 = vadd.f32 %v1731, %v1605
      %v1733 = vadd.f32 %v1732, %v1606
      %v1734 = vadd.f32 %v1733, %v1607
      %v1735 = vadd.f32 %v1734, %v1608
      %v1736 = vadd.f32 %v1735, %v1609
      %v1737 = vadd.f32 %v1736, %v1610
      %v1738 = vadd.f32 %v1737, %v1611
      %v1739 = vadd.f32 %v1738, %v1612
      %v1740 = vadd.f32 %v1739, %v1613
      %v1741 = vadd.f32 %v1740, %v1614
      %v1742 = vadd.f32 %v1741, %v1615
      %v1743 = vadd.f32 %v1742, %v1616
      %v1744 = vadd.f32 %v1743, %v1617
      %v1745 = vadd.f32 %v1744, %v1618
      %v1746 = vadd.f32 %v1745, %v1619
      %v1747 = vadd.f32 %v1746, %v1620
      %v1748 = vadd.f32 %v1747, %v1621
      %v1749 = vadd.f32 %v1748, %v1622
      %v1750 = vadd.f32 %v1749, %v1623
      %v1751 = vadd.f32 %v1750, %v1624
      %v1752 = vadd.f32 %v1751, %v1625
      %v1753 = vadd.f32 %v1752, %v1626
      %v1754 = vadd.f32 %v1753, %v1627
      %v1755 = vadd.f32 %v1754, %v1628
      %v1756 = vadd.f32 %v1755, %v1629
      %v1757 = vadd.f32 %v1756, %v1630
      %v1758 = vadd.f32 %v1757, %v1631
      %v1759 = vrot.slane %v1758, 4
      %v1760 = vadd.f32 %v1758, %v1759
      %v1761 = vrot.slane %v1760, 2
      %v1762 = vadd.f32 %v1760, %v1761
      %v1763 = vrot.slane %v1762, 1
      %v1764 = vadd.f32 %v1762, %v1763
      %1765 = vst [vmem:[%s143 + $0x1] sm:$0x1] %v1764
      %p1766 = scmp.lt.s32.totalorder %s13, 1
      %s1767 = scalar_select %p1766, %s13, 1
      %s1768 = smul.addr %s1767, 2
      %s1769 = scalar_lea.vmem %s2, %s1768
      // Predicated region
      $region29: #{conv_transpose_bn_lrelu.2} parent=27 // pred_check
        %p1770 = pneg %p78
      $region30: #{conv_transpose_bn_lrelu.2} parent=27 // pred_check_branch
        %1772 = sbr.rel (%p1770) target = $region32
      $region31: #{conv_transpose_bn_lrelu.2} parent=27 // pred_region
        _
      $region32: #{conv_transpose_bn_lrelu.2} parent=27 // pred_fallthru
        _
    $region28: #{conv_transpose_bn_lrelu.2} parent=5 // pred_fallthru
      _
    %p1773 = scmp.le.s32.totalorder 2, %s8
    // Predicated region
    $region33: #{conv_transpose_bn_lrelu.2} parent=5 // pred_check
      %p1774 = pneg %p1773
    $region34: #{conv_transpose_bn_lrelu.2} parent=5 // pred_check_branch
      %1776 = sbr.rel (%p1774) target = $region36
    $region35: #{conv_transpose_bn_lrelu.2} parent=5 // pred_region
      %s1777 = ssub.s32 %s8, 2
      // Predicated region
      $region37: #{conv_transpose_bn_lrelu.2} parent=35 // pred_check
        %p1778 = pneg %p84
      $region38: #{conv_transpose_bn_lrelu.2} parent=35 // pred_check_branch
        %1780 = sbr.rel (%p1778) target = $region40
      $region39: #{conv_transpose_bn_lrelu.2} parent=35 // pred_region
        %p1781 = scmp.lt.s32.totalorder %s14, 1
        %s1782 = scalar_select %p1781, %s14, 1
        %s1783 = smul.addr %s1782, 2
        %s1784 = scalar_lea.vmem %s2, %s1783
      $region40: #{conv_transpose_bn_lrelu.2} parent=35 // pred_fallthru
        _
    $region36: #{conv_transpose_bn_lrelu.2} parent=5 // pred_fallthru
      _
  $region6: #{conv_transpose_bn_lrelu.2} parent=0 // loop_footer
    %s12 = sadd.s32 1, %s8
  $region7: #{conv_transpose_bn_lrelu.2} parent=0 // loop_footer_branch
    %7 = sbr.rel target = $region3
  $region8: #{conv_transpose_bn_lrelu.2} parent=0 // loop_exit
    _

// kernel: conv_transpose_bn_lrelu.3
$region0: #{conv_transpose_bn_lrelu.3}
  #allocation0 [shape = 'u32[]', space=smem, size = 0x4, offset = 0x4, fixed_abs, tag = 'smem constant byte address 0x4 - core index']
  #allocation1 [shape = 'u32[144,128]{1,0:T(1,128)}', space=vmem, size = 0x12000, scoped, tag = 'internal scratch']
  %s0 = inlined_call_operand.vmem [shape: f32[2048,64], index: 0, kind: input, shape index: {}]
  %s1 = inlined_call_operand.vmem [shape: f32[64,128], index: 1, kind: input, shape index: {}]
  %s2 = inlined_call_operand.vmem [shape: f32[1,128], index: 2, kind: input, shape index: {}]
  %s3 = inlined_call_operand.vmem [shape: f32[1,128], index: 3, kind: input, shape index: {}]
  %s4 = inlined_call_operand.vmem [shape: f32[2048,8], index: 4, kind: output, shape index: {}]
  %s5 = sld [smem:[#allocation0]]
  $region49: #{conv_transpose_bn_lrelu.3} parent=0
    _
  %s7 = ssub.s32 1, %s5
  %s8 = scalar_select 0, %s7, %s5
  loop: start=0, step=1, limit=4
  $region2: #{conv_transpose_bn_lrelu.3} parent=0 // loop_pre_header
    _
  $region3: #{conv_transpose_bn_lrelu.3} parent=0 // loop_header
    %s10 = sphi 0, %s14
    %p11 = scmp.ge.s32.totalorder %s10, 4
    %s20 = sphi 0, %s22
    %s23 = sphi 0, %s20
    %s24 = sphi 0, %s23
    %s40 = sphi 0, %s24
    %s44 = sphi 0, %s44
    %s46 = sphi 0, %s44
    %s47 = sphi 0, %s46
    %s61 = sphi 0, %s47
    %s65 = sphi 0, %s65
    %s67 = sphi 0, %s65
    %s68 = sphi 0, %s67
    %s82 = sphi 0, %s68
    %s86 = sphi 0, %s86
    %s88 = sphi 0, %s86
    %s89 = sphi 0, %s88
    %s103 = sphi 0, %s89
    %s109 = sphi 0, %s111
    %s112 = sphi 0, %s109
    %s113 = sphi 0, %s112
    %s129 = sphi 0, %s113
  $region4: #{conv_transpose_bn_lrelu.3} parent=0 // loop_header_branch
    %13 = sbr.rel (%p11) target = $region8
  $region5: #{conv_transpose_bn_lrelu.3} parent=0 // loop_body
    %s15 = ssub.s32 %s10, 1
    %s16 = ssub.s32 %s10, 2
    %s17 = sadd.s32 %s10, 1
    %s18 = ssub.s32 %s10, %s17
    %p19 = scmp.eq.s32.totalorder %s18, 0
    %s21 = sadd.s32 %s20, 1
    %s22 = scalar_select %p19, %s20, %s21
    %p25 = pneg %p19
    %p26 = scmp.eq.s32.totalorder %s10, 1
    %p27 = por %p25, %p26
    %p28 = scmp.ne.s32.totalorder %s20, %s23
    %p29 = scmp.eq.s32.totalorder %s10, 0
    %p30 = por %p28, %p29
    %p31 = scmp.ne.s32.totalorder %s20, %s23
    %p32 = scmp.eq.s32.totalorder %s15, 1
    %p33 = por %p31, %p32
    %p34 = scmp.ne.s32.totalorder %s23, %s24
    %p35 = scmp.eq.s32.totalorder %s15, 0
    %p36 = por %p34, %p35
    %p37 = scmp.ne.s32.totalorder %s23, %s24
    %p38 = scmp.eq.s32.totalorder %s16, 1
    %p39 = por %p37, %p38
    %p41 = scmp.ne.s32.totalorder %s24, %s40
    %p42 = scmp.eq.s32.totalorder %s16, 0
    %p43 = por %p41, %p42
    %s45 = sadd.s32 %s44, 1
    %p48 = scmp.eq.s32.totalorder %s10, 1
    %p49 = scmp.ne.s32.totalorder %s44, %s46
    %p50 = scmp.eq.s32.totalorder %s10, 0
    %p51 = por %p49, %p50
    %p52 = scmp.ne.s32.totalorder %s44, %s46
    %p53 = scmp.eq.s32.totalorder %s15, 1
    %p54 = por %p52, %p53
    %p55 = scmp.ne.s32.totalorder %s46, %s47
    %p56 = scmp.eq.s32.totalorder %s15, 0
    %p57 = por %p55, %p56
    %p58 = scmp.ne.s32.totalorder %s46, %s47
    %p59 = scmp.eq.s32.totalorder %s16, 1
    %p60 = por %p58, %p59
    %p62 = scmp.ne.s32.totalorder %s47, %s61
    %p63 = scmp.eq.s32.totalorder %s16, 0
    %p64 = por %p62, %p63
    %s66 = sadd.s32 %s65, 1
    %p69 = scmp.eq.s32.totalorder %s10, 1
    %p70 = scmp.ne.s32.totalorder %s65, %s67
    %p71 = scmp.eq.s32.totalorder %s10, 0
    %p72 = por %p70, %p71
    %p73 = scmp.ne.s32.totalorder %s65, %s67
    %p74 = scmp.eq.s32.totalorder %s15, 1
    %p75 = por %p73, %p74
    %p76 = scmp.ne.s32.totalorder %s67, %s68
    %p77 = scmp.eq.s32.totalorder %s15, 0
    %p78 = por %p76, %p77
    %p79 = scmp.ne.s32.totalorder %s67, %s68
    %p80 = scmp.eq.s32.totalorder %s16, 1
    %p81 = por %p79, %p80
    %p83 = scmp.ne.s32.totalorder %s68, %s82
    %p84 = scmp.eq.s32.totalorder %s16, 0
    %p85 = por %p83, %p84
    %s87 = sadd.s32 %s86, 1
    %p90 = scmp.eq.s32.totalorder %s10, 1
    %p91 = scmp.ne.s32.totalorder %s86, %s88
    %p92 = scmp.eq.s32.totalorder %s10, 0
    %p93 = por %p91, %p92
    %p94 = scmp.ne.s32.totalorder %s86, %s88
    %p95 = scmp.eq.s32.totalorder %s15, 1
    %p96 = por %p94, %p95
    %p97 = scmp.ne.s32.totalorder %s88, %s89
    %p98 = scmp.eq.s32.totalorder %s15, 0
    %p99 = por %p97, %p98
    %p100 = scmp.ne.s32.totalorder %s88, %s89
    %p101 = scmp.eq.s32.totalorder %s16, 1
    %p102 = por %p100, %p101
    %p104 = scmp.ne.s32.totalorder %s89, %s103
    %p105 = scmp.eq.s32.totalorder %s16, 0
    %p106 = por %p104, %p105
    %s107 = ssub.s32 %s10, %s17
    %p108 = scmp.eq.s32.totalorder %s107, 0
    %s110 = sadd.s32 %s109, 1
    %s111 = scalar_select %p108, %s109, %s110
    %p114 = pneg %p108
    %p115 = scmp.eq.s32.totalorder %s10, 1
    %p116 = por %p114, %p115
    %p117 = scmp.ne.s32.totalorder %s109, %s112
    %p118 = scmp.eq.s32.totalorder %s10, 0
    %p119 = por %p117, %p118
    %p120 = scmp.ne.s32.totalorder %s109, %s112
    %p121 = scmp.eq.s32.totalorder %s15, 1
    %p122 = por %p120, %p121
    %p123 = scmp.ne.s32.totalorder %s112, %s113
    %p124 = scmp.eq.s32.totalorder %s15, 0
    %p125 = por %p123, %p124
    %p126 = scmp.ne.s32.totalorder %s112, %s113
    %p127 = scmp.eq.s32.totalorder %s16, 1
    %p128 = por %p126, %p127
    %p130 = scmp.ne.s32.totalorder %s113, %s129
    %p131 = scmp.eq.s32.totalorder %s16, 0
    %p132 = por %p130, %p131
    %p133 = scmp.le.s32.totalorder 1, %s10
    %p134 = scmp.lt.s32.totalorder %s10, 3
    %p135 = pnand %p133, %p134
    %p136 = pneg %p135
    // Predicated region
    $region9: #{conv_transpose_bn_lrelu.3} parent=5 // pred_check
      _
    $region10: #{conv_transpose_bn_lrelu.3} parent=5 // pred_check_branch
      %138 = sbr.rel (%p135) target = $region12
    $region11: #{conv_transpose_bn_lrelu.3} parent=5 // pred_region
      %s139 = ssub.s32 %s10, 1
      // Predicated region
      $region13: #{conv_transpose_bn_lrelu.3} parent=11 // pred_check
        %p140 = pneg %p57
      $region14: #{conv_transpose_bn_lrelu.3} parent=11 // pred_check_branch
        %142 = sbr.rel (%p140) target = $region16
      $region15: #{conv_transpose_bn_lrelu.3} parent=11 // pred_region
        _
      $region16: #{conv_transpose_bn_lrelu.3} parent=11 // pred_fallthru
        _
      // Predicated region
      $region17: #{conv_transpose_bn_lrelu.3} parent=11 // pred_check
        %p143 = pneg %p78
      $region18: #{conv_transpose_bn_lrelu.3} parent=11 // pred_check_branch
        %145 = sbr.rel (%p143) target = $region20
      $region19: #{conv_transpose_bn_lrelu.3} parent=11 // pred_region
        _
      $region20: #{conv_transpose_bn_lrelu.3} parent=11 // pred_fallthru
        _
      // Predicated region
      $region21: #{conv_transpose_bn_lrelu.3} parent=11 // pred_check
        %p146 = pneg %p99
      $region22: #{conv_transpose_bn_lrelu.3} parent=11 // pred_check_branch
        %148 = sbr.rel (%p146) target = $region24
      $region23: #{conv_transpose_bn_lrelu.3} parent=11 // pred_region
        _
      $region24: #{conv_transpose_bn_lrelu.3} parent=11 // pred_fallthru
        _
    $region12: #{conv_transpose_bn_lrelu.3} parent=5 // pred_fallthru
      _
    %p149 = scmp.lt.s32.totalorder %s10, 2
    // Predicated region
    $region25: #{conv_transpose_bn_lrelu.3} parent=5 // pred_check
      %p150 = pneg %p149
    $region26: #{conv_transpose_bn_lrelu.3} parent=5 // pred_check_branch
      %152 = sbr.rel (%p150) target = $region28
    $region27: #{conv_transpose_bn_lrelu.3} parent=5 // pred_region
      // Predicated region
      $region29: #{conv_transpose_bn_lrelu.3} parent=27 // pred_check
        %p153 = pneg %p30
      $region30: #{conv_transpose_bn_lrelu.3} parent=27 // pred_check_branch
        %155 = sbr.rel (%p153) target = $region32
      $region31: #{conv_transpose_bn_lrelu.3} parent=27 // pred_region
        %s156 = smul.u32 128, %s10
        %p157 = scmp.lt.s32.totalorder %s156, 255
        %s158 = scalar_select %p157, %s156, 255
        %s159 = smul.addr %s158, 8
        %s160 = scalar_lea.vmem %s0, %s159
        %s161 = smul.u32 128, %s10
      $region32: #{conv_transpose_bn_lrelu.3} parent=27 // pred_fallthru
        _
    $region28: #{conv_transpose_bn_lrelu.3} parent=5 // pred_fallthru
      _
    %p162 = scmp.le.s32.totalorder 1, %s10
    %p163 = scmp.lt.s32.totalorder %s10, 3
    %p164 = pnand %p162, %p163
    %p165 = pneg %p164
    // Predicated region
    $region33: #{conv_transpose_bn_lrelu.3} parent=5 // pred_check
      _
    $region34: #{conv_transpose_bn_lrelu.3} parent=5 // pred_check_branch
      %167 = sbr.rel (%p164) target = $region36
    $region35: #{conv_transpose_bn_lrelu.3} parent=5 // pred_region
      %s168 = ssub.s32 %s10, 1
      %s169 = smul.u32 128, %s15
      %p170 = scmp.lt.s32.totalorder %s169, 255
      %s171 = scalar_select %p170, %s169, 255
      %s172 = smul.addr %s171, 8
      %s173 = scalar_lea.vmem %s0, %s172
      %p174 = pneg %p36
      %p175 = pneg %p33
      %p176 = pneg %p57
      %p177 = pneg %p54
      %p178 = pneg %p78
      %p179 = pneg %p75
      %p180 = pneg %p99
      %p181 = pneg %p96
      %p182 = pneg %p125
      %p183 = pneg %p122
      %s184 = smul.u32 128, %s15
      %p185 = scmp.lt.s32.totalorder %s184, 255
      %s186 = scalar_select %p185, %s184, 255
      %s187 = smul.addr %s186, 8
      %s188 = scalar_lea.vmem %s4, %s187
      %s189 = smul.u32 128, %s15
      %p190 = scmp.lt.s32.totalorder %s189, 255
      %s191 = scalar_select %p190, %s189, 255
      %s192 = smul.addr %s191, 8
      %s193 = scalar_lea.vmem %s0, %s192
      %s194 = smul.u32 128, %s15
      %s195 = smul.u32 128, %s15
      %p196 = scmp.lt.s32.totalorder %s195, 255
      %s197 = scalar_select %p196, %s195, 255
      %s198 = smul.addr %s197, 8
      %s199 = scalar_lea.vmem %s4, %s198
      %s200 = smul.u32 128, %s15
      %v201 = vld [vmem:[%s193] sm:$0xff]
      %v202 = vld [vmem:[%s193 + $0x8] sm:$0xff]
      %v203 = vld [vmem:[%s193 + $0x10] sm:$0xff]
      %v204 = vld [vmem:[%s193 + $0x18] sm:$0xff]
      %v205 = vld [vmem:[%s193 + $0x20] sm:$0xff]
      %v206 = vld [vmem:[%s193 + $0x28] sm:$0xff]
      %v207 = vld [vmem:[%s193 + $0x30] sm:$0xff]
      %v208 = vld [vmem:[%s193 + $0x38] sm:$0xff]
      %v209 = vld [vmem:[%s193 + $0x40] sm:$0xff]
      %v210 = vld [vmem:[%s193 + $0x48] sm:$0xff]
      %v211 = vld [vmem:[%s193 + $0x50] sm:$0xff]
      %v212 = vld [vmem:[%s193 + $0x58] sm:$0xff]
      %v213 = vld [vmem:[%s193 + $0x60] sm:$0xff]
      %v214 = vld [vmem:[%s193 + $0x68] sm:$0xff]
      %v215 = vld [vmem:[%s193 + $0x70] sm:$0xff]
      %v216 = vld [vmem:[%s193 + $0x78] sm:$0xff]
      %v217 = vld [vmem:[%s193 + $0x80] sm:$0xff]
      %v218 = vld [vmem:[%s193 + $0x88] sm:$0xff]
      %v219 = vld [vmem:[%s193 + $0x90] sm:$0xff]
      %v220 = vld [vmem:[%s193 + $0x98] sm:$0xff]
      %v221 = vld [vmem:[%s193 + $0xa0] sm:$0xff]
      %v222 = vld [vmem:[%s193 + $0xa8] sm:$0xff]
      %v223 = vld [vmem:[%s193 + $0xb0] sm:$0xff]
      %v224 = vld [vmem:[%s193 + $0xb8] sm:$0xff]
      %v225 = vld [vmem:[%s193 + $0xc0] sm:$0xff]
      %v226 = vld [vmem:[%s193 + $0xc8] sm:$0xff]
      %v227 = vld [vmem:[%s193 + $0xd0] sm:$0xff]
      %v228 = vld [vmem:[%s193 + $0xd8] sm:$0xff]
      %v229 = vld [vmem:[%s193 + $0xe0] sm:$0xff]
      %v230 = vld [vmem:[%s193 + $0xe8] sm:$0xff]
      %v231 = vld [vmem:[%s193 + $0xf0] sm:$0xff]
      %v232 = vld [vmem:[%s193 + $0xf8] sm:$0xff]
      %v233 = vld [vmem:[%s193 + $0x100] sm:$0xff]
      %v234 = vld [vmem:[%s193 + $0x108] sm:$0xff]
      %v235 = vld [vmem:[%s193 + $0x110] sm:$0xff]
      %v236 = vld [vmem:[%s193 + $0x118] sm:$0xff]
      %v237 = vld [vmem:[%s193 + $0x120] sm:$0xff]
      %v238 = vld [vmem:[%s193 + $0x128] sm:$0xff]
      %v239 = vld [vmem:[%s193 + $0x130] sm:$0xff]
      %v240 = vld [vmem:[%s193 + $0x138] sm:$0xff]
      %v241 = vld [vmem:[%s193 + $0x140] sm:$0xff]
      %v242 = vld [vmem:[%s193 + $0x148] sm:$0xff]
      %v243 = vld [vmem:[%s193 + $0x150] sm:$0xff]
      %v244 = vld [vmem:[%s193 + $0x158] sm:$0xff]
      %v245 = vld [vmem:[%s193 + $0x160] sm:$0xff]
      %v246 = vld [vmem:[%s193 + $0x168] sm:$0xff]
      %v247 = vld [vmem:[%s193 + $0x170] sm:$0xff]
      %v248 = vld [vmem:[%s193 + $0x178] sm:$0xff]
      %v249 = vld [vmem:[%s193 + $0x180] sm:$0xff]
      %v250 = vld [vmem:[%s193 + $0x188] sm:$0xff]
      %v251 = vld [vmem:[%s193 + $0x190] sm:$0xff]
      %v252 = vld [vmem:[%s193 + $0x198] sm:$0xff]
      %v253 = vld [vmem:[%s193 + $0x1a0] sm:$0xff]
      %v254 = vld [vmem:[%s193 + $0x1a8] sm:$0xff]
      %v255 = vld [vmem:[%s193 + $0x1b0] sm:$0xff]
      %v256 = vld [vmem:[%s193 + $0x1b8] sm:$0xff]
      %v257 = vld [vmem:[%s193 + $0x1c0] sm:$0xff]
      %v258 = vld [vmem:[%s193 + $0x1c8] sm:$0xff]
      %v259 = vld [vmem:[%s193 + $0x1d0] sm:$0xff]
      %v260 = vld [vmem:[%s193 + $0x1d8] sm:$0xff]
      %v261 = vld [vmem:[%s193 + $0x1e0] sm:$0xff]
      %v262 = vld [vmem:[%s193 + $0x1e8] sm:$0xff]
      %v263 = vld [vmem:[%s193 + $0x1f0] sm:$0xff]
      %v264 = vld [vmem:[%s193 + $0x1f8] sm:$0xff]
      %v265 = vld [vmem:[%s193 + $0x200] sm:$0xff]
      %v266 = vld [vmem:[%s193 + $0x208] sm:$0xff]
      %v267 = vld [vmem:[%s193 + $0x210] sm:$0xff]
      %v268 = vld [vmem:[%s193 + $0x218] sm:$0xff]
      %v269 = vld [vmem:[%s193 + $0x220] sm:$0xff]
      %v270 = vld [vmem:[%s193 + $0x228] sm:$0xff]
      %v271 = vld [vmem:[%s193 + $0x230] sm:$0xff]
      %v272 = vld [vmem:[%s193 + $0x238] sm:$0xff]
      %v273 = vld [vmem:[%s193 + $0x240] sm:$0xff]
      %v274 = vld [vmem:[%s193 + $0x248] sm:$0xff]
      %v275 = vld [vmem:[%s193 + $0x250] sm:$0xff]
      %v276 = vld [vmem:[%s193 + $0x258] sm:$0xff]
      %v277 = vld [vmem:[%s193 + $0x260] sm:$0xff]
      %v278 = vld [vmem:[%s193 + $0x268] sm:$0xff]
      %v279 = vld [vmem:[%s193 + $0x270] sm:$0xff]
      %v280 = vld [vmem:[%s193 + $0x278] sm:$0xff]
      %v281 = vld [vmem:[%s193 + $0x280] sm:$0xff]
      %v282 = vld [vmem:[%s193 + $0x288] sm:$0xff]
      %v283 = vld [vmem:[%s193 + $0x290] sm:$0xff]
      %v284 = vld [vmem:[%s193 + $0x298] sm:$0xff]
      %v285 = vld [vmem:[%s193 + $0x2a0] sm:$0xff]
      %v286 = vld [vmem:[%s193 + $0x2a8] sm:$0xff]
      %v287 = vld [vmem:[%s193 + $0x2b0] sm:$0xff]
      %v288 = vld [vmem:[%s193 + $0x2b8] sm:$0xff]
      %v289 = vld [vmem:[%s193 + $0x2c0] sm:$0xff]
      %v290 = vld [vmem:[%s193 + $0x2c8] sm:$0xff]
      %v291 = vld [vmem:[%s193 + $0x2d0] sm:$0xff]
      %v292 = vld [vmem:[%s193 + $0x2d8] sm:$0xff]
      %v293 = vld [vmem:[%s193 + $0x2e0] sm:$0xff]
      %v294 = vld [vmem:[%s193 + $0x2e8] sm:$0xff]
      %v295 = vld [vmem:[%s193 + $0x2f0] sm:$0xff]
      %v296 = vld [vmem:[%s193 + $0x2f8] sm:$0xff]
      %v297 = vld [vmem:[%s193 + $0x300] sm:$0xff]
      %v298 = vld [vmem:[%s193 + $0x308] sm:$0xff]
      %v299 = vld [vmem:[%s193 + $0x310] sm:$0xff]
      %v300 = vld [vmem:[%s193 + $0x318] sm:$0xff]
      %v301 = vld [vmem:[%s193 + $0x320] sm:$0xff]
      %v302 = vld [vmem:[%s193 + $0x328] sm:$0xff]
      %v303 = vld [vmem:[%s193 + $0x330] sm:$0xff]
      %v304 = vld [vmem:[%s193 + $0x338] sm:$0xff]
      %v305 = vld [vmem:[%s193 + $0x340] sm:$0xff]
      %v306 = vld [vmem:[%s193 + $0x348] sm:$0xff]
      %v307 = vld [vmem:[%s193 + $0x350] sm:$0xff]
      %v308 = vld [vmem:[%s193 + $0x358] sm:$0xff]
      %v309 = vld [vmem:[%s193 + $0x360] sm:$0xff]
      %v310 = vld [vmem:[%s193 + $0x368] sm:$0xff]
      %v311 = vld [vmem:[%s193 + $0x370] sm:$0xff]
      %v312 = vld [vmem:[%s193 + $0x378] sm:$0xff]
      %v313 = vld [vmem:[%s193 + $0x380] sm:$0xff]
      %v314 = vld [vmem:[%s193 + $0x388] sm:$0xff]
      %v315 = vld [vmem:[%s193 + $0x390] sm:$0xff]
      %v316 = vld [vmem:[%s193 + $0x398] sm:$0xff]
      %v317 = vld [vmem:[%s193 + $0x3a0] sm:$0xff]
      %v318 = vld [vmem:[%s193 + $0x3a8] sm:$0xff]
      %v319 = vld [vmem:[%s193 + $0x3b0] sm:$0xff]
      %v320 = vld [vmem:[%s193 + $0x3b8] sm:$0xff]
      %v321 = vld [vmem:[%s193 + $0x3c0] sm:$0xff]
      %v322 = vld [vmem:[%s193 + $0x3c8] sm:$0xff]
      %v323 = vld [vmem:[%s193 + $0x3d0] sm:$0xff]
      %v324 = vld [vmem:[%s193 + $0x3d8] sm:$0xff]
      %v325 = vld [vmem:[%s193 + $0x3e0] sm:$0xff]
      %v326 = vld [vmem:[%s193 + $0x3e8] sm:$0xff]
      %v327 = vld [vmem:[%s193 + $0x3f0] sm:$0xff]
      %v328 = vld [vmem:[%s193 + $0x3f8] sm:$0xff]
      %v329 = vld [vmem:[%s1] sm:$0xff]
      %v330 = vld [vmem:[%s1 + $0x8] sm:$0xff]
      %v331 = vld [vmem:[%s1 + $0x10] sm:$0xff]
      %v332 = vld [vmem:[%s1 + $0x18] sm:$0xff]
      %v333 = vld [vmem:[%s1 + $0x20] sm:$0xff]
      %v334 = vld [vmem:[%s1 + $0x28] sm:$0xff]
      %v335 = vld [vmem:[%s1 + $0x30] sm:$0xff]
      %v336 = vld [vmem:[%s1 + $0x38] sm:$0xff]
      %vm337 = vcmask 523264
      %v339 = vsel %vm337, %v201, 0
      %v342 = vsel %vm337, %v202, 0
      %v345 = vsel %vm337, %v203, 0
      %v348 = vsel %vm337, %v204, 0
      %v351 = vsel %vm337, %v205, 0
      %v354 = vsel %vm337, %v206, 0
      %v357 = vsel %vm337, %v207, 0
      %v360 = vsel %vm337, %v208, 0
      %v363 = vsel %vm337, %v209, 0
      %v366 = vsel %vm337, %v210, 0
      %v369 = vsel %vm337, %v211, 0
      %v372 = vsel %vm337, %v212, 0
      %v375 = vsel %vm337, %v213, 0
      %v378 = vsel %vm337, %v214, 0
      %v381 = vsel %vm337, %v215, 0
      %v384 = vsel %vm337, %v216, 0
      %v387 = vsel %vm337, %v217, 0
      %v390 = vsel %vm337, %v218, 0
      %v393 = vsel %vm337, %v219, 0
      %v396 = vsel %vm337, %v220, 0
      %v399 = vsel %vm337, %v221, 0
      %v402 = vsel %vm337, %v222, 0
      %v405 = vsel %vm337, %v223, 0
      %v408 = vsel %vm337, %v224, 0
      %v411 = vsel %vm337, %v225, 0
      %v414 = vsel %vm337, %v226, 0
      %v417 = vsel %vm337, %v227, 0
      %v420 = vsel %vm337, %v228, 0
      %v423 = vsel %vm337, %v229, 0
      %v426 = vsel %vm337, %v230, 0
      %v429 = vsel %vm337, %v231, 0
      %v432 = vsel %vm337, %v232, 0
      %v435 = vsel %vm337, %v233, 0
      %v438 = vsel %vm337, %v234, 0
      %v441 = vsel %vm337, %v235, 0
      %v444 = vsel %vm337, %v236, 0
      %v447 = vsel %vm337, %v237, 0
      %v450 = vsel %vm337, %v238, 0
      %v453 = vsel %vm337, %v239, 0
      %v456 = vsel %vm337, %v240, 0
      %v459 = vsel %vm337, %v241, 0
      %v462 = vsel %vm337, %v242, 0
      %v465 = vsel %vm337, %v243, 0
      %v468 = vsel %vm337, %v244, 0
      %v471 = vsel %vm337, %v245, 0
      %v474 = vsel %vm337, %v246, 0
      %v477 = vsel %vm337, %v247, 0
      %v480 = vsel %vm337, %v248, 0
      %v483 = vsel %vm337, %v249, 0
      %v486 = vsel %vm337, %v250, 0
      %v489 = vsel %vm337, %v251, 0
      %v492 = vsel %vm337, %v252, 0
      %v495 = vsel %vm337, %v253, 0
      %v498 = vsel %vm337, %v254, 0
      %v501 = vsel %vm337, %v255, 0
      %v504 = vsel %vm337, %v256, 0
      %v507 = vsel %vm337, %v257, 0
      %v510 = vsel %vm337, %v258, 0
      %v513 = vsel %vm337, %v259, 0
      %v516 = vsel %vm337, %v260, 0
      %v519 = vsel %vm337, %v261, 0
      %v522 = vsel %vm337, %v262, 0
      %v525 = vsel %vm337, %v263, 0
      %v528 = vsel %vm337, %v264, 0
      %v531 = vsel %vm337, %v265, 0
      %v534 = vsel %vm337, %v266, 0
      %v537 = vsel %vm337, %v267, 0
      %v540 = vsel %vm337, %v268, 0
      %v543 = vsel %vm337, %v269, 0
      %v546 = vsel %vm337, %v270, 0
      %v549 = vsel %vm337, %v271, 0
      %v552 = vsel %vm337, %v272, 0
      %v555 = vsel %vm337, %v273, 0
      %v558 = vsel %vm337, %v274, 0
      %v561 = vsel %vm337, %v275, 0
      %v564 = vsel %vm337, %v276, 0
      %v567 = vsel %vm337, %v277, 0
      %v570 = vsel %vm337, %v278, 0
      %v573 = vsel %vm337, %v279, 0
      %v576 = vsel %vm337, %v280, 0
      %v579 = vsel %vm337, %v281, 0
      %v582 = vsel %vm337, %v282, 0
      %v585 = vsel %vm337, %v283, 0
      %v588 = vsel %vm337, %v284, 0
      %v591 = vsel %vm337, %v285, 0
      %v594 = vsel %vm337, %v286, 0
      %v597 = vsel %vm337, %v287, 0
      %v600 = vsel %vm337, %v288, 0
      %v603 = vsel %vm337, %v289, 0
      %v606 = vsel %vm337, %v290, 0
      %v609 = vsel %vm337, %v291, 0
      %v612 = vsel %vm337, %v292, 0
      %v615 = vsel %vm337, %v293, 0
      %v618 = vsel %vm337, %v294, 0
      %v621 = vsel %vm337, %v295, 0
      %v624 = vsel %vm337, %v296, 0
      %v627 = vsel %vm337, %v297, 0
      %v630 = vsel %vm337, %v298, 0
      %v633 = vsel %vm337, %v299, 0
      %v636 = vsel %vm337, %v300, 0
      %v639 = vsel %vm337, %v301, 0
      %v642 = vsel %vm337, %v302, 0
      %v645 = vsel %vm337, %v303, 0
      %v648 = vsel %vm337, %v304, 0
      %v651 = vsel %vm337, %v305, 0
      %v654 = vsel %vm337, %v306, 0
      %v657 = vsel %vm337, %v307, 0
      %v660 = vsel %vm337, %v308, 0
      %v663 = vsel %vm337, %v309, 0
      %v666 = vsel %vm337, %v310, 0
      %v669 = vsel %vm337, %v311, 0
      %v672 = vsel %vm337, %v312, 0
      %v675 = vsel %vm337, %v313, 0
      %v678 = vsel %vm337, %v314, 0
      %v681 = vsel %vm337, %v315, 0
      %v684 = vsel %vm337, %v316, 0
      %v687 = vsel %vm337, %v317, 0
      %v690 = vsel %vm337, %v318, 0
      %v693 = vsel %vm337, %v319, 0
      %v696 = vsel %vm337, %v320, 0
      %v699 = vsel %vm337, %v321, 0
      %v702 = vsel %vm337, %v322, 0
      %v705 = vsel %vm337, %v323, 0
      %v708 = vsel %vm337, %v324, 0
      %v711 = vsel %vm337, %v325, 0
      %v714 = vsel %vm337, %v326, 0
      %v717 = vsel %vm337, %v327, 0
      %v720 = vsel %vm337, %v328, 0
      %722 = vmatprep.subr.mxu0 0.0
      %723 = vmatpush1.msra.mxu0 %v329
      %724 = vmatprep.subr.mxu0 0.0
      %725 = vmatpush1.msra.mxu0 %v330
      %726 = vmatprep.subr.mxu0 0.0
      %727 = vmatpush1.msra.mxu0 %v331
      %728 = vmatprep.subr.mxu0 0.0
      %729 = vmatpush1.msra.mxu0 %v332
      %730 = vmatprep.subr.mxu0 0.0
      %731 = vmatpush1.msra.mxu0 %v333
      %732 = vmatprep.subr.mxu0 0.0
      %733 = vmatpush1.msra.mxu0 %v334
      %734 = vmatprep.subr.mxu0 0.0
      %735 = vmatpush1.msra.mxu0 %v335
      %736 = vmatprep.subr.mxu0 0.0
      %737 = vmatpush1.msra.mxu0 %v336
      %738 = vmatprep.subr.mxu0 0.0
      %739 = vmatpush1.msra.mxu0 0.0
      %740 = vmatprep.subr.mxu0 0.0
      %741 = vmatpush1.msra.mxu0 0.0
      %742 = vmatprep.subr.mxu0 0.0
      %743 = vmatpush1.msra.mxu0 0.0
      %744 = vmatprep.subr.mxu0 0.0
      %745 = vmatpush1.msra.mxu0 0.0
      %746 = vmatprep.subr.mxu0 0.0
      %747 = vmatpush1.msra.mxu0 0.0
      %748 = vmatprep.subr.mxu0 0.0
      %749 = vmatpush1.msra.mxu0 0.0
      %750 = vmatprep.subr.mxu0 0.0
      %751 = vmatpush1.msra.mxu0 0.0
      %752 = vmatprep.subr.mxu0 0.0
      %753 = vmatpush1.msra.mxu0 0.0
      %754 = vmatprep.subr.mxu0 0.0
      %755 = vmatpush1.msra.mxu0 0.0
      %756 = vmatprep.subr.mxu0 0.0
      %757 = vmatpush1.msra.mxu0 0.0
      %758 = vmatprep.subr.mxu0 0.0
      %759 = vmatpush1.msra.mxu0 0.0
      %760 = vmatprep.subr.mxu0 0.0
      %761 = vmatpush1.msra.mxu0 0.0
      %762 = vmatprep.subr.mxu0 0.0
      %763 = vmatpush1.msra.mxu0 0.0
      %764 = vmatprep.subr.mxu0 0.0
      %765 = vmatpush1.msra.mxu0 0.0
      %766 = vmatprep.subr.mxu0 0.0
      %767 = vmatpush1.msra.mxu0 0.0
      %768 = vmatprep.subr.mxu0 0.0
      %769 = vmatpush1.msra.mxu0 0.0
      %770 = vmatprep.subr.mxu0 0.0
      %771 = vmatpush1.msra.mxu0 0.0
      %772 = vmatprep.subr.mxu0 0.0
      %773 = vmatpush1.msra.mxu0 0.0
      %774 = vmatprep.subr.mxu0 0.0
      %775 = vmatpush1.msra.mxu0 0.0
      %776 = vmatprep.subr.mxu0 0.0
      %777 = vmatpush1.msra.mxu0 0.0
      %778 = vmatprep.subr.mxu0 0.0
      %779 = vmatpush1.msra.mxu0 0.0
      %780 = vmatprep.subr.mxu0 0.0
      %781 = vmatpush1.msra.mxu0 0.0
      %782 = vmatprep.subr.mxu0 0.0
      %783 = vmatpush1.msra.mxu0 0.0
      %784 = vmatprep.subr.mxu0 0.0
      %785 = vmatpush1.msra.mxu0 0.0
      %786 = vmatprep.mubr.f32.mxu0 0.0
      %787 = vmatmul.mubr.f32.gmra.mrb[0].mxu0 %v339
      %v788 = vpop.f32.mrb[0].mxu0
      %v789 = vadd.f32 0.0, %v788
      %v790 = vpop.f32.mrb[0].mxu0
      %791 = vmatprep.mubr.f32.mxu0 0.0
      %792 = vmatmul.mubr.f32.gmra.mrb[0].mxu0 %v342
      %v793 = vpop.f32.mrb[0].mxu0
      %v794 = vadd.f32 0.0, %v793
      %v795 = vpop.f32.mrb[0].mxu0
      %796 = vmatprep.mubr.f32.mxu0 0.0
      %797 = vmatmul.mubr.f32.gmra.mrb[0].mxu0 %v345
      %v798 = vpop.f32.mrb[0].mxu0
      %v799 = vadd.f32 0.0, %v798
      %v800 = vpop.f32.mrb[0].mxu0
      %801 = vmatprep.mubr.f32.mxu0 0.0
      %802 = vmatmul.mubr.f32.gmra.mrb[0].mxu0 %v348
      %v803 = vpop.f32.mrb[0].mxu0
      %v804 = vadd.f32 0.0, %v803
      %v805 = vpop.f32.mrb[0].mxu0
      %806 = vmatprep.mubr.f32.mxu0 0.0
      %807 = vmatmul.mubr.f32.gmra.mrb[0].mxu0 %v351
      %v808 = vpop.f32.mrb[0].mxu0
      %v809 = vadd.f32 0.0, %v808
      %v810 = vpop.f32.mrb[0].mxu0
      %811 = vmatprep.mubr.f32.mxu0 0.0
      %812 = vmatmul.mubr.f32.gmra.mrb[0].mxu0 %v354
      %v813 = vpop.f32.mrb[0].mxu0
      %v814 = vadd.f32 0.0, %v813
      %v815 = vpop.f32.mrb[0].mxu0
      %816 = vmatprep.mubr.f32.mxu0 0.0
      %817 = vmatmul.mubr.f32.gmra.mrb[0].mxu0 %v357
      %v818 = vpop.f32.mrb[0].mxu0
      %v819 = vadd.f32 0.0, %v818
      %v820 = vpop.f32.mrb[0].mxu0
      %821 = vmatprep.mubr.f32.mxu0 0.0
      %822 = vmatmul.mubr.f32.gmra.mrb[0].mxu0 %v360
      %v823 = vpop.f32.mrb[0].mxu0
      %v824 = vadd.f32 0.0, %v823
      %v825 = vpop.f32.mrb[0].mxu0
      %826 = vmatprep.mubr.f32.mxu0 0.0
      %827 = vmatmul.mubr.f32.gmra.mrb[0].mxu0 %v363
      %v828 = vpop.f32.mrb[0].mxu0
      %v829 = vadd.f32 0.0, %v828
      %v830 = vpop.f32.mrb[0].mxu0
      %831 = vmatprep.mubr.f32.mxu0 0.0
      %832 = vmatmul.mubr.f32.gmra.mrb[0].mxu0 %v366
      %v833 = vpop.f32.mrb[0].mxu0
      %v834 = vadd.f32 0.0, %v833
      %v835 = vpop.f32.mrb[0].mxu0
      %836 = vmatprep.mubr.f32.mxu0 0.0
      %837 = vmatmul.mubr.f32.gmra.mrb[0].mxu0 %v369
      %v838 = vpop.f32.mrb[0].mxu0
      %v839 = vadd.f32 0.0, %v838
      %v840 = vpop.f32.mrb[0].mxu0
      %841 = vmatprep.mubr.f32.mxu0 0.0
      %842 = vmatmul.mubr.f32.gmra.mrb[0].mxu0 %v372
      %v843 = vpop.f32.mrb[0].mxu0
      %v844 = vadd.f32 0.0, %v843
      %v845 = vpop.f32.mrb[0].mxu0
      %846 = vmatprep.mubr.f32.mxu0 0.0
      %847 = vmatmul.mubr.f32.gmra.mrb[0].mxu0 %v375
      %v848 = vpop.f32.mrb[0].mxu0
      %v849 = vadd.f32 0.0, %v848
      %v850 = vpop.f32.mrb[0].mxu0
      %851 = vmatprep.mubr.f32.mxu0 0.0
      %852 = vmatmul.mubr.f32.gmra.mrb[0].mxu0 %v378
      %v853 = vpop.f32.mrb[0].mxu0
      %v854 = vadd.f32 0.0, %v853
      %v855 = vpop.f32.mrb[0].mxu0
      %856 = vmatprep.mubr.f32.mxu0 0.0
      %857 = vmatmul.mubr.f32.gmra.mrb[0].mxu0 %v381
      %v858 = vpop.f32.mrb[0].mxu0
      %v859 = vadd.f32 0.0, %v858
      %v860 = vpop.f32.mrb[0].mxu0
      %861 = vmatprep.mubr.f32.mxu0 0.0
      %862 = vmatmul.mubr.f32.gmra.mrb[0].mxu0 %v384
      %v863 = vpop.f32.mrb[0].mxu0
      %v864 = vadd.f32 0.0, %v863
      %v865 = vpop.f32.mrb[0].mxu0
      %866 = vmatprep.mubr.f32.mxu0 0.0
      %867 = vmatmul.mubr.f32.gmra.mrb[0].mxu0 %v387
      %v868 = vpop.f32.mrb[0].mxu0
      %v869 = vadd.f32 0.0, %v868
      %v870 = vpop.f32.mrb[0].mxu0
      %871 = vmatprep.mubr.f32.mxu0 0.0
      %872 = vmatmul.mubr.f32.gmra.mrb[0].mxu0 %v390
      %v873 = vpop.f32.mrb[0].mxu0
      %v874 = vadd.f32 0.0, %v873
      %v875 = vpop.f32.mrb[0].mxu0
      %876 = vmatprep.mubr.f32.mxu0 0.0
      %877 = vmatmul.mubr.f32.gmra.mrb[0].mxu0 %v393
      %v878 = vpop.f32.mrb[0].mxu0
      %v879 = vadd.f32 0.0, %v878
      %v880 = vpop.f32.mrb[0].mxu0
      %881 = vmatprep.mubr.f32.mxu0 0.0
      %882 = vmatmul.mubr.f32.gmra.mrb[0].mxu0 %v396
      %v883 = vpop.f32.mrb[0].mxu0
      %v884 = vadd.f32 0.0, %v883
      %v885 = vpop.f32.mrb[0].mxu0
      %886 = vmatprep.mubr.f32.mxu0 0.0
      %887 = vmatmul.mubr.f32.gmra.mrb[0].mxu0 %v399
      %v888 = vpop.f32.mrb[0].mxu0
      %v889 = vadd.f32 0.0, %v888
      %v890 = vpop.f32.mrb[0].mxu0
      %891 = vmatprep.mubr.f32.mxu0 0.0
      %892 = vmatmul.mubr.f32.gmra.mrb[0].mxu0 %v402
      %v893 = vpop.f32.mrb[0].mxu0
      %v894 = vadd.f32 0.0, %v893
      %v895 = vpop.f32.mrb[0].mxu0
      %896 = vmatprep.mubr.f32.mxu0 0.0
      %897 = vmatmul.mubr.f32.gmra.mrb[0].mxu0 %v405
      %v898 = vpop.f32.mrb[0].mxu0
      %v899 = vadd.f32 0.0, %v898
      %v900 = vpop.f32.mrb[0].mxu0
      %901 = vmatprep.mubr.f32.mxu0 0.0
      %902 = vmatmul.mubr.f32.gmra.mrb[0].mxu0 %v408
      %v903 = vpop.f32.mrb[0].mxu0
      %v904 = vadd.f32 0.0, %v903
      %v905 = vpop.f32.mrb[0].mxu0
      %906 = vmatprep.mubr.f32.mxu0 0.0
      %907 = vmatmul.mubr.f32.gmra.mrb[0].mxu0 %v411
      %v908 = vpop.f32.mrb[0].mxu0
      %v909 = vadd.f32 0.0, %v908
      %v910 = vpop.f32.mrb[0].mxu0
      %911 = vmatprep.mubr.f32.mxu0 0.0
      %912 = vmatmul.mubr.f32.gmra.mrb[0].mxu0 %v414
      %v913 = vpop.f32.mrb[0].mxu0
      %v914 = vadd.f32 0.0, %v913
      %v915 = vpop.f32.mrb[0].mxu0
      %916 = vmatprep.mubr.f32.mxu0 0.0
      %917 = vmatmul.mubr.f32.gmra.mrb[0].mxu0 %v417
      %v918 = vpop.f32.mrb[0].mxu0
      %v919 = vadd.f32 0.0, %v918
      %v920 = vpop.f32.mrb[0].mxu0
      %921 = vmatprep.mubr.f32.mxu0 0.0
      %922 = vmatmul.mubr.f32.gmra.mrb[0].mxu0 %v420
      %v923 = vpop.f32.mrb[0].mxu0
      %v924 = vadd.f32 0.0, %v923
      %v925 = vpop.f32.mrb[0].mxu0
      %926 = vmatprep.mubr.f32.mxu0 0.0
      %927 = vmatmul.mubr.f32.gmra.mrb[0].mxu0 %v423
      %v928 = vpop.f32.mrb[0].mxu0
      %v929 = vadd.f32 0.0, %v928
      %v930 = vpop.f32.mrb[0].mxu0
      %931 = vmatprep.mubr.f32.mxu0 0.0
      %932 = vmatmul.mubr.f32.gmra.mrb[0].mxu0 %v426
      %v933 = vpop.f32.mrb[0].mxu0
      %v934 = vadd.f32 0.0, %v933
      %v935 = vpop.f32.mrb[0].mxu0
      %936 = vmatprep.mubr.f32.mxu0 0.0
      %937 = vmatmul.mubr.f32.gmra.mrb[0].mxu0 %v429
      %v938 = vpop.f32.mrb[0].mxu0
      %v939 = vadd.f32 0.0, %v938
      %v940 = vpop.f32.mrb[0].mxu0
      %941 = vmatprep.mubr.f32.mxu0 0.0
      %942 = vmatmul.mubr.f32.gmra.mrb[0].mxu0 %v432
      %v943 = vpop.f32.mrb[0].mxu0
      %v944 = vadd.f32 0.0, %v943
      %v945 = vpop.f32.mrb[0].mxu0
      %946 = vmatprep.mubr.f32.mxu0 0.0
      %947 = vmatmul.mubr.f32.gmra.mrb[0].mxu0 %v435
      %v948 = vpop.f32.mrb[0].mxu0
      %v949 = vadd.f32 0.0, %v948
      %v950 = vpop.f32.mrb[0].mxu0
      %951 = vmatprep.mubr.f32.mxu0 0.0
      %952 = vmatmul.mubr.f32.gmra.mrb[0].mxu0 %v438
      %v953 = vpop.f32.mrb[0].mxu0
      %v954 = vadd.f32 0.0, %v953
      %v955 = vpop.f32.mrb[0].mxu0
      %956 = vmatprep.mubr.f32.mxu0 0.0
      %957 = vmatmul.mubr.f32.gmra.mrb[0].mxu0 %v441
      %v958 = vpop.f32.mrb[0].mxu0
      %v959 = vadd.f32 0.0, %v958
      %v960 = vpop.f32.mrb[0].mxu0
      %961 = vmatprep.mubr.f32.mxu0 0.0
      %962 = vmatmul.mubr.f32.gmra.mrb[0].mxu0 %v444
      %v963 = vpop.f32.mrb[0].mxu0
      %v964 = vadd.f32 0.0, %v963
      %v965 = vpop.f32.mrb[0].mxu0
      %966 = vmatprep.mubr.f32.mxu0 0.0
      %967 = vmatmul.mubr.f32.gmra.mrb[0].mxu0 %v447
      %v968 = vpop.f32.mrb[0].mxu0
      %v969 = vadd.f32 0.0, %v968
      %v970 = vpop.f32.mrb[0].mxu0
      %971 = vmatprep.mubr.f32.mxu0 0.0
      %972 = vmatmul.mubr.f32.gmra.mrb[0].mxu0 %v450
      %v973 = vpop.f32.mrb[0].mxu0
      %v974 = vadd.f32 0.0, %v973
      %v975 = vpop.f32.mrb[0].mxu0
      %976 = vmatprep.mubr.f32.mxu0 0.0
      %977 = vmatmul.mubr.f32.gmra.mrb[0].mxu0 %v453
      %v978 = vpop.f32.mrb[0].mxu0
      %v979 = vadd.f32 0.0, %v978
      %v980 = vpop.f32.mrb[0].mxu0
      %981 = vmatprep.mubr.f32.mxu0 0.0
      %982 = vmatmul.mubr.f32.gmra.mrb[0].mxu0 %v456
      %v983 = vpop.f32.mrb[0].mxu0
      %v984 = vadd.f32 0.0, %v983
      %v985 = vpop.f32.mrb[0].mxu0
      %986 = vmatprep.mubr.f32.mxu0 0.0
      %987 = vmatmul.mubr.f32.gmra.mrb[0].mxu0 %v459
      %v988 = vpop.f32.mrb[0].mxu0
      %v989 = vadd.f32 0.0, %v988
      %v990 = vpop.f32.mrb[0].mxu0
      %991 = vmatprep.mubr.f32.mxu0 0.0
      %992 = vmatmul.mubr.f32.gmra.mrb[0].mxu0 %v462
      %v993 = vpop.f32.mrb[0].mxu0
      %v994 = vadd.f32 0.0, %v993
      %v995 = vpop.f32.mrb[0].mxu0
      %996 = vmatprep.mubr.f32.mxu0 0.0
      %997 = vmatmul.mubr.f32.gmra.mrb[0].mxu0 %v465
      %v998 = vpop.f32.mrb[0].mxu0
      %v999 = vadd.f32 0.0, %v998
      %v1000 = vpop.f32.mrb[0].mxu0
      %1001 = vmatprep.mubr.f32.mxu0 0.0
      %1002 = vmatmul.mubr.f32.gmra.mrb[0].mxu0 %v468
      %v1003 = vpop.f32.mrb[0].mxu0
      %v1004 = vadd.f32 0.0, %v1003
      %v1005 = vpop.f32.mrb[0].mxu0
      %1006 = vmatprep.mubr.f32.mxu0 0.0
      %1007 = vmatmul.mubr.f32.gmra.mrb[0].mxu0 %v471
      %v1008 = vpop.f32.mrb[0].mxu0
      %v1009 = vadd.f32 0.0, %v1008
      %v1010 = vpop.f32.mrb[0].mxu0
      %1011 = vmatprep.mubr.f32.mxu0 0.0
      %1012 = vmatmul.mubr.f32.gmra.mrb[0].mxu0 %v474
      %v1013 = vpop.f32.mrb[0].mxu0
      %v1014 = vadd.f32 0.0, %v1013
      %v1015 = vpop.f32.mrb[0].mxu0
      %1016 = vmatprep.mubr.f32.mxu0 0.0
      %1017 = vmatmul.mubr.f32.gmra.mrb[0].mxu0 %v477
      %v1018 = vpop.f32.mrb[0].mxu0
      %v1019 = vadd.f32 0.0, %v1018
      %v1020 = vpop.f32.mrb[0].mxu0
      %1021 = vmatprep.mubr.f32.mxu0 0.0
      %1022 = vmatmul.mubr.f32.gmra.mrb[0].mxu0 %v480
      %v1023 = vpop.f32.mrb[0].mxu0
      %v1024 = vadd.f32 0.0, %v1023
      %v1025 = vpop.f32.mrb[0].mxu0
      %1026 = vmatprep.mubr.f32.mxu0 0.0
      %1027 = vmatmul.mubr.f32.gmra.mrb[0].mxu0 %v483
      %v1028 = vpop.f32.mrb[0].mxu0
      %v1029 = vadd.f32 0.0, %v1028
      %v1030 = vpop.f32.mrb[0].mxu0
      %1031 = vmatprep.mubr.f32.mxu0 0.0
      %1032 = vmatmul.mubr.f32.gmra.mrb[0].mxu0 %v486
      %v1033 = vpop.f32.mrb[0].mxu0
      %v1034 = vadd.f32 0.0, %v1033
      %v1035 = vpop.f32.mrb[0].mxu0
      %1036 = vmatprep.mubr.f32.mxu0 0.0
      %1037 = vmatmul.mubr.f32.gmra.mrb[0].mxu0 %v489
      %v1038 = vpop.f32.mrb[0].mxu0
      %v1039 = vadd.f32 0.0, %v1038
      %v1040 = vpop.f32.mrb[0].mxu0
      %1041 = vmatprep.mubr.f32.mxu0 0.0
      %1042 = vmatmul.mubr.f32.gmra.mrb[0].mxu0 %v492
      %v1043 = vpop.f32.mrb[0].mxu0
      %v1044 = vadd.f32 0.0, %v1043
      %v1045 = vpop.f32.mrb[0].mxu0
      %1046 = vmatprep.mubr.f32.mxu0 0.0
      %1047 = vmatmul.mubr.f32.gmra.mrb[0].mxu0 %v495
      %v1048 = vpop.f32.mrb[0].mxu0
      %v1049 = vadd.f32 0.0, %v1048
      %v1050 = vpop.f32.mrb[0].mxu0
      %1051 = vmatprep.mubr.f32.mxu0 0.0
      %1052 = vmatmul.mubr.f32.gmra.mrb[0].mxu0 %v498
      %v1053 = vpop.f32.mrb[0].mxu0
      %v1054 = vadd.f32 0.0, %v1053
      %v1055 = vpop.f32.mrb[0].mxu0
      %1056 = vmatprep.mubr.f32.mxu0 0.0
      %1057 = vmatmul.mubr.f32.gmra.mrb[0].mxu0 %v501
      %v1058 = vpop.f32.mrb[0].mxu0
      %v1059 = vadd.f32 0.0, %v1058
      %v1060 = vpop.f32.mrb[0].mxu0
      %1061 = vmatprep.mubr.f32.mxu0 0.0
      %1062 = vmatmul.mubr.f32.gmra.mrb[0].mxu0 %v504
      %v1063 = vpop.f32.mrb[0].mxu0
      %v1064 = vadd.f32 0.0, %v1063
      %v1065 = vpop.f32.mrb[0].mxu0
      %1066 = vmatprep.mubr.f32.mxu0 0.0
      %1067 = vmatmul.mubr.f32.gmra.mrb[0].mxu0 %v507
      %v1068 = vpop.f32.mrb[0].mxu0
      %v1069 = vadd.f32 0.0, %v1068
      %v1070 = vpop.f32.mrb[0].mxu0
      %1071 = vmatprep.mubr.f32.mxu0 0.0
      %1072 = vmatmul.mubr.f32.gmra.mrb[0].mxu0 %v510
      %v1073 = vpop.f32.mrb[0].mxu0
      %v1074 = vadd.f32 0.0, %v1073
      %v1075 = vpop.f32.mrb[0].mxu0
      %1076 = vmatprep.mubr.f32.mxu0 0.0
      %1077 = vmatmul.mubr.f32.gmra.mrb[0].mxu0 %v513
      %v1078 = vpop.f32.mrb[0].mxu0
      %v1079 = vadd.f32 0.0, %v1078
      %v1080 = vpop.f32.mrb[0].mxu0
      %1081 = vmatprep.mubr.f32.mxu0 0.0
      %1082 = vmatmul.mubr.f32.gmra.mrb[0].mxu0 %v516
      %v1083 = vpop.f32.mrb[0].mxu0
      %v1084 = vadd.f32 0.0, %v1083
      %v1085 = vpop.f32.mrb[0].mxu0
      %1086 = vmatprep.mubr.f32.mxu0 0.0
      %1087 = vmatmul.mubr.f32.gmra.mrb[0].mxu0 %v519
      %v1088 = vpop.f32.mrb[0].mxu0
      %v1089 = vadd.f32 0.0, %v1088
      %v1090 = vpop.f32.mrb[0].mxu0
      %1091 = vmatprep.mubr.f32.mxu0 0.0
      %1092 = vmatmul.mubr.f32.gmra.mrb[0].mxu0 %v522
      %v1093 = vpop.f32.mrb[0].mxu0
      %v1094 = vadd.f32 0.0, %v1093
      %v1095 = vpop.f32.mrb[0].mxu0
      %1096 = vmatprep.mubr.f32.mxu0 0.0
      %1097 = vmatmul.mubr.f32.gmra.mrb[0].mxu0 %v525
      %v1098 = vpop.f32.mrb[0].mxu0
      %v1099 = vadd.f32 0.0, %v1098
      %v1100 = vpop.f32.mrb[0].mxu0
      %1101 = vmatprep.mubr.f32.mxu0 0.0
      %1102 = vmatmul.mubr.f32.gmra.mrb[0].mxu0 %v528
      %v1103 = vpop.f32.mrb[0].mxu0
      %v1104 = vadd.f32 0.0, %v1103
      %v1105 = vpop.f32.mrb[0].mxu0
      %1106 = vmatprep.mubr.f32.mxu0 0.0
      %1107 = vmatmul.mubr.f32.gmra.mrb[0].mxu0 %v531
      %v1108 = vpop.f32.mrb[0].mxu0
      %v1109 = vadd.f32 0.0, %v1108
      %v1110 = vpop.f32.mrb[0].mxu0
      %1111 = vmatprep.mubr.f32.mxu0 0.0
      %1112 = vmatmul.mubr.f32.gmra.mrb[0].mxu0 %v534
      %v1113 = vpop.f32.mrb[0].mxu0
      %v1114 = vadd.f32 0.0, %v1113
      %v1115 = vpop.f32.mrb[0].mxu0
      %1116 = vmatprep.mubr.f32.mxu0 0.0
      %1117 = vmatmul.mubr.f32.gmra.mrb[0].mxu0 %v537
      %v1118 = vpop.f32.mrb[0].mxu0
      %v1119 = vadd.f32 0.0, %v1118
      %v1120 = vpop.f32.mrb[0].mxu0
      %1121 = vmatprep.mubr.f32.mxu0 0.0
      %1122 = vmatmul.mubr.f32.gmra.mrb[0].mxu0 %v540
      %v1123 = vpop.f32.mrb[0].mxu0
      %v1124 = vadd.f32 0.0, %v1123
      %v1125 = vpop.f32.mrb[0].mxu0
      %1126 = vmatprep.mubr.f32.mxu0 0.0
      %1127 = vmatmul.mubr.f32.gmra.mrb[0].mxu0 %v543
      %v1128 = vpop.f32.mrb[0].mxu0
      %v1129 = vadd.f32 0.0, %v1128
      %v1130 = vpop.f32.mrb[0].mxu0
      %1131 = vmatprep.mubr.f32.mxu0 0.0
      %1132 = vmatmul.mubr.f32.gmra.mrb[0].mxu0 %v546
      %v1133 = vpop.f32.mrb[0].mxu0
      %v1134 = vadd.f32 0.0, %v1133
      %v1135 = vpop.f32.mrb[0].mxu0
      %1136 = vmatprep.mubr.f32.mxu0 0.0
      %1137 = vmatmul.mubr.f32.gmra.mrb[0].mxu0 %v549
      %v1138 = vpop.f32.mrb[0].mxu0
      %v1139 = vadd.f32 0.0, %v1138
      %v1140 = vpop.f32.mrb[0].mxu0
      %1141 = vmatprep.mubr.f32.mxu0 0.0
      %1142 = vmatmul.mubr.f32.gmra.mrb[0].mxu0 %v552
      %v1143 = vpop.f32.mrb[0].mxu0
      %v1144 = vadd.f32 0.0, %v1143
      %v1145 = vpop.f32.mrb[0].mxu0
      %1146 = vmatprep.mubr.f32.mxu0 0.0
      %1147 = vmatmul.mubr.f32.gmra.mrb[0].mxu0 %v555
      %v1148 = vpop.f32.mrb[0].mxu0
      %v1149 = vadd.f32 0.0, %v1148
      %v1150 = vpop.f32.mrb[0].mxu0
      %1151 = vmatprep.mubr.f32.mxu0 0.0
      %1152 = vmatmul.mubr.f32.gmra.mrb[0].mxu0 %v558
      %v1153 = vpop.f32.mrb[0].mxu0
      %v1154 = vadd.f32 0.0, %v1153
      %v1155 = vpop.f32.mrb[0].mxu0
      %1156 = vmatprep.mubr.f32.mxu0 0.0
      %1157 = vmatmul.mubr.f32.gmra.mrb[0].mxu0 %v561
      %v1158 = vpop.f32.mrb[0].mxu0
      %v1159 = vadd.f32 0.0, %v1158
      %v1160 = vpop.f32.mrb[0].mxu0
      %1161 = vmatprep.mubr.f32.mxu0 0.0
      %1162 = vmatmul.mubr.f32.gmra.mrb[0].mxu0 %v564
      %v1163 = vpop.f32.mrb[0].mxu0
      %v1164 = vadd.f32 0.0, %v1163
      %v1165 = vpop.f32.mrb[0].mxu0
      %1166 = vmatprep.mubr.f32.mxu0 0.0
      %1167 = vmatmul.mubr.f32.gmra.mrb[0].mxu0 %v567
      %v1168 = vpop.f32.mrb[0].mxu0
      %v1169 = vadd.f32 0.0, %v1168
      %v1170 = vpop.f32.mrb[0].mxu0
      %1171 = vmatprep.mubr.f32.mxu0 0.0
      %1172 = vmatmul.mubr.f32.gmra.mrb[0].mxu0 %v570
      %v1173 = vpop.f32.mrb[0].mxu0
      %v1174 = vadd.f32 0.0, %v1173
      %v1175 = vpop.f32.mrb[0].mxu0
      %1176 = vmatprep.mubr.f32.mxu0 0.0
      %1177 = vmatmul.mubr.f32.gmra.mrb[0].mxu0 %v573
      %v1178 = vpop.f32.mrb[0].mxu0
      %v1179 = vadd.f32 0.0, %v1178
      %v1180 = vpop.f32.mrb[0].mxu0
      %1181 = vmatprep.mubr.f32.mxu0 0.0
      %1182 = vmatmul.mubr.f32.gmra.mrb[0].mxu0 %v576
      %v1183 = vpop.f32.mrb[0].mxu0
      %v1184 = vadd.f32 0.0, %v1183
      %v1185 = vpop.f32.mrb[0].mxu0
      %1186 = vmatprep.mubr.f32.mxu0 0.0
      %1187 = vmatmul.mubr.f32.gmra.mrb[0].mxu0 %v579
      %v1188 = vpop.f32.mrb[0].mxu0
      %v1189 = vadd.f32 0.0, %v1188
      %v1190 = vpop.f32.mrb[0].mxu0
      %1191 = vmatprep.mubr.f32.mxu0 0.0
      %1192 = vmatmul.mubr.f32.gmra.mrb[0].mxu0 %v582
      %v1193 = vpop.f32.mrb[0].mxu0
      %v1194 = vadd.f32 0.0, %v1193
      %v1195 = vpop.f32.mrb[0].mxu0
      %1196 = vmatprep.mubr.f32.mxu0 0.0
      %1197 = vmatmul.mubr.f32.gmra.mrb[0].mxu0 %v585
      %v1198 = vpop.f32.mrb[0].mxu0
      %v1199 = vadd.f32 0.0, %v1198
      %v1200 = vpop.f32.mrb[0].mxu0
      %1201 = vmatprep.mubr.f32.mxu0 0.0
      %1202 = vmatmul.mubr.f32.gmra.mrb[0].mxu0 %v588
      %v1203 = vpop.f32.mrb[0].mxu0
      %v1204 = vadd.f32 0.0, %v1203
      %v1205 = vpop.f32.mrb[0].mxu0
      %1206 = vmatprep.mubr.f32.mxu0 0.0
      %1207 = vmatmul.mubr.f32.gmra.mrb[0].mxu0 %v591
      %v1208 = vpop.f32.mrb[0].mxu0
      %v1209 = vadd.f32 0.0, %v1208
      %v1210 = vpop.f32.mrb[0].mxu0
      %1211 = vmatprep.mubr.f32.mxu0 0.0
      %1212 = vmatmul.mubr.f32.gmra.mrb[0].mxu0 %v594
      %v1213 = vpop.f32.mrb[0].mxu0
      %v1214 = vadd.f32 0.0, %v1213
      %v1215 = vpop.f32.mrb[0].mxu0
      %1216 = vmatprep.mubr.f32.mxu0 0.0
      %1217 = vmatmul.mubr.f32.gmra.mrb[0].mxu0 %v597
      %v1218 = vpop.f32.mrb[0].mxu0
      %v1219 = vadd.f32 0.0, %v1218
      %v1220 = vpop.f32.mrb[0].mxu0
      %1221 = vmatprep.mubr.f32.mxu0 0.0
      %1222 = vmatmul.mubr.f32.gmra.mrb[0].mxu0 %v600
      %v1223 = vpop.f32.mrb[0].mxu0
      %v1224 = vadd.f32 0.0, %v1223
      %v1225 = vpop.f32.mrb[0].mxu0
      %1226 = vmatprep.mubr.f32.mxu0 0.0
      %1227 = vmatmul.mubr.f32.gmra.mrb[0].mxu0 %v603
      %v1228 = vpop.f32.mrb[0].mxu0
      %v1229 = vadd.f32 0.0, %v1228
      %v1230 = vpop.f32.mrb[0].mxu0
      %1231 = vmatprep.mubr.f32.mxu0 0.0
      %1232 = vmatmul.mubr.f32.gmra.mrb[0].mxu0 %v606
      %v1233 = vpop.f32.mrb[0].mxu0
      %v1234 = vadd.f32 0.0, %v1233
      %v1235 = vpop.f32.mrb[0].mxu0
      %1236 = vmatprep.mubr.f32.mxu0 0.0
      %1237 = vmatmul.mubr.f32.gmra.mrb[0].mxu0 %v609
      %v1238 = vpop.f32.mrb[0].mxu0
      %v1239 = vadd.f32 0.0, %v1238
      %v1240 = vpop.f32.mrb[0].mxu0
      %1241 = vmatprep.mubr.f32.mxu0 0.0
      %1242 = vmatmul.mubr.f32.gmra.mrb[0].mxu0 %v612
      %v1243 = vpop.f32.mrb[0].mxu0
      %v1244 = vadd.f32 0.0, %v1243
      %v1245 = vpop.f32.mrb[0].mxu0
      %1246 = vmatprep.mubr.f32.mxu0 0.0
      %1247 = vmatmul.mubr.f32.gmra.mrb[0].mxu0 %v615
      %v1248 = vpop.f32.mrb[0].mxu0
      %v1249 = vadd.f32 0.0, %v1248
      %v1250 = vpop.f32.mrb[0].mxu0
      %1251 = vmatprep.mubr.f32.mxu0 0.0
      %1252 = vmatmul.mubr.f32.gmra.mrb[0].mxu0 %v618
      %v1253 = vpop.f32.mrb[0].mxu0
      %v1254 = vadd.f32 0.0, %v1253
      %v1255 = vpop.f32.mrb[0].mxu0
      %1256 = vmatprep.mubr.f32.mxu0 0.0
      %1257 = vmatmul.mubr.f32.gmra.mrb[0].mxu0 %v621
      %v1258 = vpop.f32.mrb[0].mxu0
      %v1259 = vadd.f32 0.0, %v1258
      %v1260 = vpop.f32.mrb[0].mxu0
      %1261 = vmatprep.mubr.f32.mxu0 0.0
      %1262 = vmatmul.mubr.f32.gmra.mrb[0].mxu0 %v624
      %v1263 = vpop.f32.mrb[0].mxu0
      %v1264 = vadd.f32 0.0, %v1263
      %v1265 = vpop.f32.mrb[0].mxu0
      %1266 = vmatprep.mubr.f32.mxu0 0.0
      %1267 = vmatmul.mubr.f32.gmra.mrb[0].mxu0 %v627
      %v1268 = vpop.f32.mrb[0].mxu0
      %v1269 = vadd.f32 0.0, %v1268
      %v1270 = vpop.f32.mrb[0].mxu0
      %1271 = vmatprep.mubr.f32.mxu0 0.0
      %1272 = vmatmul.mubr.f32.gmra.mrb[0].mxu0 %v630
      %v1273 = vpop.f32.mrb[0].mxu0
      %v1274 = vadd.f32 0.0, %v1273
      %v1275 = vpop.f32.mrb[0].mxu0
      %1276 = vmatprep.mubr.f32.mxu0 0.0
      %1277 = vmatmul.mubr.f32.gmra.mrb[0].mxu0 %v633
      %v1278 = vpop.f32.mrb[0].mxu0
      %v1279 = vadd.f32 0.0, %v1278
      %v1280 = vpop.f32.mrb[0].mxu0
      %1281 = vmatprep.mubr.f32.mxu0 0.0
      %1282 = vmatmul.mubr.f32.gmra.mrb[0].mxu0 %v636
      %v1283 = vpop.f32.mrb[0].mxu0
      %v1284 = vadd.f32 0.0, %v1283
      %v1285 = vpop.f32.mrb[0].mxu0
      %1286 = vmatprep.mubr.f32.mxu0 0.0
      %1287 = vmatmul.mubr.f32.gmra.mrb[0].mxu0 %v639
      %v1288 = vpop.f32.mrb[0].mxu0
      %v1289 = vadd.f32 0.0, %v1288
      %v1290 = vpop.f32.mrb[0].mxu0
      %1291 = vmatprep.mubr.f32.mxu0 0.0
      %1292 = vmatmul.mubr.f32.gmra.mrb[0].mxu0 %v642
      %v1293 = vpop.f32.mrb[0].mxu0
      %v1294 = vadd.f32 0.0, %v1293
      %v1295 = vpop.f32.mrb[0].mxu0
      %1296 = vmatprep.mubr.f32.mxu0 0.0
      %1297 = vmatmul.mubr.f32.gmra.mrb[0].mxu0 %v645
      %v1298 = vpop.f32.mrb[0].mxu0
      %v1299 = vadd.f32 0.0, %v1298
      %v1300 = vpop.f32.mrb[0].mxu0
      %1301 = vmatprep.mubr.f32.mxu0 0.0
      %1302 = vmatmul.mubr.f32.gmra.mrb[0].mxu0 %v648
      %v1303 = vpop.f32.mrb[0].mxu0
      %v1304 = vadd.f32 0.0, %v1303
      %v1305 = vpop.f32.mrb[0].mxu0
      %1306 = vmatprep.mubr.f32.mxu0 0.0
      %1307 = vmatmul.mubr.f32.gmra.mrb[0].mxu0 %v651
      %v1308 = vpop.f32.mrb[0].mxu0
      %v1309 = vadd.f32 0.0, %v1308
      %v1310 = vpop.f32.mrb[0].mxu0
      %1311 = vmatprep.mubr.f32.mxu0 0.0
      %1312 = vmatmul.mubr.f32.gmra.mrb[0].mxu0 %v654
      %v1313 = vpop.f32.mrb[0].mxu0
      %v1314 = vadd.f32 0.0, %v1313
      %v1315 = vpop.f32.mrb[0].mxu0
      %1316 = vmatprep.mubr.f32.mxu0 0.0
      %1317 = vmatmul.mubr.f32.gmra.mrb[0].mxu0 %v657
      %v1318 = vpop.f32.mrb[0].mxu0
      %v1319 = vadd.f32 0.0, %v1318
      %v1320 = vpop.f32.mrb[0].mxu0
      %1321 = vmatprep.mubr.f32.mxu0 0.0
      %1322 = vmatmul.mubr.f32.gmra.mrb[0].mxu0 %v660
      %v1323 = vpop.f32.mrb[0].mxu0
      %v1324 = vadd.f32 0.0, %v1323
      %v1325 = vpop.f32.mrb[0].mxu0
      %1326 = vmatprep.mubr.f32.mxu0 0.0
      %1327 = vmatmul.mubr.f32.gmra.mrb[0].mxu0 %v663
      %v1328 = vpop.f32.mrb[0].mxu0
      %v1329 = vadd.f32 0.0, %v1328
      %v1330 = vpop.f32.mrb[0].mxu0
      %1331 = vmatprep.mubr.f32.mxu0 0.0
      %1332 = vmatmul.mubr.f32.gmra.mrb[0].mxu0 %v666
      %v1333 = vpop.f32.mrb[0].mxu0
      %v1334 = vadd.f32 0.0, %v1333
      %v1335 = vpop.f32.mrb[0].mxu0
      %1336 = vmatprep.mubr.f32.mxu0 0.0
      %1337 = vmatmul.mubr.f32.gmra.mrb[0].mxu0 %v669
      %v1338 = vpop.f32.mrb[0].mxu0
      %v1339 = vadd.f32 0.0, %v1338
      %v1340 = vpop.f32.mrb[0].mxu0
      %1341 = vmatprep.mubr.f32.mxu0 0.0
      %1342 = vmatmul.mubr.f32.gmra.mrb[0].mxu0 %v672
      %v1343 = vpop.f32.mrb[0].mxu0
      %v1344 = vadd.f32 0.0, %v1343
      %v1345 = vpop.f32.mrb[0].mxu0
      %1346 = vmatprep.mubr.f32.mxu0 0.0
      %1347 = vmatmul.mubr.f32.gmra.mrb[0].mxu0 %v675
      %v1348 = vpop.f32.mrb[0].mxu0
      %v1349 = vadd.f32 0.0, %v1348
      %v1350 = vpop.f32.mrb[0].mxu0
      %1351 = vmatprep.mubr.f32.mxu0 0.0
      %1352 = vmatmul.mubr.f32.gmra.mrb[0].mxu0 %v678
      %v1353 = vpop.f32.mrb[0].mxu0
      %v1354 = vadd.f32 0.0, %v1353
      %v1355 = vpop.f32.mrb[0].mxu0
      %1356 = vmatprep.mubr.f32.mxu0 0.0
      %1357 = vmatmul.mubr.f32.gmra.mrb[0].mxu0 %v681
      %v1358 = vpop.f32.mrb[0].mxu0
      %v1359 = vadd.f32 0.0, %v1358
      %v1360 = vpop.f32.mrb[0].mxu0
      %1361 = vmatprep.mubr.f32.mxu0 0.0
      %1362 = vmatmul.mubr.f32.gmra.mrb[0].mxu0 %v684
      %v1363 = vpop.f32.mrb[0].mxu0
      %v1364 = vadd.f32 0.0, %v1363
      %v1365 = vpop.f32.mrb[0].mxu0
      %1366 = vmatprep.mubr.f32.mxu0 0.0
      %1367 = vmatmul.mubr.f32.gmra.mrb[0].mxu0 %v687
      %v1368 = vpop.f32.mrb[0].mxu0
      %v1369 = vadd.f32 0.0, %v1368
      %v1370 = vpop.f32.mrb[0].mxu0
      %1371 = vmatprep.mubr.f32.mxu0 0.0
      %1372 = vmatmul.mubr.f32.gmra.mrb[0].mxu0 %v690
      %v1373 = vpop.f32.mrb[0].mxu0
      %v1374 = vadd.f32 0.0, %v1373
      %v1375 = vpop.f32.mrb[0].mxu0
      %1376 = vmatprep.mubr.f32.mxu0 0.0
      %1377 = vmatmul.mubr.f32.gmra.mrb[0].mxu0 %v693
      %v1378 = vpop.f32.mrb[0].mxu0
      %v1379 = vadd.f32 0.0, %v1378
      %v1380 = vpop.f32.mrb[0].mxu0
      %1381 = vmatprep.mubr.f32.mxu0 0.0
      %1382 = vmatmul.mubr.f32.gmra.mrb[0].mxu0 %v696
      %v1383 = vpop.f32.mrb[0].mxu0
      %v1384 = vadd.f32 0.0, %v1383
      %v1385 = vpop.f32.mrb[0].mxu0
      %1386 = vmatprep.mubr.f32.mxu0 0.0
      %1387 = vmatmul.mubr.f32.gmra.mrb[0].mxu0 %v699
      %v1388 = vpop.f32.mrb[0].mxu0
      %v1389 = vadd.f32 0.0, %v1388
      %v1390 = vpop.f32.mrb[0].mxu0
      %1391 = vmatprep.mubr.f32.mxu0 0.0
      %1392 = vmatmul.mubr.f32.gmra.mrb[0].mxu0 %v702
      %v1393 = vpop.f32.mrb[0].mxu0
      %v1394 = vadd.f32 0.0, %v1393
      %v1395 = vpop.f32.mrb[0].mxu0
      %1396 = vmatprep.mubr.f32.mxu0 0.0
      %1397 = vmatmul.mubr.f32.gmra.mrb[0].mxu0 %v705
      %v1398 = vpop.f32.mrb[0].mxu0
      %v1399 = vadd.f32 0.0, %v1398
      %v1400 = vpop.f32.mrb[0].mxu0
      %1401 = vmatprep.mubr.f32.mxu0 0.0
      %1402 = vmatmul.mubr.f32.gmra.mrb[0].mxu0 %v708
      %v1403 = vpop.f32.mrb[0].mxu0
      %v1404 = vadd.f32 0.0, %v1403
      %v1405 = vpop.f32.mrb[0].mxu0
      %1406 = vmatprep.mubr.f32.mxu0 0.0
      %1407 = vmatmul.mubr.f32.gmra.mrb[0].mxu0 %v711
      %v1408 = vpop.f32.mrb[0].mxu0
      %v1409 = vadd.f32 0.0, %v1408
      %v1410 = vpop.f32.mrb[0].mxu0
      %1411 = vmatprep.mubr.f32.mxu0 0.0
      %1412 = vmatmul.mubr.f32.gmra.mrb[0].mxu0 %v714
      %v1413 = vpop.f32.mrb[0].mxu0
      %v1414 = vadd.f32 0.0, %v1413
      %v1415 = vpop.f32.mrb[0].mxu0
      %1416 = vmatprep.mubr.f32.mxu0 0.0
      %1417 = vmatmul.mubr.f32.gmra.mrb[0].mxu0 %v717
      %v1418 = vpop.f32.mrb[0].mxu0
      %v1419 = vadd.f32 0.0, %v1418
      %v1420 = vpop.f32.mrb[0].mxu0
      %1421 = vmatprep.mubr.f32.mxu0 0.0
      %1422 = vmatmul.mubr.f32.gmra.mrb[0].mxu0 %v720
      %v1423 = vpop.f32.mrb[0].mxu0
      %v1424 = vadd.f32 0.0, %v1423
      %v1425 = vpop.f32.mrb[0].mxu0
      %1426 = vdwg.mxu0
      %v1427 = vld [vmem:[%s2] sm:$0x1]
      %v1429 = vlaneseq
      %v1430 = vshrl.u32 %v1429, 7
      %v1431 = vsub.s32 0, %v1430
      %v1432 = vrot.slane %v1427, %v1431
      %v1434 = vmul.f32 %v789, %v1432
      %v1435 = vmul.f32 %v794, %v1432
      %v1436 = vmul.f32 %v799, %v1432
      %v1437 = vmul.f32 %v804, %v1432
      %v1438 = vmul.f32 %v809, %v1432
      %v1439 = vmul.f32 %v814, %v1432
      %v1440 = vmul.f32 %v819, %v1432
      %v1441 = vmul.f32 %v824, %v1432
      %v1442 = vmul.f32 %v829, %v1432
      %v1443 = vmul.f32 %v834, %v1432
      %v1444 = vmul.f32 %v839, %v1432
      %v1445 = vmul.f32 %v844, %v1432
      %v1446 = vmul.f32 %v849, %v1432
      %v1447 = vmul.f32 %v854, %v1432
      %v1448 = vmul.f32 %v859, %v1432
      %v1449 = vmul.f32 %v864, %v1432
      %v1450 = vmul.f32 %v869, %v1432
      %v1451 = vmul.f32 %v874, %v1432
      %v1452 = vmul.f32 %v879, %v1432
      %v1453 = vmul.f32 %v884, %v1432
      %v1454 = vmul.f32 %v889, %v1432
      %v1455 = vmul.f32 %v894, %v1432
      %v1456 = vmul.f32 %v899, %v1432
      %v1457 = vmul.f32 %v904, %v1432
      %v1458 = vmul.f32 %v909, %v1432
      %v1459 = vmul.f32 %v914, %v1432
      %v1460 = vmul.f32 %v919, %v1432
      %v1461 = vmul.f32 %v924, %v1432
      %v1462 = vmul.f32 %v929, %v1432
      %v1463 = vmul.f32 %v934, %v1432
      %v1464 = vmul.f32 %v939, %v1432
      %v1465 = vmul.f32 %v944, %v1432
      %v1466 = vmul.f32 %v949, %v1432
      %v1467 = vmul.f32 %v954, %v1432
      %v1468 = vmul.f32 %v959, %v1432
      %v1469 = vmul.f32 %v964, %v1432
      %v1470 = vmul.f32 %v969, %v1432
      %v1471 = vmul.f32 %v974, %v1432
      %v1472 = vmul.f32 %v979, %v1432
      %v1473 = vmul.f32 %v984, %v1432
      %v1474 = vmul.f32 %v989, %v1432
      %v1475 = vmul.f32 %v994, %v1432
      %v1476 = vmul.f32 %v999, %v1432
      %v1477 = vmul.f32 %v1004, %v1432
      %v1478 = vmul.f32 %v1009, %v1432
      %v1479 = vmul.f32 %v1014, %v1432
      %v1480 = vmul.f32 %v1019, %v1432
      %v1481 = vmul.f32 %v1024, %v1432
      %v1482 = vmul.f32 %v1029, %v1432
      %v1483 = vmul.f32 %v1034, %v1432
      %v1484 = vmul.f32 %v1039, %v1432
      %v1485 = vmul.f32 %v1044, %v1432
      %v1486 = vmul.f32 %v1049, %v1432
      %v1487 = vmul.f32 %v1054, %v1432
      %v1488 = vmul.f32 %v1059, %v1432
      %v1489 = vmul.f32 %v1064, %v1432
      %v1490 = vmul.f32 %v1069, %v1432
      %v1491 = vmul.f32 %v1074, %v1432
      %v1492 = vmul.f32 %v1079, %v1432
      %v1493 = vmul.f32 %v1084, %v1432
      %v1494 = vmul.f32 %v1089, %v1432
      %v1495 = vmul.f32 %v1094, %v1432
      %v1496 = vmul.f32 %v1099, %v1432
      %v1497 = vmul.f32 %v1104, %v1432
      %v1498 = vmul.f32 %v1109, %v1432
      %v1499 = vmul.f32 %v1114, %v1432
      %v1500 = vmul.f32 %v1119, %v1432
      %v1501 = vmul.f32 %v1124, %v1432
      %v1502 = vmul.f32 %v1129, %v1432
      %v1503 = vmul.f32 %v1134, %v1432
      %v1504 = vmul.f32 %v1139, %v1432
      %v1505 = vmul.f32 %v1144, %v1432
      %v1506 = vmul.f32 %v1149, %v1432
      %v1507 = vmul.f32 %v1154, %v1432
      %v1508 = vmul.f32 %v1159, %v1432
      %v1509 = vmul.f32 %v1164, %v1432
      %v1510 = vmul.f32 %v1169, %v1432
      %v1511 = vmul.f32 %v1174, %v1432
      %v1512 = vmul.f32 %v1179, %v1432
      %v1513 = vmul.f32 %v1184, %v1432
      %v1514 = vmul.f32 %v1189, %v1432
      %v1515 = vmul.f32 %v1194, %v1432
      %v1516 = vmul.f32 %v1199, %v1432
      %v1517 = vmul.f32 %v1204, %v1432
      %v1518 = vmul.f32 %v1209, %v1432
      %v1519 = vmul.f32 %v1214, %v1432
      %v1520 = vmul.f32 %v1219, %v1432
      %v1521 = vmul.f32 %v1224, %v1432
      %v1522 = vmul.f32 %v1229, %v1432
      %v1523 = vmul.f32 %v1234, %v1432
      %v1524 = vmul.f32 %v1239, %v1432
      %v1525 = vmul.f32 %v1244, %v1432
      %v1526 = vmul.f32 %v1249, %v1432
      %v1527 = vmul.f32 %v1254, %v1432
      %v1528 = vmul.f32 %v1259, %v1432
      %v1529 = vmul.f32 %v1264, %v1432
      %v1530 = vmul.f32 %v1269, %v1432
      %v1531 = vmul.f32 %v1274, %v1432
      %v1532 = vmul.f32 %v1279, %v1432
      %v1533 = vmul.f32 %v1284, %v1432
      %v1534 = vmul.f32 %v1289, %v1432
      %v1535 = vmul.f32 %v1294, %v1432
      %v1536 = vmul.f32 %v1299, %v1432
      %v1537 = vmul.f32 %v1304, %v1432
      %v1538 = vmul.f32 %v1309, %v1432
      %v1539 = vmul.f32 %v1314, %v1432
      %v1540 = vmul.f32 %v1319, %v1432
      %v1541 = vmul.f32 %v1324, %v1432
      %v1542 = vmul.f32 %v1329, %v1432
      %v1543 = vmul.f32 %v1334, %v1432
      %v1544 = vmul.f32 %v1339, %v1432
      %v1545 = vmul.f32 %v1344, %v1432
      %v1546 = vmul.f32 %v1349, %v1432
      %v1547 = vmul.f32 %v1354, %v1432
      %v1548 = vmul.f32 %v1359, %v1432
      %v1549 = vmul.f32 %v1364, %v1432
      %v1550 = vmul.f32 %v1369, %v1432
      %v1551 = vmul.f32 %v1374, %v1432
      %v1552 = vmul.f32 %v1379, %v1432
      %v1553 = vmul.f32 %v1384, %v1432
      %v1554 = vmul.f32 %v1389, %v1432
      %v1555 = vmul.f32 %v1394, %v1432
      %v1556 = vmul.f32 %v1399, %v1432
      %v1557 = vmul.f32 %v1404, %v1432
      %v1558 = vmul.f32 %v1409, %v1432
      %v1559 = vmul.f32 %v1414, %v1432
      %v1560 = vmul.f32 %v1419, %v1432
      %v1561 = vmul.f32 %v1424, %v1432
      %v1562 = vld [vmem:[%s3] sm:$0x1]
      %v1564 = vlaneseq
      %v1565 = vshrl.u32 %v1564, 7
      %v1566 = vsub.s32 0, %v1565
      %v1567 = vrot.slane %v1562, %v1566
      %v1569 = vadd.f32 %v1434, %v1567
      %v1570 = vadd.f32 %v1435, %v1567
      %v1571 = vadd.f32 %v1436, %v1567
      %v1572 = vadd.f32 %v1437, %v1567
      %v1573 = vadd.f32 %v1438, %v1567
      %v1574 = vadd.f32 %v1439, %v1567
      %v1575 = vadd.f32 %v1440, %v1567
      %v1576 = vadd.f32 %v1441, %v1567
      %v1577 = vadd.f32 %v1442, %v1567
      %v1578 = vadd.f32 %v1443, %v1567
      %v1579 = vadd.f32 %v1444, %v1567
      %v1580 = vadd.f32 %v1445, %v1567
      %v1581 = vadd.f32 %v1446, %v1567
      %v1582 = vadd.f32 %v1447, %v1567
      %v1583 = vadd.f32 %v1448, %v1567
      %v1584 = vadd.f32 %v1449, %v1567
      %v1585 = vadd.f32 %v1450, %v1567
      %v1586 = vadd.f32 %v1451, %v1567
      %v1587 = vadd.f32 %v1452, %v1567
      %v1588 = vadd.f32 %v1453, %v1567
      %v1589 = vadd.f32 %v1454, %v1567
      %v1590 = vadd.f32 %v1455, %v1567
      %v1591 = vadd.f32 %v1456, %v1567
      %v1592 = vadd.f32 %v1457, %v1567
      %v1593 = vadd.f32 %v1458, %v1567
      %v1594 = vadd.f32 %v1459, %v1567
      %v1595 = vadd.f32 %v1460, %v1567
      %v1596 = vadd.f32 %v1461, %v1567
      %v1597 = vadd.f32 %v1462, %v1567
      %v1598 = vadd.f32 %v1463, %v1567
      %v1599 = vadd.f32 %v1464, %v1567
      %v1600 = vadd.f32 %v1465, %v1567
      %v1601 = vadd.f32 %v1466, %v1567
      %v1602 = vadd.f32 %v1467, %v1567
      %v1603 = vadd.f32 %v1468, %v1567
      %v1604 = vadd.f32 %v1469, %v1567
      %v1605 = vadd.f32 %v1470, %v1567
      %v1606 = vadd.f32 %v1471, %v1567
      %v1607 = vadd.f32 %v1472, %v1567
      %v1608 = vadd.f32 %v1473, %v1567
      %v1609 = vadd.f32 %v1474, %v1567
      %v1610 = vadd.f32 %v1475, %v1567
      %v1611 = vadd.f32 %v1476, %v1567
      %v1612 = vadd.f32 %v1477, %v1567
      %v1613 = vadd.f32 %v1478, %v1567
      %v1614 = vadd.f32 %v1479, %v1567
      %v1615 = vadd.f32 %v1480, %v1567
      %v1616 = vadd.f32 %v1481, %v1567
      %v1617 = vadd.f32 %v1482, %v1567
      %v1618 = vadd.f32 %v1483, %v1567
      %v1619 = vadd.f32 %v1484, %v1567
      %v1620 = vadd.f32 %v1485, %v1567
      %v1621 = vadd.f32 %v1486, %v1567
      %v1622 = vadd.f32 %v1487, %v1567
      %v1623 = vadd.f32 %v1488, %v1567
      %v1624 = vadd.f32 %v1489, %v1567
      %v1625 = vadd.f32 %v1490, %v1567
      %v1626 = vadd.f32 %v1491, %v1567
      %v1627 = vadd.f32 %v1492, %v1567
      %v1628 = vadd.f32 %v1493, %v1567
      %v1629 = vadd.f32 %v1494, %v1567
      %v1630 = vadd.f32 %v1495, %v1567
      %v1631 = vadd.f32 %v1496, %v1567
      %v1632 = vadd.f32 %v1497, %v1567
      %v1633 = vadd.f32 %v1498, %v1567
      %v1634 = vadd.f32 %v1499, %v1567
      %v1635 = vadd.f32 %v1500, %v1567
      %v1636 = vadd.f32 %v1501, %v1567
      %v1637 = vadd.f32 %v1502, %v1567
      %v1638 = vadd.f32 %v1503, %v1567
      %v1639 = vadd.f32 %v1504, %v1567
      %v1640 = vadd.f32 %v1505, %v1567
      %v1641 = vadd.f32 %v1506, %v1567
      %v1642 = vadd.f32 %v1507, %v1567
      %v1643 = vadd.f32 %v1508, %v1567
      %v1644 = vadd.f32 %v1509, %v1567
      %v1645 = vadd.f32 %v1510, %v1567
      %v1646 = vadd.f32 %v1511, %v1567
      %v1647 = vadd.f32 %v1512, %v1567
      %v1648 = vadd.f32 %v1513, %v1567
      %v1649 = vadd.f32 %v1514, %v1567
      %v1650 = vadd.f32 %v1515, %v1567
      %v1651 = vadd.f32 %v1516, %v1567
      %v1652 = vadd.f32 %v1517, %v1567
      %v1653 = vadd.f32 %v1518, %v1567
      %v1654 = vadd.f32 %v1519, %v1567
      %v1655 = vadd.f32 %v1520, %v1567
      %v1656 = vadd.f32 %v1521, %v1567
      %v1657 = vadd.f32 %v1522, %v1567
      %v1658 = vadd.f32 %v1523, %v1567
      %v1659 = vadd.f32 %v1524, %v1567
      %v1660 = vadd.f32 %v1525, %v1567
      %v1661 = vadd.f32 %v1526, %v1567
      %v1662 = vadd.f32 %v1527, %v1567
      %v1663 = vadd.f32 %v1528, %v1567
      %v1664 = vadd.f32 %v1529, %v1567
      %v1665 = vadd.f32 %v1530, %v1567
      %v1666 = vadd.f32 %v1531, %v1567
      %v1667 = vadd.f32 %v1532, %v1567
      %v1668 = vadd.f32 %v1533, %v1567
      %v1669 = vadd.f32 %v1534, %v1567
      %v1670 = vadd.f32 %v1535, %v1567
      %v1671 = vadd.f32 %v1536, %v1567
      %v1672 = vadd.f32 %v1537, %v1567
      %v1673 = vadd.f32 %v1538, %v1567
      %v1674 = vadd.f32 %v1539, %v1567
      %v1675 = vadd.f32 %v1540, %v1567
      %v1676 = vadd.f32 %v1541, %v1567
      %v1677 = vadd.f32 %v1542, %v1567
      %v1678 = vadd.f32 %v1543, %v1567
      %v1679 = vadd.f32 %v1544, %v1567
      %v1680 = vadd.f32 %v1545, %v1567
      %v1681 = vadd.f32 %v1546, %v1567
      %v1682 = vadd.f32 %v1547, %v1567
      %v1683 = vadd.f32 %v1548, %v1567
      %v1684 = vadd.f32 %v1549, %v1567
      %v1685 = vadd.f32 %v1550, %v1567
      %v1686 = vadd.f32 %v1551, %v1567
      %v1687 = vadd.f32 %v1552, %v1567
      %v1688 = vadd.f32 %v1553, %v1567
      %v1689 = vadd.f32 %v1554, %v1567
      %v1690 = vadd.f32 %v1555, %v1567
      %v1691 = vadd.f32 %v1556, %v1567
      %v1692 = vadd.f32 %v1557, %v1567
      %v1693 = vadd.f32 %v1558, %v1567
      %v1694 = vadd.f32 %v1559, %v1567
      %v1695 = vadd.f32 %v1560, %v1567
      %v1696 = vadd.f32 %v1561, %v1567
      %vm1697 = vcmp.ge.f32.partialorder %v1569, 0.0
      %vm1698 = vcmp.ge.f32.partialorder %v1570, 0.0
      %vm1699 = vcmp.ge.f32.partialorder %v1571, 0.0
      %vm1700 = vcmp.ge.f32.partialorder %v1572, 0.0
      %vm1701 = vcmp.ge.f32.partialorder %v1573, 0.0
      %vm1702 = vcmp.ge.f32.partialorder %v1574, 0.0
      %vm1703 = vcmp.ge.f32.partialorder %v1575, 0.0
      %vm1704 = vcmp.ge.f32.partialorder %v1576, 0.0
      %vm1705 = vcmp.ge.f32.partialorder %v1577, 0.0
      %vm1706 = vcmp.ge.f32.partialorder %v1578, 0.0
      %vm1707 = vcmp.ge.f32.partialorder %v1579, 0.0
      %vm1708 = vcmp.ge.f32.partialorder %v1580, 0.0
      %vm1709 = vcmp.ge.f32.partialorder %v1581, 0.0
      %vm1710 = vcmp.ge.f32.partialorder %v1582, 0.0
      %vm1711 = vcmp.ge.f32.partialorder %v1583, 0.0
      %vm1712 = vcmp.ge.f32.partialorder %v1584, 0.0
      %vm1713 = vcmp.ge.f32.partialorder %v1585, 0.0
      %vm1714 = vcmp.ge.f32.partialorder %v1586, 0.0
      %vm1715 = vcmp.ge.f32.partialorder %v1587, 0.0
      %vm1716 = vcmp.ge.f32.partialorder %v1588, 0.0
      %vm1717 = vcmp.ge.f32.partialorder %v1589, 0.0
      %vm1718 = vcmp.ge.f32.partialorder %v1590, 0.0
      %vm1719 = vcmp.ge.f32.partialorder %v1591, 0.0
      %vm1720 = vcmp.ge.f32.partialorder %v1592, 0.0
      %vm1721 = vcmp.ge.f32.partialorder %v1593, 0.0
      %vm1722 = vcmp.ge.f32.partialorder %v1594, 0.0
      %vm1723 = vcmp.ge.f32.partialorder %v1595, 0.0
      %vm1724 = vcmp.ge.f32.partialorder %v1596, 0.0
      %vm1725 = vcmp.ge.f32.partialorder %v1597, 0.0
      %vm1726 = vcmp.ge.f32.partialorder %v1598, 0.0
      %vm1727 = vcmp.ge.f32.partialorder %v1599, 0.0
      %vm1728 = vcmp.ge.f32.partialorder %v1600, 0.0
      %vm1729 = vcmp.ge.f32.partialorder %v1601, 0.0
      %vm1730 = vcmp.ge.f32.partialorder %v1602, 0.0
      %vm1731 = vcmp.ge.f32.partialorder %v1603, 0.0
      %vm1732 = vcmp.ge.f32.partialorder %v1604, 0.0
      %vm1733 = vcmp.ge.f32.partialorder %v1605, 0.0
      %vm1734 = vcmp.ge.f32.partialorder %v1606, 0.0
      %vm1735 = vcmp.ge.f32.partialorder %v1607, 0.0
      %vm1736 = vcmp.ge.f32.partialorder %v1608, 0.0
      %vm1737 = vcmp.ge.f32.partialorder %v1609, 0.0
      %vm1738 = vcmp.ge.f32.partialorder %v1610, 0.0
      %vm1739 = vcmp.ge.f32.partialorder %v1611, 0.0
      %vm1740 = vcmp.ge.f32.partialorder %v1612, 0.0
      %vm1741 = vcmp.ge.f32.partialorder %v1613, 0.0
      %vm1742 = vcmp.ge.f32.partialorder %v1614, 0.0
      %vm1743 = vcmp.ge.f32.partialorder %v1615, 0.0
      %vm1744 = vcmp.ge.f32.partialorder %v1616, 0.0
      %vm1745 = vcmp.ge.f32.partialorder %v1617, 0.0
      %vm1746 = vcmp.ge.f32.partialorder %v1618, 0.0
      %vm1747 = vcmp.ge.f32.partialorder %v1619, 0.0
      %vm1748 = vcmp.ge.f32.partialorder %v1620, 0.0
      %vm1749 = vcmp.ge.f32.partialorder %v1621, 0.0
      %vm1750 = vcmp.ge.f32.partialorder %v1622, 0.0
      %vm1751 = vcmp.ge.f32.partialorder %v1623, 0.0
      %vm1752 = vcmp.ge.f32.partialorder %v1624, 0.0
      %vm1753 = vcmp.ge.f32.partialorder %v1625, 0.0
      %vm1754 = vcmp.ge.f32.partialorder %v1626, 0.0
      %vm1755 = vcmp.ge.f32.partialorder %v1627, 0.0
      %vm1756 = vcmp.ge.f32.partialorder %v1628, 0.0
      %vm1757 = vcmp.ge.f32.partialorder %v1629, 0.0
      %vm1758 = vcmp.ge.f32.partialorder %v1630, 0.0
      %vm1759 = vcmp.ge.f32.partialorder %v1631, 0.0
      %vm1760 = vcmp.ge.f32.partialorder %v1632, 0.0
      %vm1761 = vcmp.ge.f32.partialorder %v1633, 0.0
      %vm1762 = vcmp.ge.f32.partialorder %v1634, 0.0
      %vm1763 = vcmp.ge.f32.partialorder %v1635, 0.0
      %vm1764 = vcmp.ge.f32.partialorder %v1636, 0.0
      %vm1765 = vcmp.ge.f32.partialorder %v1637, 0.0
      %vm1766 = vcmp.ge.f32.partialorder %v1638, 0.0
      %vm1767 = vcmp.ge.f32.partialorder %v1639, 0.0
      %vm1768 = vcmp.ge.f32.partialorder %v1640, 0.0
      %vm1769 = vcmp.ge.f32.partialorder %v1641, 0.0
      %vm1770 = vcmp.ge.f32.partialorder %v1642, 0.0
      %vm1771 = vcmp.ge.f32.partialorder %v1643, 0.0
      %vm1772 = vcmp.ge.f32.partialorder %v1644, 0.0
      %vm1773 = vcmp.ge.f32.partialorder %v1645, 0.0
      %vm1774 = vcmp.ge.f32.partialorder %v1646, 0.0
      %vm1775 = vcmp.ge.f32.partialorder %v1647, 0.0
      %vm1776 = vcmp.ge.f32.partialorder %v1648, 0.0
      %vm1777 = vcmp.ge.f32.partialorder %v1649, 0.0
      %vm1778 = vcmp.ge.f32.partialorder %v1650, 0.0
      %vm1779 = vcmp.ge.f32.partialorder %v1651, 0.0
      %vm1780 = vcmp.ge.f32.partialorder %v1652, 0.0
      %vm1781 = vcmp.ge.f32.partialorder %v1653, 0.0
      %vm1782 = vcmp.ge.f32.partialorder %v1654, 0.0
      %vm1783 = vcmp.ge.f32.partialorder %v1655, 0.0
      %vm1784 = vcmp.ge.f32.partialorder %v1656, 0.0
      %vm1785 = vcmp.ge.f32.partialorder %v1657, 0.0
      %vm1786 = vcmp.ge.f32.partialorder %v1658, 0.0
      %vm1787 = vcmp.ge.f32.partialorder %v1659, 0.0
      %vm1788 = vcmp.ge.f32.partialorder %v1660, 0.0
      %vm1789 = vcmp.ge.f32.partialorder %v1661, 0.0
      %vm1790 = vcmp.ge.f32.partialorder %v1662, 0.0
      %vm1791 = vcmp.ge.f32.partialorder %v1663, 0.0
      %vm1792 = vcmp.ge.f32.partialorder %v1664, 0.0
      %vm1793 = vcmp.ge.f32.partialorder %v1665, 0.0
      %vm1794 = vcmp.ge.f32.partialorder %v1666, 0.0
      %vm1795 = vcmp.ge.f32.partialorder %v1667, 0.0
      %vm1796 = vcmp.ge.f32.partialorder %v1668, 0.0
      %vm1797 = vcmp.ge.f32.partialorder %v1669, 0.0
      %vm1798 = vcmp.ge.f32.partialorder %v1670, 0.0
      %vm1799 = vcmp.ge.f32.partialorder %v1671, 0.0
      %vm1800 = vcmp.ge.f32.partialorder %v1672, 0.0
      %vm1801 = vcmp.ge.f32.partialorder %v1673, 0.0
      %vm1802 = vcmp.ge.f32.partialorder %v1674, 0.0
      %vm1803 = vcmp.ge.f32.partialorder %v1675, 0.0
      %vm1804 = vcmp.ge.f32.partialorder %v1676, 0.0
      %vm1805 = vcmp.ge.f32.partialorder %v1677, 0.0
      %vm1806 = vcmp.ge.f32.partialorder %v1678, 0.0
      %vm1807 = vcmp.ge.f32.partialorder %v1679, 0.0
      %vm1808 = vcmp.ge.f32.partialorder %v1680, 0.0
      %vm1809 = vcmp.ge.f32.partialorder %v1681, 0.0
      %vm1810 = vcmp.ge.f32.partialorder %v1682, 0.0
      %vm1811 = vcmp.ge.f32.partialorder %v1683, 0.0
      %vm1812 = vcmp.ge.f32.partialorder %v1684, 0.0
      %vm1813 = vcmp.ge.f32.partialorder %v1685, 0.0
      %vm1814 = vcmp.ge.f32.partialorder %v1686, 0.0
      %vm1815 = vcmp.ge.f32.partialorder %v1687, 0.0
      %vm1816 = vcmp.ge.f32.partialorder %v1688, 0.0
      %vm1817 = vcmp.ge.f32.partialorder %v1689, 0.0
      %vm1818 = vcmp.ge.f32.partialorder %v1690, 0.0
      %vm1819 = vcmp.ge.f32.partialorder %v1691, 0.0
      %vm1820 = vcmp.ge.f32.partialorder %v1692, 0.0
      %vm1821 = vcmp.ge.f32.partialorder %v1693, 0.0
      %vm1822 = vcmp.ge.f32.partialorder %v1694, 0.0
      %vm1823 = vcmp.ge.f32.partialorder %v1695, 0.0
      %vm1824 = vcmp.ge.f32.partialorder %v1696, 0.0
      %v1825 = vmul.f32 %v1569, 0.01
      %v1826 = vmul.f32 %v1570, 0.01
      %v1827 = vmul.f32 %v1571, 0.01
      %v1828 = vmul.f32 %v1572, 0.01
      %v1829 = vmul.f32 %v1573, 0.01
      %v1830 = vmul.f32 %v1574, 0.01
      %v1831 = vmul.f32 %v1575, 0.01
      %v1832 = vmul.f32 %v1576, 0.01
      %v1833 = vmul.f32 %v1577, 0.01
      %v1834 = vmul.f32 %v1578, 0.01
      %v1835 = vmul.f32 %v1579, 0.01
      %v1836 = vmul.f32 %v1580, 0.01
      %v1837 = vmul.f32 %v1581, 0.01
      %v1838 = vmul.f32 %v1582, 0.01
      %v1839 = vmul.f32 %v1583, 0.01
      %v1840 = vmul.f32 %v1584, 0.01
      %v1841 = vmul.f32 %v1585, 0.01
      %v1842 = vmul.f32 %v1586, 0.01
      %v1843 = vmul.f32 %v1587, 0.01
      %v1844 = vmul.f32 %v1588, 0.01
      %v1845 = vmul.f32 %v1589, 0.01
      %v1846 = vmul.f32 %v1590, 0.01
      %v1847 = vmul.f32 %v1591, 0.01
      %v1848 = vmul.f32 %v1592, 0.01
      %v1849 = vmul.f32 %v1593, 0.01
      %v1850 = vmul.f32 %v1594, 0.01
      %v1851 = vmul.f32 %v1595, 0.01
      %v1852 = vmul.f32 %v1596, 0.01
      %v1853 = vmul.f32 %v1597, 0.01
      %v1854 = vmul.f32 %v1598, 0.01
      %v1855 = vmul.f32 %v1599, 0.01
      %v1856 = vmul.f32 %v1600, 0.01
      %v1857 = vmul.f32 %v1601, 0.01
      %v1858 = vmul.f32 %v1602, 0.01
      %v1859 = vmul.f32 %v1603, 0.01
      %v1860 = vmul.f32 %v1604, 0.01
      %v1861 = vmul.f32 %v1605, 0.01
      %v1862 = vmul.f32 %v1606, 0.01
      %v1863 = vmul.f32 %v1607, 0.01
      %v1864 = vmul.f32 %v1608, 0.01
      %v1865 = vmul.f32 %v1609, 0.01
      %v1866 = vmul.f32 %v1610, 0.01
      %v1867 = vmul.f32 %v1611, 0.01
      %v1868 = vmul.f32 %v1612, 0.01
      %v1869 = vmul.f32 %v1613, 0.01
      %v1870 = vmul.f32 %v1614, 0.01
      %v1871 = vmul.f32 %v1615, 0.01
      %v1872 = vmul.f32 %v1616, 0.01
      %v1873 = vmul.f32 %v1617, 0.01
      %v1874 = vmul.f32 %v1618, 0.01
      %v1875 = vmul.f32 %v1619, 0.01
      %v1876 = vmul.f32 %v1620, 0.01
      %v1877 = vmul.f32 %v1621, 0.01
      %v1878 = vmul.f32 %v1622, 0.01
      %v1879 = vmul.f32 %v1623, 0.01
      %v1880 = vmul.f32 %v1624, 0.01
      %v1881 = vmul.f32 %v1625, 0.01
      %v1882 = vmul.f32 %v1626, 0.01
      %v1883 = vmul.f32 %v1627, 0.01
      %v1884 = vmul.f32 %v1628, 0.01
      %v1885 = vmul.f32 %v1629, 0.01
      %v1886 = vmul.f32 %v1630, 0.01
      %v1887 = vmul.f32 %v1631, 0.01
      %v1888 = vmul.f32 %v1632, 0.01
      %v1889 = vmul.f32 %v1633, 0.01
      %v1890 = vmul.f32 %v1634, 0.01
      %v1891 = vmul.f32 %v1635, 0.01
      %v1892 = vmul.f32 %v1636, 0.01
      %v1893 = vmul.f32 %v1637, 0.01
      %v1894 = vmul.f32 %v1638, 0.01
      %v1895 = vmul.f32 %v1639, 0.01
      %v1896 = vmul.f32 %v1640, 0.01
      %v1897 = vmul.f32 %v1641, 0.01
      %v1898 = vmul.f32 %v1642, 0.01
      %v1899 = vmul.f32 %v1643, 0.01
      %v1900 = vmul.f32 %v1644, 0.01
      %v1901 = vmul.f32 %v1645, 0.01
      %v1902 = vmul.f32 %v1646, 0.01
      %v1903 = vmul.f32 %v1647, 0.01
      %v1904 = vmul.f32 %v1648, 0.01
      %v1905 = vmul.f32 %v1649, 0.01
      %v1906 = vmul.f32 %v1650, 0.01
      %v1907 = vmul.f32 %v1651, 0.01
      %v1908 = vmul.f32 %v1652, 0.01
      %v1909 = vmul.f32 %v1653, 0.01
      %v1910 = vmul.f32 %v1654, 0.01
      %v1911 = vmul.f32 %v1655, 0.01
      %v1912 = vmul.f32 %v1656, 0.01
      %v1913 = vmul.f32 %v1657, 0.01
      %v1914 = vmul.f32 %v1658, 0.01
      %v1915 = vmul.f32 %v1659, 0.01
      %v1916 = vmul.f32 %v1660, 0.01
      %v1917 = vmul.f32 %v1661, 0.01
      %v1918 = vmul.f32 %v1662, 0.01
      %v1919 = vmul.f32 %v1663, 0.01
      %v1920 = vmul.f32 %v1664, 0.01
      %v1921 = vmul.f32 %v1665, 0.01
      %v1922 = vmul.f32 %v1666, 0.01
      %v1923 = vmul.f32 %v1667, 0.01
      %v1924 = vmul.f32 %v1668, 0.01
      %v1925 = vmul.f32 %v1669, 0.01
      %v1926 = vmul.f32 %v1670, 0.01
      %v1927 = vmul.f32 %v1671, 0.01
      %v1928 = vmul.f32 %v1672, 0.01
      %v1929 = vmul.f32 %v1673, 0.01
      %v1930 = vmul.f32 %v1674, 0.01
      %v1931 = vmul.f32 %v1675, 0.01
      %v1932 = vmul.f32 %v1676, 0.01
      %v1933 = vmul.f32 %v1677, 0.01
      %v1934 = vmul.f32 %v1678, 0.01
      %v1935 = vmul.f32 %v1679, 0.01
      %v1936 = vmul.f32 %v1680, 0.01
      %v1937 = vmul.f32 %v1681, 0.01
      %v1938 = vmul.f32 %v1682, 0.01
      %v1939 = vmul.f32 %v1683, 0.01
      %v1940 = vmul.f32 %v1684, 0.01
      %v1941 = vmul.f32 %v1685, 0.01
      %v1942 = vmul.f32 %v1686, 0.01
      %v1943 = vmul.f32 %v1687, 0.01
      %v1944 = vmul.f32 %v1688, 0.01
      %v1945 = vmul.f32 %v1689, 0.01
      %v1946 = vmul.f32 %v1690, 0.01
      %v1947 = vmul.f32 %v1691, 0.01
      %v1948 = vmul.f32 %v1692, 0.01
      %v1949 = vmul.f32 %v1693, 0.01
      %v1950 = vmul.f32 %v1694, 0.01
      %v1951 = vmul.f32 %v1695, 0.01
      %v1952 = vmul.f32 %v1696, 0.01
      %v1953 = vsel %vm1697, %v1569, %v1825
      %v1954 = vsel %vm1698, %v1570, %v1826
      %v1955 = vsel %vm1699, %v1571, %v1827
      %v1956 = vsel %vm1700, %v1572, %v1828
      %v1957 = vsel %vm1701, %v1573, %v1829
      %v1958 = vsel %vm1702, %v1574, %v1830
      %v1959 = vsel %vm1703, %v1575, %v1831
      %v1960 = vsel %vm1704, %v1576, %v1832
      %v1961 = vsel %vm1705, %v1577, %v1833
      %v1962 = vsel %vm1706, %v1578, %v1834
      %v1963 = vsel %vm1707, %v1579, %v1835
      %v1964 = vsel %vm1708, %v1580, %v1836
      %v1965 = vsel %vm1709, %v1581, %v1837
      %v1966 = vsel %vm1710, %v1582, %v1838
      %v1967 = vsel %vm1711, %v1583, %v1839
      %v1968 = vsel %vm1712, %v1584, %v1840
      %v1969 = vsel %vm1713, %v1585, %v1841
      %v1970 = vsel %vm1714, %v1586, %v1842
      %v1971 = vsel %vm1715, %v1587, %v1843
      %v1972 = vsel %vm1716, %v1588, %v1844
      %v1973 = vsel %vm1717, %v1589, %v1845
      %v1974 = vsel %vm1718, %v1590, %v1846
      %v1975 = vsel %vm1719, %v1591, %v1847
      %v1976 = vsel %vm1720, %v1592, %v1848
      %v1977 = vsel %vm1721, %v1593, %v1849
      %v1978 = vsel %vm1722, %v1594, %v1850
      %v1979 = vsel %vm1723, %v1595, %v1851
      %v1980 = vsel %vm1724, %v1596, %v1852
      %v1981 = vsel %vm1725, %v1597, %v1853
      %v1982 = vsel %vm1726, %v1598, %v1854
      %v1983 = vsel %vm1727, %v1599, %v1855
      %v1984 = vsel %vm1728, %v1600, %v1856
      %v1985 = vsel %vm1729, %v1601, %v1857
      %v1986 = vsel %vm1730, %v1602, %v1858
      %v1987 = vsel %vm1731, %v1603, %v1859
      %v1988 = vsel %vm1732, %v1604, %v1860
      %v1989 = vsel %vm1733, %v1605, %v1861
      %v1990 = vsel %vm1734, %v1606, %v1862
      %v1991 = vsel %vm1735, %v1607, %v1863
      %v1992 = vsel %vm1736, %v1608, %v1864
      %v1993 = vsel %vm1737, %v1609, %v1865
      %v1994 = vsel %vm1738, %v1610, %v1866
      %v1995 = vsel %vm1739, %v1611, %v1867
      %v1996 = vsel %vm1740, %v1612, %v1868
      %v1997 = vsel %vm1741, %v1613, %v1869
      %v1998 = vsel %vm1742, %v1614, %v1870
      %v1999 = vsel %vm1743, %v1615, %v1871
      %v2000 = vsel %vm1744, %v1616, %v1872
      %v2001 = vsel %vm1745, %v1617, %v1873
      %v2002 = vsel %vm1746, %v1618, %v1874
      %v2003 = vsel %vm1747, %v1619, %v1875
      %v2004 = vsel %vm1748, %v1620, %v1876
      %v2005 = vsel %vm1749, %v1621, %v1877
      %v2006 = vsel %vm1750, %v1622, %v1878
      %v2007 = vsel %vm1751, %v1623, %v1879
      %v2008 = vsel %vm1752, %v1624, %v1880
      %v2009 = vsel %vm1753, %v1625, %v1881
      %v2010 = vsel %vm1754, %v1626, %v1882
      %v2011 = vsel %vm1755, %v1627, %v1883
      %v2012 = vsel %vm1756, %v1628, %v1884
      %v2013 = vsel %vm1757, %v1629, %v1885
      %v2014 = vsel %vm1758, %v1630, %v1886
      %v2015 = vsel %vm1759, %v1631, %v1887
      %v2016 = vsel %vm1760, %v1632, %v1888
      %v2017 = vsel %vm1761, %v1633, %v1889
      %v2018 = vsel %vm1762, %v1634, %v1890
      %v2019 = vsel %vm1763, %v1635, %v1891
      %v2020 = vsel %vm1764, %v1636, %v1892
      %v2021 = vsel %vm1765, %v1637, %v1893
      %v2022 = vsel %vm1766, %v1638, %v1894
      %v2023 = vsel %vm1767, %v1639, %v1895
      %v2024 = vsel %vm1768, %v1640, %v1896
      %v2025 = vsel %vm1769, %v1641, %v1897
      %v2026 = vsel %vm1770, %v1642, %v1898
      %v2027 = vsel %vm1771, %v1643, %v1899
      %v2028 = vsel %vm1772, %v1644, %v1900
      %v2029 = vsel %vm1773, %v1645, %v1901
      %v2030 = vsel %vm1774, %v1646, %v1902
      %v2031 = vsel %vm1775, %v1647, %v1903
      %v2032 = vsel %vm1776, %v1648, %v1904
      %v2033 = vsel %vm1777, %v1649, %v1905
      %v2034 = vsel %vm1778, %v1650, %v1906
      %v2035 = vsel %vm1779, %v1651, %v1907
      %v2036 = vsel %vm1780, %v1652, %v1908
      %v2037 = vsel %vm1781, %v1653, %v1909
      %v2038 = vsel %vm1782, %v1654, %v1910
      %v2039 = vsel %vm1783, %v1655, %v1911
      %v2040 = vsel %vm1784, %v1656, %v1912
      %v2041 = vsel %vm1785, %v1657, %v1913
      %v2042 = vsel %vm1786, %v1658, %v1914
      %v2043 = vsel %vm1787, %v1659, %v1915
      %v2044 = vsel %vm1788, %v1660, %v1916
      %v2045 = vsel %vm1789, %v1661, %v1917
      %v2046 = vsel %vm1790, %v1662, %v1918
      %v2047 = vsel %vm1791, %v1663, %v1919
      %v2048 = vsel %vm1792, %v1664, %v1920
      %v2049 = vsel %vm1793, %v1665, %v1921
      %v2050 = vsel %vm1794, %v1666, %v1922
      %v2051 = vsel %vm1795, %v1667, %v1923
      %v2052 = vsel %vm1796, %v1668, %v1924
      %v2053 = vsel %vm1797, %v1669, %v1925
      %v2054 = vsel %vm1798, %v1670, %v1926
      %v2055 = vsel %vm1799, %v1671, %v1927
      %v2056 = vsel %vm1800, %v1672, %v1928
      %v2057 = vsel %vm1801, %v1673, %v1929
      %v2058 = vsel %vm1802, %v1674, %v1930
      %v2059 = vsel %vm1803, %v1675, %v1931
      %v2060 = vsel %vm1804, %v1676, %v1932
      %v2061 = vsel %vm1805, %v1677, %v1933
      %v2062 = vsel %vm1806, %v1678, %v1934
      %v2063 = vsel %vm1807, %v1679, %v1935
      %v2064 = vsel %vm1808, %v1680, %v1936
      %v2065 = vsel %vm1809, %v1681, %v1937
      %v2066 = vsel %vm1810, %v1682, %v1938
      %v2067 = vsel %vm1811, %v1683, %v1939
      %v2068 = vsel %vm1812, %v1684, %v1940
      %v2069 = vsel %vm1813, %v1685, %v1941
      %v2070 = vsel %vm1814, %v1686, %v1942
      %v2071 = vsel %vm1815, %v1687, %v1943
      %v2072 = vsel %vm1816, %v1688, %v1944
      %v2073 = vsel %vm1817, %v1689, %v1945
      %v2074 = vsel %vm1818, %v1690, %v1946
      %v2075 = vsel %vm1819, %v1691, %v1947
      %v2076 = vsel %vm1820, %v1692, %v1948
      %v2077 = vsel %vm1821, %v1693, %v1949
      %v2078 = vsel %vm1822, %v1694, %v1950
      %v2079 = vsel %vm1823, %v1695, %v1951
      %v2080 = vsel %vm1824, %v1696, %v1952
      %vm2081 = vcmask 64512
      %2082 = vst.msk [vmem:[%s199] sm:$0xff] %vm2081, %v1953
      %2083 = vst.msk [vmem:[%s199 + $0x8] sm:$0xff] %vm2081, %v1954
      %2084 = vst.msk [vmem:[%s199 + $0x10] sm:$0xff] %vm2081, %v1955
      %2085 = vst.msk [vmem:[%s199 + $0x18] sm:$0xff] %vm2081, %v1956
      %2086 = vst.msk [vmem:[%s199 + $0x20] sm:$0xff] %vm2081, %v1957
      %2087 = vst.msk [vmem:[%s199 + $0x28] sm:$0xff] %vm2081, %v1958
      %2088 = vst.msk [vmem:[%s199 + $0x30] sm:$0xff] %vm2081, %v1959
      %2089 = vst.msk [vmem:[%s199 + $0x38] sm:$0xff] %vm2081, %v1960
      %2090 = vst.msk [vmem:[%s199 + $0x40] sm:$0xff] %vm2081, %v1961
      %2091 = vst.msk [vmem:[%s199 + $0x48] sm:$0xff] %vm2081, %v1962
      %2092 = vst.msk [vmem:[%s199 + $0x50] sm:$0xff] %vm2081, %v1963
      %2093 = vst.msk [vmem:[%s199 + $0x58] sm:$0xff] %vm2081, %v1964
      %2094 = vst.msk [vmem:[%s199 + $0x60] sm:$0xff] %vm2081, %v1965
      %2095 = vst.msk [vmem:[%s199 + $0x68] sm:$0xff] %vm2081, %v1966
      %2096 = vst.msk [vmem:[%s199 + $0x70] sm:$0xff] %vm2081, %v1967
      %2097 = vst.msk [vmem:[%s199 + $0x78] sm:$0xff] %vm2081, %v1968
      %2098 = vst.msk [vmem:[%s199 + $0x80] sm:$0xff] %vm2081, %v1969
      %2099 = vst.msk [vmem:[%s199 + $0x88] sm:$0xff] %vm2081, %v1970
      %2100 = vst.msk [vmem:[%s199 + $0x90] sm:$0xff] %vm2081, %v1971
      %2101 = vst.msk [vmem:[%s199 + $0x98] sm:$0xff] %vm2081, %v1972
      %2102 = vst.msk [vmem:[%s199 + $0xa0] sm:$0xff] %vm2081, %v1973
      %2103 = vst.msk [vmem:[%s199 + $0xa8] sm:$0xff] %vm2081, %v1974
      %2104 = vst.msk [vmem:[%s199 + $0xb0] sm:$0xff] %vm2081, %v1975
      %2105 = vst.msk [vmem:[%s199 + $0xb8] sm:$0xff] %vm2081, %v1976
      %2106 = vst.msk [vmem:[%s199 + $0xc0] sm:$0xff] %vm2081, %v1977
      %2107 = vst.msk [vmem:[%s199 + $0xc8] sm:$0xff] %vm2081, %v1978
      %2108 = vst.msk [vmem:[%s199 + $0xd0] sm:$0xff] %vm2081, %v1979
      %2109 = vst.msk [vmem:[%s199 + $0xd8] sm:$0xff] %vm2081, %v1980
      %2110 = vst.msk [vmem:[%s199 + $0xe0] sm:$0xff] %vm2081, %v1981
      %2111 = vst.msk [vmem:[%s199 + $0xe8] sm:$0xff] %vm2081, %v1982
      %2112 = vst.msk [vmem:[%s199 + $0xf0] sm:$0xff] %vm2081, %v1983
      %2113 = vst.msk [vmem:[%s199 + $0xf8] sm:$0xff] %vm2081, %v1984
      %2114 = vst.msk [vmem:[%s199 + $0x100] sm:$0xff] %vm2081, %v1985
      %2115 = vst.msk [vmem:[%s199 + $0x108] sm:$0xff] %vm2081, %v1986
      %2116 = vst.msk [vmem:[%s199 + $0x110] sm:$0xff] %vm2081, %v1987
      %2117 = vst.msk [vmem:[%s199 + $0x118] sm:$0xff] %vm2081, %v1988
      %2118 = vst.msk [vmem:[%s199 + $0x120] sm:$0xff] %vm2081, %v1989
      %2119 = vst.msk [vmem:[%s199 + $0x128] sm:$0xff] %vm2081, %v1990
      %2120 = vst.msk [vmem:[%s199 + $0x130] sm:$0xff] %vm2081, %v1991
      %2121 = vst.msk [vmem:[%s199 + $0x138] sm:$0xff] %vm2081, %v1992
      %2122 = vst.msk [vmem:[%s199 + $0x140] sm:$0xff] %vm2081, %v1993
      %2123 = vst.msk [vmem:[%s199 + $0x148] sm:$0xff] %vm2081, %v1994
      %2124 = vst.msk [vmem:[%s199 + $0x150] sm:$0xff] %vm2081, %v1995
      %2125 = vst.msk [vmem:[%s199 + $0x158] sm:$0xff] %vm2081, %v1996
      %2126 = vst.msk [vmem:[%s199 + $0x160] sm:$0xff] %vm2081, %v1997
      %2127 = vst.msk [vmem:[%s199 + $0x168] sm:$0xff] %vm2081, %v1998
      %2128 = vst.msk [vmem:[%s199 + $0x170] sm:$0xff] %vm2081, %v1999
      %2129 = vst.msk [vmem:[%s199 + $0x178] sm:$0xff] %vm2081, %v2000
      %2130 = vst.msk [vmem:[%s199 + $0x180] sm:$0xff] %vm2081, %v2001
      %2131 = vst.msk [vmem:[%s199 + $0x188] sm:$0xff] %vm2081, %v2002
      %2132 = vst.msk [vmem:[%s199 + $0x190] sm:$0xff] %vm2081, %v2003
      %2133 = vst.msk [vmem:[%s199 + $0x198] sm:$0xff] %vm2081, %v2004
      %2134 = vst.msk [vmem:[%s199 + $0x1a0] sm:$0xff] %vm2081, %v2005
      %2135 = vst.msk [vmem:[%s199 + $0x1a8] sm:$0xff] %vm2081, %v2006
      %2136 = vst.msk [vmem:[%s199 + $0x1b0] sm:$0xff] %vm2081, %v2007
      %2137 = vst.msk [vmem:[%s199 + $0x1b8] sm:$0xff] %vm2081, %v2008
      %2138 = vst.msk [vmem:[%s199 + $0x1c0] sm:$0xff] %vm2081, %v2009
      %2139 = vst.msk [vmem:[%s199 + $0x1c8] sm:$0xff] %vm2081, %v2010
      %2140 = vst.msk [vmem:[%s199 + $0x1d0] sm:$0xff] %vm2081, %v2011
      %2141 = vst.msk [vmem:[%s199 + $0x1d8] sm:$0xff] %vm2081, %v2012
      %2142 = vst.msk [vmem:[%s199 + $0x1e0] sm:$0xff] %vm2081, %v2013
      %2143 = vst.msk [vmem:[%s199 + $0x1e8] sm:$0xff] %vm2081, %v2014
      %2144 = vst.msk [vmem:[%s199 + $0x1f0] sm:$0xff] %vm2081, %v2015
      %2145 = vst.msk [vmem:[%s199 + $0x1f8] sm:$0xff] %vm2081, %v2016
      %2146 = vst.msk [vmem:[%s199 + $0x200] sm:$0xff] %vm2081, %v2017
      %2147 = vst.msk [vmem:[%s199 + $0x208] sm:$0xff] %vm2081, %v2018
      %2148 = vst.msk [vmem:[%s199 + $0x210] sm:$0xff] %vm2081, %v2019
      %2149 = vst.msk [vmem:[%s199 + $0x218] sm:$0xff] %vm2081, %v2020
      %2150 = vst.msk [vmem:[%s199 + $0x220] sm:$0xff] %vm2081, %v2021
      %2151 = vst.msk [vmem:[%s199 + $0x228] sm:$0xff] %vm2081, %v2022
      %2152 = vst.msk [vmem:[%s199 + $0x230] sm:$0xff] %vm2081, %v2023
      %2153 = vst.msk [vmem:[%s199 + $0x238] sm:$0xff] %vm2081, %v2024
      %2154 = vst.msk [vmem:[%s199 + $0x240] sm:$0xff] %vm2081, %v2025
      %2155 = vst.msk [vmem:[%s199 + $0x248] sm:$0xff] %vm2081, %v2026
      %2156 = vst.msk [vmem:[%s199 + $0x250] sm:$0xff] %vm2081, %v2027
      %2157 = vst.msk [vmem:[%s199 + $0x258] sm:$0xff] %vm2081, %v2028
      %2158 = vst.msk [vmem:[%s199 + $0x260] sm:$0xff] %vm2081, %v2029
      %2159 = vst.msk [vmem:[%s199 + $0x268] sm:$0xff] %vm2081, %v2030
      %2160 = vst.msk [vmem:[%s199 + $0x270] sm:$0xff] %vm2081, %v2031
      %2161 = vst.msk [vmem:[%s199 + $0x278] sm:$0xff] %vm2081, %v2032
      %2162 = vst.msk [vmem:[%s199 + $0x280] sm:$0xff] %vm2081, %v2033
      %2163 = vst.msk [vmem:[%s199 + $0x288] sm:$0xff] %vm2081, %v2034
      %2164 = vst.msk [vmem:[%s199 + $0x290] sm:$0xff] %vm2081, %v2035
      %2165 = vst.msk [vmem:[%s199 + $0x298] sm:$0xff] %vm2081, %v2036
      %2166 = vst.msk [vmem:[%s199 + $0x2a0] sm:$0xff] %vm2081, %v2037
      %2167 = vst.msk [vmem:[%s199 + $0x2a8] sm:$0xff] %vm2081, %v2038
      %2168 = vst.msk [vmem:[%s199 + $0x2b0] sm:$0xff] %vm2081, %v2039
      %2169 = vst.msk [vmem:[%s199 + $0x2b8] sm:$0xff] %vm2081, %v2040
      %2170 = vst.msk [vmem:[%s199 + $0x2c0] sm:$0xff] %vm2081, %v2041
      %2171 = vst.msk [vmem:[%s199 + $0x2c8] sm:$0xff] %vm2081, %v2042
      %2172 = vst.msk [vmem:[%s199 + $0x2d0] sm:$0xff] %vm2081, %v2043
      %2173 = vst.msk [vmem:[%s199 + $0x2d8] sm:$0xff] %vm2081, %v2044
      %2174 = vst.msk [vmem:[%s199 + $0x2e0] sm:$0xff] %vm2081, %v2045
      %2175 = vst.msk [vmem:[%s199 + $0x2e8] sm:$0xff] %vm2081, %v2046
      %2176 = vst.msk [vmem:[%s199 + $0x2f0] sm:$0xff] %vm2081, %v2047
      %2177 = vst.msk [vmem:[%s199 + $0x2f8] sm:$0xff] %vm2081, %v2048
      %2178 = vst.msk [vmem:[%s199 + $0x300] sm:$0xff] %vm2081, %v2049
      %2179 = vst.msk [vmem:[%s199 + $0x308] sm:$0xff] %vm2081, %v2050
      %2180 = vst.msk [vmem:[%s199 + $0x310] sm:$0xff] %vm2081, %v2051
      %2181 = vst.msk [vmem:[%s199 + $0x318] sm:$0xff] %vm2081, %v2052
      %2182 = vst.msk [vmem:[%s199 + $0x320] sm:$0xff] %vm2081, %v2053
      %2183 = vst.msk [vmem:[%s199 + $0x328] sm:$0xff] %vm2081, %v2054
      %2184 = vst.msk [vmem:[%s199 + $0x330] sm:$0xff] %vm2081, %v2055
      %2185 = vst.msk [vmem:[%s199 + $0x338] sm:$0xff] %vm2081, %v2056
      %2186 = vst.msk [vmem:[%s199 + $0x340] sm:$0xff] %vm2081, %v2057
      %2187 = vst.msk [vmem:[%s199 + $0x348] sm:$0xff] %vm2081, %v2058
      %2188 = vst.msk [vmem:[%s199 + $0x350] sm:$0xff] %vm2081, %v2059
      %2189 = vst.msk [vmem:[%s199 + $0x358] sm:$0xff] %vm2081, %v2060
      %2190 = vst.msk [vmem:[%s199 + $0x360] sm:$0xff] %vm2081, %v2061
      %2191 = vst.msk [vmem:[%s199 + $0x368] sm:$0xff] %vm2081, %v2062
      %2192 = vst.msk [vmem:[%s199 + $0x370] sm:$0xff] %vm2081, %v2063
      %2193 = vst.msk [vmem:[%s199 + $0x378] sm:$0xff] %vm2081, %v2064
      %2194 = vst.msk [vmem:[%s199 + $0x380] sm:$0xff] %vm2081, %v2065
      %2195 = vst.msk [vmem:[%s199 + $0x388] sm:$0xff] %vm2081, %v2066
      %2196 = vst.msk [vmem:[%s199 + $0x390] sm:$0xff] %vm2081, %v2067
      %2197 = vst.msk [vmem:[%s199 + $0x398] sm:$0xff] %vm2081, %v2068
      %2198 = vst.msk [vmem:[%s199 + $0x3a0] sm:$0xff] %vm2081, %v2069
      %2199 = vst.msk [vmem:[%s199 + $0x3a8] sm:$0xff] %vm2081, %v2070
      %2200 = vst.msk [vmem:[%s199 + $0x3b0] sm:$0xff] %vm2081, %v2071
      %2201 = vst.msk [vmem:[%s199 + $0x3b8] sm:$0xff] %vm2081, %v2072
      %2202 = vst.msk [vmem:[%s199 + $0x3c0] sm:$0xff] %vm2081, %v2073
      %2203 = vst.msk [vmem:[%s199 + $0x3c8] sm:$0xff] %vm2081, %v2074
      %2204 = vst.msk [vmem:[%s199 + $0x3d0] sm:$0xff] %vm2081, %v2075
      %2205 = vst.msk [vmem:[%s199 + $0x3d8] sm:$0xff] %vm2081, %v2076
      %2206 = vst.msk [vmem:[%s199 + $0x3e0] sm:$0xff] %vm2081, %v2077
      %2207 = vst.msk [vmem:[%s199 + $0x3e8] sm:$0xff] %vm2081, %v2078
      %2208 = vst.msk [vmem:[%s199 + $0x3f0] sm:$0xff] %vm2081, %v2079
      %2209 = vst.msk [vmem:[%s199 + $0x3f8] sm:$0xff] %vm2081, %v2080
      %s2210 = smul.u32 128, %s15
      %p2211 = scmp.lt.s32.totalorder %s2210, 255
      %s2212 = scalar_select %p2211, %s2210, 255
      %s2213 = smul.addr %s2212, 8
      %s2214 = scalar_lea.vmem %s4, %s2213
      // Predicated region
      $region37: #{conv_transpose_bn_lrelu.3} parent=35 // pred_check
        %p2215 = pneg %p122
      $region38: #{conv_transpose_bn_lrelu.3} parent=35 // pred_check_branch
        %2217 = sbr.rel (%p2215) target = $region40
      $region39: #{conv_transpose_bn_lrelu.3} parent=35 // pred_region
        %s2218 = smul.u32 128, %s15
      $region40: #{conv_transpose_bn_lrelu.3} parent=35 // pred_fallthru
        _
    $region36: #{conv_transpose_bn_lrelu.3} parent=5 // pred_fallthru
      _
    %p2219 = scmp.le.s32.totalorder 2, %s10
    // Predicated region
    $region41: #{conv_transpose_bn_lrelu.3} parent=5 // pred_check
      %p2220 = pneg %p2219
    $region42: #{conv_transpose_bn_lrelu.3} parent=5 // pred_check_branch
      %2222 = sbr.rel (%p2220) target = $region44
    $region43: #{conv_transpose_bn_lrelu.3} parent=5 // pred_region
      %s2223 = ssub.s32 %s10, 2
      // Predicated region
      $region45: #{conv_transpose_bn_lrelu.3} parent=43 // pred_check
        %p2224 = pneg %p128
      $region46: #{conv_transpose_bn_lrelu.3} parent=43 // pred_check_branch
        %2226 = sbr.rel (%p2224) target = $region48
      $region47: #{conv_transpose_bn_lrelu.3} parent=43 // pred_region
        %s2227 = smul.u32 128, %s16
        %p2228 = scmp.lt.s32.totalorder %s2227, 255
        %s2229 = scalar_select %p2228, %s2227, 255
        %s2230 = smul.addr %s2229, 8
        %s2231 = scalar_lea.vmem %s4, %s2230
      $region48: #{conv_transpose_bn_lrelu.3} parent=43 // pred_fallthru
        _
    $region44: #{conv_transpose_bn_lrelu.3} parent=5 // pred_fallthru
      _
  $region6: #{conv_transpose_bn_lrelu.3} parent=0 // loop_footer
    %s14 = sadd.s32 1, %s10
  $region7: #{conv_transpose_bn_lrelu.3} parent=0 // loop_footer_branch
    %9 = sbr.rel target = $region3
  $region8: #{conv_transpose_bn_lrelu.3} parent=0 // loop_exit
    _

</llo_original>
